<compile_context>
chip_gen: v6e
topology: v6e:2x2x1
jax: 0.10.0
libtpu: 0.0.40
codegen_flags: <defaults>
</compile_context>

<pallas_src>
import functools

import jax
import jax.numpy as jnp
from jax.experimental import pallas as pl
from jax.experimental.pallas import tpu as pltpu


def _encoder_kernel(x_ref, w1_ref, t1_ref, w2_ref, t2_ref, w3_ref, t3_ref,
                    o_ref, xp_ref, *, bt, n_chunks, chunk):
    """One (batch-block, point-split) grid step of the conv encoder + max-pool.

    x_ref : (bt, 3, split_l) f32      native NCL input slab (split_l = n_chunks*chunk)
    w1_ref: (64, 8)   bf16            BN-folded conv1 weight, channels zero-padded 3->8
    t1_ref: (64, 1)   f32             BN-folded conv1 shift (column)
    w2_ref: (64, 128) bf16            conv2 weight, transposed to (Cin, Cout)
    t2_ref: (1, 128)  f32
    w3_ref: (128, latent) bf16        conv3 weight, transposed
    t3_ref: (1, latent)   f32         added after the max (commutes with the max)
    o_ref : (1, bt, latent) f32       partial (per point-split) max, lane-dense rows
    xp_ref: (8, split_l) f32 scratch  channel-padded copy of one cloud
    """
    # Zero the padding channel rows once per grid step (rows 0:3 are rewritten per
    # cloud below); this lets layer 1 run as an aligned K=8 MXU contraction.
    xp_ref[3:, :] = jnp.zeros((xp_ref.shape[0] - 3, xp_ref.shape[1]), jnp.float32)

    for b in range(bt):                       # static unroll over clouds in this block
        xp_ref[0:3, :] = x_ref[b]             # (3, split_l) f32

        run = None                            # running (1, latent) max for this cloud
        for c in range(n_chunks):             # static unroll over point chunks
            c0 = c * chunk
            xc = xp_ref[:, c0:c0 + chunk].astype(jnp.bfloat16)       # (8, chunk)

            # Layer 1 on the MXU (zero-padded K=8), f32 accumulation.
            h = jnp.dot(w1_ref[...], xc,
                        preferred_element_type=jnp.float32)           # (64, chunk)
            # Fused bias + ReLU + orientation flip (points -> sublanes) + bf16 cast.
            h = jnp.maximum(h + t1_ref[...], 0.0).T.astype(jnp.bfloat16)  # (chunk, 64)

            # Layer 2: (chunk,64) @ (64,128), bf16 operands, f32 accumulation.
            h = jnp.dot(h, w2_ref[...],
                        preferred_element_type=jnp.float32)            # (chunk, 128)
            h = jnp.maximum(h + t2_ref[...], 0.0).astype(jnp.bfloat16)

            # Layer 3 (no ReLU before the global max in this encoder).
            h = jnp.dot(h, w3_ref[...],
                        preferred_element_type=jnp.float32)            # (chunk, latent)

            # Per-chunk max over points: cross-sublane reduce, lane-dense (1, latent).
            cmax = jnp.max(h, axis=0, keepdims=True)
            run = cmax if run is None else jnp.maximum(run, cmax)

        # Per-channel BN shift commutes with the max over points.
        o_ref[0, b:b + 1, :] = run + t3_ref[...]


@jax.jit
def pointcloud_encoder_forward(x_ncl, params):
    """x_ncl: (B, 3, L) float32 (Conv1d NCL layout) -> latent codes (B, latent) f32."""
    B, C, L = x_ncl.shape
    assert C == 3

    (w1, t1), (w2, t2), (w3, t3) = params
    latent = w3.shape[0]

    # ---- static tiling decisions (shapes are static under jit) -----------------
    # Inner chunk: points per unrolled inner step; keeps all layer intermediates
    # near vreg size so nothing round-trips VMEM in f32 between layers.
    chunk = 256 if L % 256 == 0 else (128 if L % 128 == 0 else L)
    n_chunks_total = L // chunk
    assert n_chunks_total * chunk == L   # TODO(synk): no masking path for ragged L

    # Batch folding: up to 4 clouds per grid step (weights stay MXU-resident).
    bt = min(B, 4)
    while B % bt:
        bt -= 1
    n_b = B // bt

    # Point-range split: prefer >=2 parallel splits so both v7x TensorCores get work
    # even when the whole batch is folded into one block; cap chunks/step at 4
    # (<= 1024 points) to bound the unrolled code size and per-step VMEM.
    if n_chunks_total >= 2:
        cps = min(4, n_chunks_total)
        while n_chunks_total % cps or (n_chunks_total // cps) < 2:
            cps -= 1
    else:
        cps = n_chunks_total
    n_split = n_chunks_total // cps
    split_l = cps * chunk

    # ---- trace-time parameter prep ---------------------------------------------
    w1p = jnp.pad(w1, ((0, 0), (0, 8 - C))).astype(jnp.bfloat16)   # (64, 8)
    w2t = w2.T.astype(jnp.bfloat16)                                # (64, 128)
    w3t = w3.T.astype(jnp.bfloat16)                                # (128, latent)
    t2r = t2.reshape(1, -1)                                        # (1, 128)
    t3r = t3.reshape(1, -1)                                        # (1, latent)

    kernel = functools.partial(_encoder_kernel, bt=bt, n_chunks=cps, chunk=chunk)

    def _const(shape):
        return pl.BlockSpec(shape, lambda ib, s, _nd=len(shape): (0,) * _nd)

    cost = pl.CostEstimate(
        flops=2 * B * L * (3 * 64 + 64 * 128 + 128 * latent),
        transcendentals=0,
        bytes_accessed=(x_ncl.size * 4 + w1p.size * 2 + w2t.size * 2 + w3t.size * 2
                        + (t1.size + t2r.size + t3r.size) * 4
                        + n_split * B * latent * 4),
    )

    partial_max = pl.pallas_call(
        kernel,
        out_shape=jax.ShapeDtypeStruct((n_split, B, latent), jnp.float32),
        grid_spec=pltpu.PrefetchScalarGridSpec(
            num_scalar_prefetch=0,
            grid=(n_b, n_split),
            in_specs=[
                pl.BlockSpec((bt, 3, split_l), lambda ib, s: (ib, 0, s)),
                _const(w1p.shape), _const(t1.shape),
                _const(w2t.shape), _const(t2r.shape),
                _const(w3t.shape), _const(t3r.shape),
            ],
            out_specs=pl.BlockSpec((1, bt, latent), lambda ib, s: (s, ib, 0)),
            scratch_shapes=[pltpu.VMEM((8, split_l), jnp.float32)],
        ),
        # Every grid point writes its own distinct output block (partial maxes), so
        # both grid axes are safely 'parallel' (megacore-shardable) -- no RMW.
        compiler_params=pltpu.CompilerParams(
            dimension_semantics=("parallel", "parallel")),
        cost_estimate=cost,
    )(x_ncl, w1p, t1, w2t, t2r, w3t, t3r)

    # Combine the per-split partial maxes (one tiny XLA op in the wrapper).
    return jnp.max(partial_max, axis=0)


def make_params(key, latent_size, eps=1e-5):
    """Synthetic Conv1d(k=1)+BatchNorm1d params, BN scale folded into the weights.

    Returns [(W', t)] * 3 with W' = W * scale[:,None] (Cout, Cin) and
    t = ((b - mean) * scale + beta)[:, None]  (Cout, 1).
    """
    dims = [3, 64, 128, latent_size]
    params = []
    for i in range(3):
        cin, cout = dims[i], dims[i + 1]
        key, k_w, k_b, k_g, k_be, k_m, k_v = jax.random.split(key, 7)
        w = jax.random.normal(k_w, (cout, cin), jnp.float32) / jnp.sqrt(cin)
        b = 0.05 * jax.random.normal(k_b, (cout,), jnp.float32)
        gamma = 1.0 + 0.1 * jax.random.normal(k_g, (cout,), jnp.float32)
        beta = 0.1 * jax.random.normal(k_be, (cout,), jnp.float32)
        mean = 0.05 * jax.random.normal(k_m, (cout,), jnp.float32)
        var = jnp.abs(jax.random.normal(k_v, (cout,), jnp.float32)) + 0.5
        scale = gamma / jnp.sqrt(var + eps)
        w_fold = w * scale[:, None]
        t_fold = ((b - mean) * scale + beta)[:, None]
        params.append((w_fold, t_fold))
    return params


def reference_forward(x_ncl, params):
    """Pure-JAX reference (mirrors the kernel's bf16 operand casts on all layers)."""
    (w1, t1), (w2, t2), (w3, t3) = params

    h = jnp.einsum('oc,bcl->bol', w1.astype(jnp.bfloat16),
                   x_ncl.astype(jnp.bfloat16),
                   preferred_element_type=jnp.float32)
    h = jnp.maximum(h + t1, 0.0)

    h = jnp.einsum('oc,bcl->bol', w2.astype(jnp.bfloat16),
                   h.astype(jnp.bfloat16),
                   preferred_element_type=jnp.float32)
    h = jnp.maximum(h + t2, 0.0)

    h = jnp.einsum('oc,bcl->bol', w3.astype(jnp.bfloat16),
                   h.astype(jnp.bfloat16),
                   preferred_element_type=jnp.float32)

    return jnp.max(h, axis=-1) + t3[:, 0]          # (B, latent)


if __name__ == "__main__":
    key = jax.random.PRNGKey(0)
    key, k_x = jax.random.split(key)

    # '1024' model config: point_size=1024, latent_size=256.
    B, point_size, latent_size = 2, 1024, 256
    x = jax.random.normal(k_x, (B, 3, point_size), jnp.float32)   # NCL, like Conv1d

    params = make_params(key, latent_size)

    out = pointcloud_encoder_forward(x, params)
    out = jax.block_until_ready(out)

    ref = reference_forward(x, params)
    assert out.shape == (B, latent_size)
    assert jnp.allclose(out, ref, atol=2e-3, rtol=2e-3), "mismatch vs reference"

    print("KERNEL_OK")
</pallas_src>

<mosaic_0001>
module attributes {stable_mosaic.version = 11 : i64} {
  func.func @_encoder_kernel(%arg0: i32, %arg1: i32, %arg2: memref<2x3x512xf32, #tpu.memory_space<vmem>>, %arg3: memref<64x8xbf16, #tpu.memory_space<vmem>>, %arg4: memref<64x1xf32, #tpu.memory_space<vmem>>, %arg5: memref<64x128xbf16, #tpu.memory_space<vmem>>, %arg6: memref<1x128xf32, #tpu.memory_space<vmem>>, %arg7: memref<128x256xbf16, #tpu.memory_space<vmem>>, %arg8: memref<1x256xf32, #tpu.memory_space<vmem>>, %arg9: memref<1x2x256xf32, #tpu.memory_space<vmem>>, %arg10: memref<8x512xf32, #tpu.memory_space<vmem>>) attributes {dimension_semantics = [#tpu.dimension_semantics<parallel>, #tpu.dimension_semantics<parallel>], iteration_bounds = array<i64: 1, 2>, scalar_prefetch = 0 : i64, scratch_operands = 1 : i64, tpu.core_type = #tpu.core_type<tc>, window_params = [{transform_indices = @transform_0, window_bounds = array<i64: 2, 3, 512>}, {pipeline_mode = #tpu.pipeline_mode<synchronous>, transform_indices = @transform_1, window_bounds = array<i64: 64, 8>}, {pipeline_mode = #tpu.pipeline_mode<synchronous>, transform_indices = @transform_2, window_bounds = array<i64: 64, 1>}, {pipeline_mode = #tpu.pipeline_mode<synchronous>, transform_indices = @transform_3, window_bounds = array<i64: 64, 128>}, {pipeline_mode = #tpu.pipeline_mode<synchronous>, transform_indices = @transform_4, window_bounds = array<i64: 1, 128>}, {pipeline_mode = #tpu.pipeline_mode<synchronous>, transform_indices = @transform_5, window_bounds = array<i64: 128, 256>}, {pipeline_mode = #tpu.pipeline_mode<synchronous>, transform_indices = @transform_6, window_bounds = array<i64: 1, 256>}, {transform_indices = @transform_7, window_bounds = array<i64: 1, 2, 256>}]} {
    %cst = arith.constant 0.000000e+00 : f32
    %0 = vector.broadcast %cst : f32 to vector<5x512xf32>
    %c3 = arith.constant 3 : index
    %c0 = arith.constant 0 : index
    %1 = vector.load %arg10[%c3, %c0] : memref<8x512xf32, #tpu.memory_space<vmem>>, vector<5x512xf32>
    tpu.vector_store %arg10[%c3, %c0], %0 {strides = array<i32>} : memref<8x512xf32, #tpu.memory_space<vmem>>, vector<5x512xf32>,
    %c0_0 = arith.constant 0 : index
    %c0_1 = arith.constant 0 : index
    %c0_2 = arith.constant 0 : index
    %2 = vector.load %arg2[%c0_0, %c0_1, %c0_2] : memref<2x3x512xf32, #tpu.memory_space<vmem>>, vector<1x3x512xf32>
    %3 = vector.shape_cast %2 : vector<1x3x512xf32> to vector<3x512xf32>
    %c0_3 = arith.constant 0 : index
    %c0_4 = arith.constant 0 : index
    %4 = vector.load %arg10[%c0_3, %c0_4] : memref<8x512xf32, #tpu.memory_space<vmem>>, vector<3x512xf32>
    tpu.vector_store %arg10[%c0_3, %c0_4], %3 {strides = array<i32>} : memref<8x512xf32, #tpu.memory_space<vmem>>, vector<3x512xf32>,
    %c0_5 = arith.constant 0 : index
    %c0_6 = arith.constant 0 : index
    %5 = vector.load %arg10[%c0_5, %c0_6] : memref<8x512xf32, #tpu.memory_space<vmem>>, vector<8x256xf32>
    %6 = arith.truncf %5 : vector<8x256xf32> to vector<8x256xbf16>
    %c0_7 = arith.constant 0 : index
    %c0_8 = arith.constant 0 : index
    %7 = vector.load %arg3[%c0_7, %c0_8] : memref<64x8xbf16, #tpu.memory_space<vmem>>, vector<64x8xbf16>
    %cst_9 = arith.constant dense<0.000000e+00> : vector<64x256xf32>
    %8 = tpu.matmul %7, %6, %cst_9 {dimension_numbers = #tpu.dot_dimension_numbers<[1], [0], [0], [1], [0, 0, 1, 1], [], []>} : vector<64x8xbf16>, vector<8x256xbf16>, vector<64x256xf32> -> vector<64x256xf32>
    %c0_10 = arith.constant 0 : index
    %c0_11 = arith.constant 0 : index
    %9 = vector.load %arg4[%c0_10, %c0_11] : memref<64x1xf32, #tpu.memory_space<vmem>>, vector<64x1xf32>
    %10 = vector.broadcast %9 : vector<64x1xf32> to vector<64x256xf32>
    %11 = arith.addf %8, %10 : vector<64x256xf32>
    %cst_12 = arith.constant 0.000000e+00 : f32
    %12 = vector.broadcast %cst_12 : f32 to vector<64x256xf32>
    %13 = arith.maximumf %11, %12 : vector<64x256xf32>
    %14 = tpu.transpose %13, [1, 0] : vector<64x256xf32> -> vector<256x64xf32>
    %15 = arith.truncf %14 : vector<256x64xf32> to vector<256x64xbf16>
    %c0_13 = arith.constant 0 : index
    %c0_14 = arith.constant 0 : index
    %16 = vector.load %arg5[%c0_13, %c0_14] : memref<64x128xbf16, #tpu.memory_space<vmem>>, vector<64x128xbf16>
    %cst_15 = arith.constant dense<0.000000e+00> : vector<256x128xf32>
    %17 = tpu.matmul %15, %16, %cst_15 {dimension_numbers = #tpu.dot_dimension_numbers<[1], [0], [0], [1], [0, 0, 1, 1], [], []>} : vector<256x64xbf16>, vector<64x128xbf16>, vector<256x128xf32> -> vector<256x128xf32>
    %c0_16 = arith.constant 0 : index
    %c0_17 = arith.constant 0 : index
    %18 = vector.load %arg6[%c0_16, %c0_17] : memref<1x128xf32, #tpu.memory_space<vmem>>, vector<1x128xf32>
    %19 = vector.broadcast %18 : vector<1x128xf32> to vector<256x128xf32>
    %20 = arith.addf %17, %19 : vector<256x128xf32>
    %cst_18 = arith.constant 0.000000e+00 : f32
    %21 = vector.broadcast %cst_18 : f32 to vector<256x128xf32>
    %22 = arith.maximumf %20, %21 : vector<256x128xf32>
    %23 = arith.truncf %22 : vector<256x128xf32> to vector<256x128xbf16>
    %c0_19 = arith.constant 0 : index
    %c0_20 = arith.constant 0 : index
    %24 = vector.load %arg7[%c0_19, %c0_20] : memref<128x256xbf16, #tpu.memory_space<vmem>>, vector<128x256xbf16>
    %cst_21 = arith.constant dense<0.000000e+00> : vector<256x256xf32>
    %25 = tpu.matmul %23, %24, %cst_21 {dimension_numbers = #tpu.dot_dimension_numbers<[1], [0], [0], [1], [0, 0, 1, 1], [], []>} : vector<256x128xbf16>, vector<128x256xbf16>, vector<256x256xf32> -> vector<256x256xf32>
    %cst_22 = arith.constant dense<0xFF800000> : vector<256xf32>
    %26 = vector.multi_reduction <maximumf>, %25, %cst_22 [0] : vector<256x256xf32> to vector<256xf32>
    %27 = vector.shape_cast %26 : vector<256xf32> to vector<1x256xf32>
    %c0_23 = arith.constant 0 : index
    %c256 = arith.constant 256 : index
    %28 = vector.load %arg10[%c0_23, %c256] : memref<8x512xf32, #tpu.memory_space<vmem>>, vector<8x256xf32>
    %29 = arith.truncf %28 : vector<8x256xf32> to vector<8x256xbf16>
    %c0_24 = arith.constant 0 : index
    %c0_25 = arith.constant 0 : index
    %30 = vector.load %arg3[%c0_24, %c0_25] : memref<64x8xbf16, #tpu.memory_space<vmem>>, vector<64x8xbf16>
    %cst_26 = arith.constant dense<0.000000e+00> : vector<64x256xf32>
    %31 = tpu.matmul %30, %29, %cst_26 {dimension_numbers = #tpu.dot_dimension_numbers<[1], [0], [0], [1], [0, 0, 1, 1], [], []>} : vector<64x8xbf16>, vector<8x256xbf16>, vector<64x256xf32> -> vector<64x256xf32>
    %c0_27 = arith.constant 0 : index
    %c0_28 = arith.constant 0 : index
    %32 = vector.load %arg4[%c0_27, %c0_28] : memref<64x1xf32, #tpu.memory_space<vmem>>, vector<64x1xf32>
    %33 = vector.broadcast %32 : vector<64x1xf32> to vector<64x256xf32>
    %34 = arith.addf %31, %33 : vector<64x256xf32>
    %cst_29 = arith.constant 0.000000e+00 : f32
    %35 = vector.broadcast %cst_29 : f32 to vector<64x256xf32>
    %36 = arith.maximumf %34, %35 : vector<64x256xf32>
    %37 = tpu.transpose %36, [1, 0] : vector<64x256xf32> -> vector<256x64xf32>
    %38 = arith.truncf %37 : vector<256x64xf32> to vector<256x64xbf16>
    %c0_30 = arith.constant 0 : index
    %c0_31 = arith.constant 0 : index
    %39 = vector.load %arg5[%c0_30, %c0_31] : memref<64x128xbf16, #tpu.memory_space<vmem>>, vector<64x128xbf16>
    %cst_32 = arith.constant dense<0.000000e+00> : vector<256x128xf32>
    %40 = tpu.matmul %38, %39, %cst_32 {dimension_numbers = #tpu.dot_dimension_numbers<[1], [0], [0], [1], [0, 0, 1, 1], [], []>} : vector<256x64xbf16>, vector<64x128xbf16>, vector<256x128xf32> -> vector<256x128xf32>
    %c0_33 = arith.constant 0 : index
    %c0_34 = arith.constant 0 : index
    %41 = vector.load %arg6[%c0_33, %c0_34] : memref<1x128xf32, #tpu.memory_space<vmem>>, vector<1x128xf32>
    %42 = vector.broadcast %41 : vector<1x128xf32> to vector<256x128xf32>
    %43 = arith.addf %40, %42 : vector<256x128xf32>
    %cst_35 = arith.constant 0.000000e+00 : f32
    %44 = vector.broadcast %cst_35 : f32 to vector<256x128xf32>
    %45 = arith.maximumf %43, %44 : vector<256x128xf32>
    %46 = arith.truncf %45 : vector<256x128xf32> to vector<256x128xbf16>
    %c0_36 = arith.constant 0 : index
    %c0_37 = arith.constant 0 : index
    %47 = vector.load %arg7[%c0_36, %c0_37] : memref<128x256xbf16, #tpu.memory_space<vmem>>, vector<128x256xbf16>
    %cst_38 = arith.constant dense<0.000000e+00> : vector<256x256xf32>
    %48 = tpu.matmul %46, %47, %cst_38 {dimension_numbers = #tpu.dot_dimension_numbers<[1], [0], [0], [1], [0, 0, 1, 1], [], []>} : vector<256x128xbf16>, vector<128x256xbf16>, vector<256x256xf32> -> vector<256x256xf32>
    %cst_39 = arith.constant dense<0xFF800000> : vector<256xf32>
    %49 = vector.multi_reduction <maximumf>, %48, %cst_39 [0] : vector<256x256xf32> to vector<256xf32>
    %50 = vector.shape_cast %49 : vector<256xf32> to vector<1x256xf32>
    %51 = arith.maximumf %27, %50 : vector<1x256xf32>
    %c0_40 = arith.constant 0 : index
    %c0_41 = arith.constant 0 : index
    %52 = vector.load %arg8[%c0_40, %c0_41] : memref<1x256xf32, #tpu.memory_space<vmem>>, vector<1x256xf32>
    %53 = arith.addf %51, %52 : vector<1x256xf32>
    %c0_42 = arith.constant 0 : index
    %c0_43 = arith.constant 0 : index
    %c0_44 = arith.constant 0 : index
    %54 = vector.load %arg9[%c0_42, %c0_43, %c0_44] : memref<1x2x256xf32, #tpu.memory_space<vmem>>, vector<1x1x256xf32>
    %55 = vector.shape_cast %54 : vector<1x1x256xf32> to vector<1x256xf32>
    %56 = vector.shape_cast %53 : vector<1x256xf32> to vector<1x1x256xf32>
    tpu.vector_store %arg9[%c0_42, %c0_43, %c0_44], %56 {strides = array<i32>} : memref<1x2x256xf32, #tpu.memory_space<vmem>>, vector<1x1x256xf32>,
    %c1 = arith.constant 1 : index
    %c0_45 = arith.constant 0 : index
    %c0_46 = arith.constant 0 : index
    %57 = vector.load %arg2[%c1, %c0_45, %c0_46] : memref<2x3x512xf32, #tpu.memory_space<vmem>>, vector<1x3x512xf32>
    %58 = vector.shape_cast %57 : vector<1x3x512xf32> to vector<3x512xf32>
    %c0_47 = arith.constant 0 : index
    %c0_48 = arith.constant 0 : index
    %59 = vector.load %arg10[%c0_47, %c0_48] : memref<8x512xf32, #tpu.memory_space<vmem>>, vector<3x512xf32>
    tpu.vector_store %arg10[%c0_47, %c0_48], %58 {strides = array<i32>} : memref<8x512xf32, #tpu.memory_space<vmem>>, vector<3x512xf32>,
    %c0_49 = arith.constant 0 : index
    %c0_50 = arith.constant 0 : index
    %60 = vector.load %arg10[%c0_49, %c0_50] : memref<8x512xf32, #tpu.memory_space<vmem>>, vector<8x256xf32>
    %61 = arith.truncf %60 : vector<8x256xf32> to vector<8x256xbf16>
    %c0_51 = arith.constant 0 : index
    %c0_52 = arith.constant 0 : index
    %62 = vector.load %arg3[%c0_51, %c0_52] : memref<64x8xbf16, #tpu.memory_space<vmem>>, vector<64x8xbf16>
    %cst_53 = arith.constant dense<0.000000e+00> : vector<64x256xf32>
    %63 = tpu.matmul %62, %61, %cst_53 {dimension_numbers = #tpu.dot_dimension_numbers<[1], [0], [0], [1], [0, 0, 1, 1], [], []>} : vector<64x8xbf16>, vector<8x256xbf16>, vector<64x256xf32> -> vector<64x256xf32>
    %c0_54 = arith.constant 0 : index
    %c0_55 = arith.constant 0 : index
    %64 = vector.load %arg4[%c0_54, %c0_55] : memref<64x1xf32, #tpu.memory_space<vmem>>, vector<64x1xf32>
    %65 = vector.broadcast %64 : vector<64x1xf32> to vector<64x256xf32>
    %66 = arith.addf %63, %65 : vector<64x256xf32>
    %cst_56 = arith.constant 0.000000e+00 : f32
    %67 = vector.broadcast %cst_56 : f32 to vector<64x256xf32>
    %68 = arith.maximumf %66, %67 : vector<64x256xf32>
    %69 = tpu.transpose %68, [1, 0] : vector<64x256xf32> -> vector<256x64xf32>
    %70 = arith.truncf %69 : vector<256x64xf32> to vector<256x64xbf16>
    %c0_57 = arith.constant 0 : index
    %c0_58 = arith.constant 0 : index
    %71 = vector.load %arg5[%c0_57, %c0_58] : memref<64x128xbf16, #tpu.memory_space<vmem>>, vector<64x128xbf16>
    %cst_59 = arith.constant dense<0.000000e+00> : vector<256x128xf32>
    %72 = tpu.matmul %70, %71, %cst_59 {dimension_numbers = #tpu.dot_dimension_numbers<[1], [0], [0], [1], [0, 0, 1, 1], [], []>} : vector<256x64xbf16>, vector<64x128xbf16>, vector<256x128xf32> -> vector<256x128xf32>
    %c0_60 = arith.constant 0 : index
    %c0_61 = arith.constant 0 : index
    %73 = vector.load %arg6[%c0_60, %c0_61] : memref<1x128xf32, #tpu.memory_space<vmem>>, vector<1x128xf32>
    %74 = vector.broadcast %73 : vector<1x128xf32> to vector<256x128xf32>
    %75 = arith.addf %72, %74 : vector<256x128xf32>
    %cst_62 = arith.constant 0.000000e+00 : f32
    %76 = vector.broadcast %cst_62 : f32 to vector<256x128xf32>
    %77 = arith.maximumf %75, %76 : vector<256x128xf32>
    %78 = arith.truncf %77 : vector<256x128xf32> to vector<256x128xbf16>
    %c0_63 = arith.constant 0 : index
    %c0_64 = arith.constant 0 : index
    %79 = vector.load %arg7[%c0_63, %c0_64] : memref<128x256xbf16, #tpu.memory_space<vmem>>, vector<128x256xbf16>
    %cst_65 = arith.constant dense<0.000000e+00> : vector<256x256xf32>
    %80 = tpu.matmul %78, %79, %cst_65 {dimension_numbers = #tpu.dot_dimension_numbers<[1], [0], [0], [1], [0, 0, 1, 1], [], []>} : vector<256x128xbf16>, vector<128x256xbf16>, vector<256x256xf32> -> vector<256x256xf32>
    %cst_66 = arith.constant dense<0xFF800000> : vector<256xf32>
    %81 = vector.multi_reduction <maximumf>, %80, %cst_66 [0] : vector<256x256xf32> to vector<256xf32>
    %82 = vector.shape_cast %81 : vector<256xf32> to vector<1x256xf32>
    %c0_67 = arith.constant 0 : index
    %c256_68 = arith.constant 256 : index
    %83 = vector.load %arg10[%c0_67, %c256_68] : memref<8x512xf32, #tpu.memory_space<vmem>>, vector<8x256xf32>
    %84 = arith.truncf %83 : vector<8x256xf32> to vector<8x256xbf16>
    %c0_69 = arith.constant 0 : index
    %c0_70 = arith.constant 0 : index
    %85 = vector.load %arg3[%c0_69, %c0_70] : memref<64x8xbf16, #tpu.memory_space<vmem>>, vector<64x8xbf16>
    %cst_71 = arith.constant dense<0.000000e+00> : vector<64x256xf32>
    %86 = tpu.matmul %85, %84, %cst_71 {dimension_numbers = #tpu.dot_dimension_numbers<[1], [0], [0], [1], [0, 0, 1, 1], [], []>} : vector<64x8xbf16>, vector<8x256xbf16>, vector<64x256xf32> -> vector<64x256xf32>
    %c0_72 = arith.constant 0 : index
    %c0_73 = arith.constant 0 : index
    %87 = vector.load %arg4[%c0_72, %c0_73] : memref<64x1xf32, #tpu.memory_space<vmem>>, vector<64x1xf32>
    %88 = vector.broadcast %87 : vector<64x1xf32> to vector<64x256xf32>
    %89 = arith.addf %86, %88 : vector<64x256xf32>
    %cst_74 = arith.constant 0.000000e+00 : f32
    %90 = vector.broadcast %cst_74 : f32 to vector<64x256xf32>
    %91 = arith.maximumf %89, %90 : vector<64x256xf32>
    %92 = tpu.transpose %91, [1, 0] : vector<64x256xf32> -> vector<256x64xf32>
    %93 = arith.truncf %92 : vector<256x64xf32> to vector<256x64xbf16>
    %c0_75 = arith.constant 0 : index
    %c0_76 = arith.constant 0 : index
    %94 = vector.load %arg5[%c0_75, %c0_76] : memref<64x128xbf16, #tpu.memory_space<vmem>>, vector<64x128xbf16>
    %cst_77 = arith.constant dense<0.000000e+00> : vector<256x128xf32>
    %95 = tpu.matmul %93, %94, %cst_77 {dimension_numbers = #tpu.dot_dimension_numbers<[1], [0], [0], [1], [0, 0, 1, 1], [], []>} : vector<256x64xbf16>, vector<64x128xbf16>, vector<256x128xf32> -> vector<256x128xf32>
    %c0_78 = arith.constant 0 : index
    %c0_79 = arith.constant 0 : index
    %96 = vector.load %arg6[%c0_78, %c0_79] : memref<1x128xf32, #tpu.memory_space<vmem>>, vector<1x128xf32>
    %97 = vector.broadcast %96 : vector<1x128xf32> to vector<256x128xf32>
    %98 = arith.addf %95, %97 : vector<256x128xf32>
    %cst_80 = arith.constant 0.000000e+00 : f32
    %99 = vector.broadcast %cst_80 : f32 to vector<256x128xf32>
    %100 = arith.maximumf %98, %99 : vector<256x128xf32>
    %101 = arith.truncf %100 : vector<256x128xf32> to vector<256x128xbf16>
    %c0_81 = arith.constant 0 : index
    %c0_82 = arith.constant 0 : index
    %102 = vector.load %arg7[%c0_81, %c0_82] : memref<128x256xbf16, #tpu.memory_space<vmem>>, vector<128x256xbf16>
    %cst_83 = arith.constant dense<0.000000e+00> : vector<256x256xf32>
    %103 = tpu.matmul %101, %102, %cst_83 {dimension_numbers = #tpu.dot_dimension_numbers<[1], [0], [0], [1], [0, 0, 1, 1], [], []>} : vector<256x128xbf16>, vector<128x256xbf16>, vector<256x256xf32> -> vector<256x256xf32>
    %cst_84 = arith.constant dense<0xFF800000> : vector<256xf32>
    %104 = vector.multi_reduction <maximumf>, %103, %cst_84 [0] : vector<256x256xf32> to vector<256xf32>
    %105 = vector.shape_cast %104 : vector<256xf32> to vector<1x256xf32>
    %106 = arith.maximumf %82, %105 : vector<1x256xf32>
    %c0_85 = arith.constant 0 : index
    %c0_86 = arith.constant 0 : index
    %107 = vector.load %arg8[%c0_85, %c0_86] : memref<1x256xf32, #tpu.memory_space<vmem>>, vector<1x256xf32>
    %108 = arith.addf %106, %107 : vector<1x256xf32>
    %c0_87 = arith.constant 0 : index
    %c1_88 = arith.constant 1 : index
    %c0_89 = arith.constant 0 : index
    %109 = vector.load %arg9[%c0_87, %c1_88, %c0_89] : memref<1x2x256xf32, #tpu.memory_space<vmem>>, vector<1x1x256xf32>
    %110 = vector.shape_cast %109 : vector<1x1x256xf32> to vector<1x256xf32>
    %111 = vector.shape_cast %108 : vector<1x256xf32> to vector<1x1x256xf32>
    tpu.vector_store %arg9[%c0_87, %c1_88, %c0_89], %111 {strides = array<i32>} : memref<1x2x256xf32, #tpu.memory_space<vmem>>, vector<1x1x256xf32>,
    return
  }
  func.func @transform_0(%arg0: i32, %arg1: i32) -> (i32, i32, i32) {
    %c0_i32 = arith.constant 0 : i32
    %c0_i32_0 = arith.constant 0 : i32
    return %arg0, %c0_i32, %arg1 : i32, i32, i32
  }
  func.func @transform_1(%arg0: i32, %arg1: i32) -> (i32, i32) {
    %c0_i32 = arith.constant 0 : i32
    %c0_i32_0 = arith.constant 0 : i32
    %c0_i32_1 = arith.constant 0 : i32
    return %c0_i32, %c0_i32_0 : i32, i32
  }
  func.func @transform_2(%arg0: i32, %arg1: i32) -> (i32, i32) {
    %c0_i32 = arith.constant 0 : i32
    %c0_i32_0 = arith.constant 0 : i32
    %c0_i32_1 = arith.constant 0 : i32
    return %c0_i32, %c0_i32_0 : i32, i32
  }
  func.func @transform_3(%arg0: i32, %arg1: i32) -> (i32, i32) {
    %c0_i32 = arith.constant 0 : i32
    %c0_i32_0 = arith.constant 0 : i32
    %c0_i32_1 = arith.constant 0 : i32
    return %c0_i32, %c0_i32_0 : i32, i32
  }
  func.func @transform_4(%arg0: i32, %arg1: i32) -> (i32, i32) {
    %c0_i32 = arith.constant 0 : i32
    %c0_i32_0 = arith.constant 0 : i32
    %c0_i32_1 = arith.constant 0 : i32
    return %c0_i32, %c0_i32_0 : i32, i32
  }
  func.func @transform_5(%arg0: i32, %arg1: i32) -> (i32, i32) {
    %c0_i32 = arith.constant 0 : i32
    %c0_i32_0 = arith.constant 0 : i32
    %c0_i32_1 = arith.constant 0 : i32
    return %c0_i32, %c0_i32_0 : i32, i32
  }
  func.func @transform_6(%arg0: i32, %arg1: i32) -> (i32, i32) {
    %c0_i32 = arith.constant 0 : i32
    %c0_i32_0 = arith.constant 0 : i32
    %c0_i32_1 = arith.constant 0 : i32
    return %c0_i32, %c0_i32_0 : i32, i32
  }
  func.func @transform_7(%arg0: i32, %arg1: i32) -> (i32, i32, i32) {
    %c0_i32 = arith.constant 0 : i32
    %c0_i32_0 = arith.constant 0 : i32
    return %arg1, %arg0, %c0_i32 : i32, i32, i32
  }
}

</mosaic_0001>

<llo_original>
// kernel: pointcloud_encoder_forward.1
$region0: #{pointcloud_encoder_forward.1}
  #allocation0 [shape = 'u32[]', space=smem, size = 0x4, offset = 0x4, fixed_abs, tag = 'smem constant byte address 0x4 - core index']
  #allocation1 [shape = 'u32[144,128]{1,0:T(1,128)}', space=vmem, size = 0x12000, scoped, tag = 'internal scratch']
  #allocation2 [shape = 'f32[8,512]{1,0:T(8,128)}', space=vmem, size = 0x4000, scoped, tag = 'scratch operand']
  %s0 = inlined_call_operand.vmem [shape: f32[2,3,1024], index: 0, kind: input, shape index: {}]
  %s1 = inlined_call_operand.vmem [shape: bf16[64,8], index: 1, kind: input, shape index: {}]
  %s2 = inlined_call_operand.vmem [shape: f32[64,1], index: 2, kind: input, shape index: {}]
  %s3 = inlined_call_operand.vmem [shape: bf16[64,128], index: 3, kind: input, shape index: {}]
  %s4 = inlined_call_operand.vmem [shape: f32[1,128], index: 4, kind: input, shape index: {}]
  %s5 = inlined_call_operand.vmem [shape: bf16[128,256], index: 5, kind: input, shape index: {}]
  %s6 = inlined_call_operand.vmem [shape: f32[1,256], index: 6, kind: input, shape index: {}]
  %s7 = inlined_call_operand.vmem [shape: f32[2,2,256], index: 7, kind: output, shape index: {}]
  %s8 = sld [smem:[#allocation0]]
  $region84: #{pointcloud_encoder_forward.1} parent=0
    _
  %s10 = ssub.s32 1, %s8
  %s11 = scalar_select 0, %s10, %s8
  $region1: #{pointcloud_encoder_forward.1} parent=0
    #allocation3 [shape = 'u8[32768]{0}', space=vmem, size = 0x8000, scoped, tag = 'input window, operand 0']
    loop: start=0, step=1, limit=4
    $region2: #{pointcloud_encoder_forward.1} parent=1 // loop_pre_header
      _
    $region3: #{pointcloud_encoder_forward.1} parent=1 // loop_header
      %s13 = sphi 0, %s17
      %p14 = scmp.ge.s32.totalorder %s13, 4
      %s20 = sphi 0, %s32
      %s21 = sphi 0, %s28
      %s22 = sphi 0, %s20
      %s23 = sphi 0, %s21
      %s24 = sphi 0, %s22
      %s25 = sphi 0, %s23
      %s37 = sphi 0, %s39
      %s40 = sphi 0, %s37
      %s41 = sphi 0, %s40
      %s57 = sphi 0, %s41
      %s61 = sphi 0, %s61
      %s63 = sphi 0, %s61
      %s64 = sphi 0, %s63
      %s78 = sphi 0, %s64
      %s82 = sphi 0, %s82
      %s84 = sphi 0, %s82
      %s85 = sphi 0, %s84
      %s99 = sphi 0, %s85
      %s103 = sphi 0, %s103
      %s105 = sphi 0, %s103
      %s106 = sphi 0, %s105
      %s120 = sphi 0, %s106
      %s124 = sphi 0, %s124
      %s126 = sphi 0, %s124
      %s127 = sphi 0, %s126
      %s141 = sphi 0, %s127
      %s145 = sphi 0, %s145
      %s147 = sphi 0, %s145
      %s148 = sphi 0, %s147
      %s162 = sphi 0, %s148
      %s166 = sphi 0, %s166
      %s168 = sphi 0, %s166
      %s169 = sphi 0, %s168
      %s183 = sphi 0, %s169
      %s191 = sphi 0, %s193
      %s194 = sphi 0, %s191
      %s195 = sphi 0, %s194
      %s211 = sphi 0, %s195
    $region4: #{pointcloud_encoder_forward.1} parent=1 // loop_header_branch
      %16 = sbr.rel (%p14) target = $region8
    $region5: #{pointcloud_encoder_forward.1} parent=1 // loop_body
      %s18 = ssub.s32 %s13, 1
      %s19 = ssub.s32 %s13, 2
      %s26 = sadd.s32 1, %s21
      %p27 = scmp.ge.s32.totalorder %s26, 2
      %s28 = scalar_select %p27, 0, %s26
      %s29 = sadd.s32 1, %s20
      %s30 = scalar_select %p27, %s29, %s20
      %p31 = scmp.ge.s32.totalorder %s30, 1
      %s32 = scalar_select %p31, 0, %s30
      %s33 = ssub.s32 %s20, %s32
      %s34 = ssub.s32 %s21, %s28
      %s35 = sor.u32 %s33, %s34
      %p36 = scmp.eq.s32.totalorder %s35, 0
      %s38 = sadd.s32 %s37, 1
      %s39 = scalar_select %p36, %s37, %s38
      %p42 = pneg %p36
      %p43 = scmp.eq.s32.totalorder %s13, 1
      %p44 = por %p42, %p43
      %p45 = scmp.ne.s32.totalorder %s37, %s40
      %p46 = scmp.eq.s32.totalorder %s13, 0
      %p47 = por %p45, %p46
      %p48 = scmp.ne.s32.totalorder %s37, %s40
      %p49 = scmp.eq.s32.totalorder %s18, 1
      %p50 = por %p48, %p49
      %p51 = scmp.ne.s32.totalorder %s40, %s41
      %p52 = scmp.eq.s32.totalorder %s18, 0
      %p53 = por %p51, %p52
      %p54 = scmp.ne.s32.totalorder %s40, %s41
      %p55 = scmp.eq.s32.totalorder %s19, 1
      %p56 = por %p54, %p55
      %p58 = scmp.ne.s32.totalorder %s41, %s57
      %p59 = scmp.eq.s32.totalorder %s19, 0
      %p60 = por %p58, %p59
      %s62 = sadd.s32 %s61, 1
      %p65 = scmp.eq.s32.totalorder %s13, 1
      %p66 = scmp.ne.s32.totalorder %s61, %s63
      %p67 = scmp.eq.s32.totalorder %s13, 0
      %p68 = por %p66, %p67
      %p69 = scmp.ne.s32.totalorder %s61, %s63
      %p70 = scmp.eq.s32.totalorder %s18, 1
      %p71 = por %p69, %p70
      %p72 = scmp.ne.s32.totalorder %s63, %s64
      %p73 = scmp.eq.s32.totalorder %s18, 0
      %p74 = por %p72, %p73
      %p75 = scmp.ne.s32.totalorder %s63, %s64
      %p76 = scmp.eq.s32.totalorder %s19, 1
      %p77 = por %p75, %p76
      %p79 = scmp.ne.s32.totalorder %s64, %s78
      %p80 = scmp.eq.s32.totalorder %s19, 0
      %p81 = por %p79, %p80
      %s83 = sadd.s32 %s82, 1
      %p86 = scmp.eq.s32.totalorder %s13, 1
      %p87 = scmp.ne.s32.totalorder %s82, %s84
      %p88 = scmp.eq.s32.totalorder %s13, 0
      %p89 = por %p87, %p88
      %p90 = scmp.ne.s32.totalorder %s82, %s84
      %p91 = scmp.eq.s32.totalorder %s18, 1
      %p92 = por %p90, %p91
      %p93 = scmp.ne.s32.totalorder %s84, %s85
      %p94 = scmp.eq.s32.totalorder %s18, 0
      %p95 = por %p93, %p94
      %p96 = scmp.ne.s32.totalorder %s84, %s85
      %p97 = scmp.eq.s32.totalorder %s19, 1
      %p98 = por %p96, %p97
      %p100 = scmp.ne.s32.totalorder %s85, %s99
      %p101 = scmp.eq.s32.totalorder %s19, 0
      %p102 = por %p100, %p101
      %s104 = sadd.s32 %s103, 1
      %p107 = scmp.eq.s32.totalorder %s13, 1
      %p108 = scmp.ne.s32.totalorder %s103, %s105
      %p109 = scmp.eq.s32.totalorder %s13, 0
      %p110 = por %p108, %p109
      %p111 = scmp.ne.s32.totalorder %s103, %s105
      %p112 = scmp.eq.s32.totalorder %s18, 1
      %p113 = por %p111, %p112
      %p114 = scmp.ne.s32.totalorder %s105, %s106
      %p115 = scmp.eq.s32.totalorder %s18, 0
      %p116 = por %p114, %p115
      %p117 = scmp.ne.s32.totalorder %s105, %s106
      %p118 = scmp.eq.s32.totalorder %s19, 1
      %p119 = por %p117, %p118
      %p121 = scmp.ne.s32.totalorder %s106, %s120
      %p122 = scmp.eq.s32.totalorder %s19, 0
      %p123 = por %p121, %p122
      %s125 = sadd.s32 %s124, 1
      %p128 = scmp.eq.s32.totalorder %s13, 1
      %p129 = scmp.ne.s32.totalorder %s124, %s126
      %p130 = scmp.eq.s32.totalorder %s13, 0
      %p131 = por %p129, %p130
      %p132 = scmp.ne.s32.totalorder %s124, %s126
      %p133 = scmp.eq.s32.totalorder %s18, 1
      %p134 = por %p132, %p133
      %p135 = scmp.ne.s32.totalorder %s126, %s127
      %p136 = scmp.eq.s32.totalorder %s18, 0
      %p137 = por %p135, %p136
      %p138 = scmp.ne.s32.totalorder %s126, %s127
      %p139 = scmp.eq.s32.totalorder %s19, 1
      %p140 = por %p138, %p139
      %p142 = scmp.ne.s32.totalorder %s127, %s141
      %p143 = scmp.eq.s32.totalorder %s19, 0
      %p144 = por %p142, %p143
      %s146 = sadd.s32 %s145, 1
      %p149 = scmp.eq.s32.totalorder %s13, 1
      %p150 = scmp.ne.s32.totalorder %s145, %s147
      %p151 = scmp.eq.s32.totalorder %s13, 0
      %p152 = por %p150, %p151
      %p153 = scmp.ne.s32.totalorder %s145, %s147
      %p154 = scmp.eq.s32.totalorder %s18, 1
      %p155 = por %p153, %p154
      %p156 = scmp.ne.s32.totalorder %s147, %s148
      %p157 = scmp.eq.s32.totalorder %s18, 0
      %p158 = por %p156, %p157
      %p159 = scmp.ne.s32.totalorder %s147, %s148
      %p160 = scmp.eq.s32.totalorder %s19, 1
      %p161 = por %p159, %p160
      %p163 = scmp.ne.s32.totalorder %s148, %s162
      %p164 = scmp.eq.s32.totalorder %s19, 0
      %p165 = por %p163, %p164
      %s167 = sadd.s32 %s166, 1
      %p170 = scmp.eq.s32.totalorder %s13, 1
      %p171 = scmp.ne.s32.totalorder %s166, %s168
      %p172 = scmp.eq.s32.totalorder %s13, 0
      %p173 = por %p171, %p172
      %p174 = scmp.ne.s32.totalorder %s166, %s168
      %p175 = scmp.eq.s32.totalorder %s18, 1
      %p176 = por %p174, %p175
      %p177 = scmp.ne.s32.totalorder %s168, %s169
      %p178 = scmp.eq.s32.totalorder %s18, 0
      %p179 = por %p177, %p178
      %p180 = scmp.ne.s32.totalorder %s168, %s169
      %p181 = scmp.eq.s32.totalorder %s19, 1
      %p182 = por %p180, %p181
      %p184 = scmp.ne.s32.totalorder %s169, %s183
      %p185 = scmp.eq.s32.totalorder %s19, 0
      %p186 = por %p184, %p185
      %s187 = ssub.s32 %s21, %s28
      %s188 = ssub.s32 %s20, %s32
      %s189 = sor.u32 %s187, %s188
      %p190 = scmp.eq.s32.totalorder %s189, 0
      %s192 = sadd.s32 %s191, 1
      %s193 = scalar_select %p190, %s191, %s192
      %p196 = pneg %p190
      %p197 = scmp.eq.s32.totalorder %s13, 1
      %p198 = por %p196, %p197
      %p199 = scmp.ne.s32.totalorder %s191, %s194
      %p200 = scmp.eq.s32.totalorder %s13, 0
      %p201 = por %p199, %p200
      %p202 = scmp.ne.s32.totalorder %s191, %s194
      %p203 = scmp.eq.s32.totalorder %s18, 1
      %p204 = por %p202, %p203
      %p205 = scmp.ne.s32.totalorder %s194, %s195
      %p206 = scmp.eq.s32.totalorder %s18, 0
      %p207 = por %p205, %p206
      %p208 = scmp.ne.s32.totalorder %s194, %s195
      %p209 = scmp.eq.s32.totalorder %s19, 1
      %p210 = por %p208, %p209
      %p212 = scmp.ne.s32.totalorder %s195, %s211
      %p213 = scmp.eq.s32.totalorder %s19, 0
      %p214 = por %p212, %p213
      %p215 = scmp.le.s32.totalorder 1, %s13
      %p216 = scmp.lt.s32.totalorder %s13, 3
      %p217 = pnand %p215, %p216
      %p218 = pneg %p217
      // Predicated region
      $region9: #{pointcloud_encoder_forward.1} parent=5 // pred_check
        _
      $region10: #{pointcloud_encoder_forward.1} parent=5 // pred_check_branch
        %220 = sbr.rel (%p217) target = $region12
      $region11: #{pointcloud_encoder_forward.1} parent=5 // pred_region
        %s221 = ssub.s32 %s13, 1
        // Predicated region
        $region13: #{pointcloud_encoder_forward.1} parent=11 // pred_check
          %p222 = pneg %p74
        $region14: #{pointcloud_encoder_forward.1} parent=11 // pred_check_branch
          %224 = sbr.rel (%p222) target = $region16
        $region15: #{pointcloud_encoder_forward.1} parent=11 // pred_region
          _
        $region16: #{pointcloud_encoder_forward.1} parent=11 // pred_fallthru
          _
        // Predicated region
        $region17: #{pointcloud_encoder_forward.1} parent=11 // pred_check
          %p225 = pneg %p95
        $region18: #{pointcloud_encoder_forward.1} parent=11 // pred_check_branch
          %227 = sbr.rel (%p225) target = $region20
        $region19: #{pointcloud_encoder_forward.1} parent=11 // pred_region
          _
        $region20: #{pointcloud_encoder_forward.1} parent=11 // pred_fallthru
          _
        // Predicated region
        $region21: #{pointcloud_encoder_forward.1} parent=11 // pred_check
          %p228 = pneg %p116
        $region22: #{pointcloud_encoder_forward.1} parent=11 // pred_check_branch
          %230 = sbr.rel (%p228) target = $region24
        $region23: #{pointcloud_encoder_forward.1} parent=11 // pred_region
          _
        $region24: #{pointcloud_encoder_forward.1} parent=11 // pred_fallthru
          _
        // Predicated region
        $region25: #{pointcloud_encoder_forward.1} parent=11 // pred_check
          %p231 = pneg %p137
        $region26: #{pointcloud_encoder_forward.1} parent=11 // pred_check_branch
          %233 = sbr.rel (%p231) target = $region28
        $region27: #{pointcloud_encoder_forward.1} parent=11 // pred_region
          _
        $region28: #{pointcloud_encoder_forward.1} parent=11 // pred_fallthru
          _
        // Predicated region
        $region29: #{pointcloud_encoder_forward.1} parent=11 // pred_check
          %p234 = pneg %p158
        $region30: #{pointcloud_encoder_forward.1} parent=11 // pred_check_branch
          %236 = sbr.rel (%p234) target = $region32
        $region31: #{pointcloud_encoder_forward.1} parent=11 // pred_region
          _
        $region32: #{pointcloud_encoder_forward.1} parent=11 // pred_fallthru
          _
        // Predicated region
        $region33: #{pointcloud_encoder_forward.1} parent=11 // pred_check
          %p237 = pneg %p179
        $region34: #{pointcloud_encoder_forward.1} parent=11 // pred_check_branch
          %239 = sbr.rel (%p237) target = $region36
        $region35: #{pointcloud_encoder_forward.1} parent=11 // pred_region
          _
        $region36: #{pointcloud_encoder_forward.1} parent=11 // pred_fallthru
          _
      $region12: #{pointcloud_encoder_forward.1} parent=5 // pred_fallthru
        _
      %p240 = scmp.lt.s32.totalorder %s13, 2
      // Predicated region
      $region37: #{pointcloud_encoder_forward.1} parent=5 // pred_check
        %p241 = pneg %p240
      $region38: #{pointcloud_encoder_forward.1} parent=5 // pred_check_branch
        %243 = sbr.rel (%p241) target = $region40
      $region39: #{pointcloud_encoder_forward.1} parent=5 // pred_region
        // Predicated region
        $region41: #{pointcloud_encoder_forward.1} parent=39 // pred_check
          %p244 = pneg %p47
        $region42: #{pointcloud_encoder_forward.1} parent=39 // pred_check_branch
          %246 = sbr.rel (%p244) target = $region44
        $region43: #{pointcloud_encoder_forward.1} parent=39 // pred_region
          %s247 = sand.u32 %s37, 1
          %s248 = sand.u32 %s37, 1
          %s249 = smul.addr %s248, 32
          %s250 = scalar_lea.vmem [#allocation3], %s249
          %s251 = smul.u32 2, %s20
          %s252 = smul.u32 4, %s21
          %s253 = smul.addr %s251, 8
          %s254 = sadd.s32 %s252, %s253
          %s255 = smul.addr %s254, 4
          %s256 = scalar_lea.vmem %s0, %s255
          // Predicated region
          $region45: #{pointcloud_encoder_forward.1} parent=43 // pred_check
            _
          $region46: #{pointcloud_encoder_forward.1} parent=43 // pred_check_branch
            %258 = sbr.rel (0) target = $region48
          $region47: #{pointcloud_encoder_forward.1} parent=43 // pred_region
            // Predicated region
            $region49: #{pointcloud_encoder_forward.1} parent=47 // pred_check
              _
            $region50: #{pointcloud_encoder_forward.1} parent=47 // pred_check_branch
              %260 = sbr.rel (0) target = $region52
            $region51: #{pointcloud_encoder_forward.1} parent=47 // pred_region
              loop: start=0, step=1, limit=1
              $region53: #{pointcloud_encoder_forward.1} parent=51 // loop_pre_header
                _
              $region54: #{pointcloud_encoder_forward.1} parent=51 // loop_header
                %s262 = sphi 0, %s266
                %p263 = scmp.ge.s32.totalorder %s262, 1
                %s267 = sphi %s256, %s256
                %s268 = sphi %s250, %s250
              $region55: #{pointcloud_encoder_forward.1} parent=51 // loop_header_branch
                %265 = sbr.rel (%p263) target = $region59
              $region56: #{pointcloud_encoder_forward.1} parent=51 // loop_body
                %v269 = vld [vmem:[%s267] sm:$0xff]
                %270 = vst [vmem:[%s268] sm:$0xff] %v269
                %v271 = vld [vmem:[%s267 + $0x8] sm:$0xff]
                %272 = vst [vmem:[%s268 + $0x8] sm:$0xff] %v271
                %v273 = vld [vmem:[%s267 + $0x20] sm:$0xff]
                %274 = vst [vmem:[%s268 + $0x10] sm:$0xff] %v273
                %v275 = vld [vmem:[%s267 + $0x28] sm:$0xff]
                %276 = vst [vmem:[%s268 + $0x18] sm:$0xff] %v275
              $region57: #{pointcloud_encoder_forward.1} parent=51 // loop_footer
                %s266 = sadd.s32 1, %s262
              $region58: #{pointcloud_encoder_forward.1} parent=51 // loop_footer_branch
                %261 = sbr.rel target = $region54
              $region59: #{pointcloud_encoder_forward.1} parent=51 // loop_exit
                _
            $region52: #{pointcloud_encoder_forward.1} parent=47 // pred_fallthru
              _
            // Predicated region
            $region60: #{pointcloud_encoder_forward.1} parent=47 // pred_check
              _
            $region61: #{pointcloud_encoder_forward.1} parent=47 // pred_check_branch
              %278 = sbr.rel target = $region63
            $region62: #{pointcloud_encoder_forward.1} parent=47 // pred_region
              _
            $region63: #{pointcloud_encoder_forward.1} parent=47 // pred_fallthru
              _
          $region48: #{pointcloud_encoder_forward.1} parent=43 // pred_fallthru
            _
          %279 = vnop
        $region44: #{pointcloud_encoder_forward.1} parent=39 // pred_fallthru
          _
      $region40: #{pointcloud_encoder_forward.1} parent=5 // pred_fallthru
        _
      %p280 = scmp.le.s32.totalorder 1, %s13
      %p281 = scmp.lt.s32.totalorder %s13, 3
      %p282 = pnand %p280, %p281
      %p283 = pneg %p282
      // Predicated region
      $region64: #{pointcloud_encoder_forward.1} parent=5 // pred_check
        _
      $region65: #{pointcloud_encoder_forward.1} parent=5 // pred_check_branch
        %285 = sbr.rel (%p282) target = $region67
      $region66: #{pointcloud_encoder_forward.1} parent=5 // pred_region
        %s286 = ssub.s32 %s13, 1
        %s287 = sand.u32 %s40, 1
        %s288 = sand.u32 %s40, 1
        %s289 = smul.addr %s288, 32
        %s290 = scalar_lea.vmem [#allocation3], %s289
        // Predicated region
        $region68: #{pointcloud_encoder_forward.1} parent=66 // pred_check
          %p291 = pneg %p53
        $region69: #{pointcloud_encoder_forward.1} parent=66 // pred_check_branch
          %293 = sbr.rel (%p291) target = $region71
        $region70: #{pointcloud_encoder_forward.1} parent=66 // pred_region
          _
        $region71: #{pointcloud_encoder_forward.1} parent=66 // pred_fallthru
          _
        %s294 = sand.u32 %s40, 1
        %s295 = sand.u32 %s40, 1
        %s296 = smul.addr %s295, 32
        %s297 = scalar_lea.vmem [#allocation3], %s296
        %p298 = pneg %p53
        %p299 = pneg %p50
        %p300 = pneg %p74
        %p301 = pneg %p71
        %p302 = pneg %p95
        %p303 = pneg %p92
        %p304 = pneg %p116
        %p305 = pneg %p113
        %p306 = pneg %p137
        %p307 = pneg %p134
        %p308 = pneg %p158
        %p309 = pneg %p155
        %p310 = pneg %p179
        %p311 = pneg %p176
        %p312 = pneg %p207
        %p313 = pneg %p204
        %p314 = scmp.lt.s32.totalorder %s23, 1
        %s315 = scalar_select %p314, %s23, 1
        %p316 = scmp.lt.s32.totalorder %s22, 0
        %s317 = scalar_select %p316, %s22, 0
        %s318 = smul.addr %s317, 2
        %s319 = smul.addr %s315, 2
        %s320 = sadd.s32 %s318, %s319
        %s321 = smul.addr %s320, 2
        %s322 = scalar_lea.vmem %s7, %s321
        %s323 = smul.u32 2, %s22
        %s324 = smul.u32 4, %s23
        %p325 = scmp.lt.s32.totalorder %s23, 1
        %s326 = scalar_select %p325, %s23, 1
        %p327 = scmp.lt.s32.totalorder %s22, 0
        %s328 = scalar_select %p327, %s22, 0
        %s329 = smul.addr %s328, 2
        %s330 = smul.addr %s326, 2
        %s331 = sadd.s32 %s329, %s330
        %s332 = smul.addr %s331, 2
        %s333 = scalar_lea.vmem %s7, %s332
        %335 = vst [vmem:[#allocation2] sm:$0xf8] 0.0
        %336 = vst [vmem:[#allocation2 + $0x8] sm:$0xf8] 0.0
        %337 = vst [vmem:[#allocation2 + $0x10] sm:$0xf8] 0.0
        %338 = vst [vmem:[#allocation2 + $0x18] sm:$0xf8] 0.0
        %v339 = vld [vmem:[%s290] sm:$0x77]
        %v340 = vld [vmem:[%s290 + $0x8] sm:$0x77]
        %v343 = vcombine.high %v339, %v339
        %v344 = vcombine.high %v340, %v340
        %347 = vst [vmem:[#allocation2] sm:$0x7] %v339
        %348 = vst [vmem:[#allocation2 + $0x8] sm:$0x7] %v343
        %349 = vst [vmem:[#allocation2 + $0x10] sm:$0x7] %v340
        %350 = vst [vmem:[#allocation2 + $0x18] sm:$0x7] %v344
        %v351 = vld [vmem:[#allocation2] sm:$0xff]
        %v352 = vld [vmem:[#allocation2 + $0x8] sm:$0xff]
        %v353 = vpack.c.bf16 %v351, %v351
        %v354 = vpack.c.bf16 %v352, %v352
        %v355 = vld [vmem:[%s1] sm:$0xf]
        %v356 = vld [vmem:[%s1 + $0x4] sm:$0xf]
        %v357 = vld [vmem:[%s1 + $0x8] sm:$0xf]
        %v358 = vld [vmem:[%s1 + $0xc] sm:$0xf]
        %v359 = vld [vmem:[%s1 + $0x10] sm:$0xf]
        %v360 = vld [vmem:[%s1 + $0x14] sm:$0xf]
        %v361 = vld [vmem:[%s1 + $0x18] sm:$0xf]
        %v362 = vld [vmem:[%s1 + $0x1c] sm:$0xf]
        %v363 = vld [vmem:[%s2] sm:$0xff]
        %v364 = vld [vmem:[%s2 + $0x8] sm:$0xff]
        %v365 = vld [vmem:[%s2 + $0x10] sm:$0xff]
        %v366 = vld [vmem:[%s2 + $0x18] sm:$0xff]
        %v367 = vld [vmem:[%s2 + $0x20] sm:$0xff]
        %v368 = vld [vmem:[%s2 + $0x28] sm:$0xff]
        %v369 = vld [vmem:[%s2 + $0x30] sm:$0xff]
        %v370 = vld [vmem:[%s2 + $0x38] sm:$0xff]
        %372 = vset.pattern.permute.xlu0 0
        %373 = vperm.xlu0 %372, %v363
        %v374 = vpop.permute.xlu0 %373
        %377 = vset.pattern.permute.xlu0 0
        %378 = vperm.xlu0 %377, %v364
        %v379 = vpop.permute.xlu0 %378
        %382 = vset.pattern.permute.xlu0 0
        %383 = vperm.xlu0 %382, %v365
        %v384 = vpop.permute.xlu0 %383
        %387 = vset.pattern.permute.xlu0 0
        %388 = vperm.xlu0 %387, %v366
        %v389 = vpop.permute.xlu0 %388
        %392 = vset.pattern.permute.xlu0 0
        %393 = vperm.xlu0 %392, %v367
        %v394 = vpop.permute.xlu0 %393
        %397 = vset.pattern.permute.xlu0 0
        %398 = vperm.xlu0 %397, %v368
        %v399 = vpop.permute.xlu0 %398
        %402 = vset.pattern.permute.xlu0 0
        %403 = vperm.xlu0 %402, %v369
        %v404 = vpop.permute.xlu0 %403
        %407 = vset.pattern.permute.xlu0 0
        %408 = vperm.xlu0 %407, %v370
        %v409 = vpop.permute.xlu0 %408
        %v419 = vunpack.c.l.b16 %v355
        %v420 = vunpack.c.l.b16 %v356
        %v421 = vunpack.c.l.b16 %v357
        %v422 = vunpack.c.l.b16 %v358
        %v423 = vunpack.c.l.b16 %v359
        %v424 = vunpack.c.l.b16 %v360
        %v425 = vunpack.c.l.b16 %v361
        %v426 = vunpack.c.l.b16 %v362
        %v427 = vpack.c.b16 %v420, %v419
        %v428 = vpack.c.b16 %v422, %v421
        %v429 = vpack.c.b16 %v424, %v423
        %v430 = vpack.c.b16 %v426, %v425
        %vm431 = vcmask 64512
        %v433 = vsel %vm431, %v427, 0
        %v436 = vsel %vm431, %v428, 0
        %v439 = vsel %vm431, %v429, 0
        %v442 = vsel %vm431, %v430, 0
        %vm444 = vcmask 1043456
        %v446 = vsel %vm444, %v353, 0
        %v449 = vsel %vm444, %v354, 0
        %451 = vmatprep.subr.bf16.mxu0 0
        %452 = vmatpush1.bf16.msra.mxu0 0
        %453 = vmatprep.subr.bf16.mxu0 0
        %454 = vmatpush1.bf16.msra.mxu0 0
        %455 = vmatprep.subr.bf16.mxu0 0
        %456 = vmatpush1.bf16.msra.mxu0 0
        %457 = vmatprep.subr.bf16.mxu0 0
        %458 = vmatpush1.bf16.msra.mxu0 0
        %459 = vmatprep.subr.bf16.mxu0 0
        %460 = vmatpush1.bf16.msra.mxu0 0
        %461 = vmatprep.subr.bf16.mxu0 0
        %462 = vmatpush1.bf16.msra.mxu0 0
        %463 = vmatprep.subr.bf16.mxu0 0
        %464 = vmatpush1.bf16.msra.mxu0 0
        %465 = vmatprep.subr.bf16.mxu0 %v449
        %466 = vmatpush1.bf16.msra.mxu0 %v446
        %467 = vmatprep.subr.bf16.mxu0 0
        %468 = vmatpush2.bf16.msra.mxu0 0
        %469 = vmatprep.subr.bf16.mxu0 0
        %470 = vmatpush2.bf16.msra.mxu0 0
        %471 = vmatprep.subr.bf16.mxu0 0
        %472 = vmatpush2.bf16.msra.mxu0 0
        %473 = vmatprep.subr.bf16.mxu0 0
        %474 = vmatpush2.bf16.msra.mxu0 0
        %475 = vmatprep.subr.bf16.mxu0 0
        %476 = vmatpush2.bf16.msra.mxu0 0
        %477 = vmatprep.subr.bf16.mxu0 0
        %478 = vmatpush2.bf16.msra.mxu0 0
        %479 = vmatprep.subr.bf16.mxu0 0
        %480 = vmatpush2.bf16.msra.mxu0 0
        %481 = vmatprep.subr.bf16.mxu0 0
        %482 = vmatpush2.bf16.msra.mxu0 0
        %483 = vmatprep.mubr.bf16.mxu0 0
        %484 = vmatmul.mubr.bf16.gmra.mxu0 %v433
        %v485 = vpop.f32.mrf.mxu0
        %v486 = vadd.f32 %v374, %v485
        %v487 = vpop.f32.mrf.mxu0
        %v488 = vadd.f32 %v374, %v487
        %v489 = vpop.f32.mrf.mxu0
        %v490 = vadd.f32 %v379, %v489
        %v491 = vpop.f32.mrf.mxu0
        %v492 = vadd.f32 %v379, %v491
        %493 = vmatprep.mubr.bf16.mxu0 0
        %494 = vmatmul.mubr.bf16.gmra.mxu0 %v436
        %v495 = vpop.f32.mrf.mxu0
        %v496 = vadd.f32 %v384, %v495
        %v497 = vpop.f32.mrf.mxu0
        %v498 = vadd.f32 %v384, %v497
        %v499 = vpop.f32.mrf.mxu0
        %v500 = vadd.f32 %v389, %v499
        %v501 = vpop.f32.mrf.mxu0
        %v502 = vadd.f32 %v389, %v501
        %503 = vmatprep.mubr.bf16.mxu0 0
        %504 = vmatmul.mubr.bf16.gmra.mxu0 %v439
        %v505 = vpop.f32.mrf.mxu0
        %v506 = vadd.f32 %v394, %v505
        %v507 = vpop.f32.mrf.mxu0
        %v508 = vadd.f32 %v394, %v507
        %v509 = vpop.f32.mrf.mxu0
        %v510 = vadd.f32 %v399, %v509
        %v511 = vpop.f32.mrf.mxu0
        %v512 = vadd.f32 %v399, %v511
        %513 = vmatprep.mubr.bf16.mxu0 0
        %514 = vmatmul.mubr.bf16.gmra.mxu0 %v442
        %v515 = vpop.f32.mrf.mxu0
        %v516 = vadd.f32 %v404, %v515
        %v517 = vpop.f32.mrf.mxu0
        %v518 = vadd.f32 %v404, %v517
        %v519 = vpop.f32.mrf.mxu0
        %v520 = vadd.f32 %v409, %v519
        %v521 = vpop.f32.mrf.mxu0
        %v522 = vadd.f32 %v409, %v521
        %523 = vdwg.mxu0
        %v524 = vmax.f32 %v486, 0.0
        %v525 = vmax.f32 %v488, 0.0
        %v526 = vmax.f32 %v490, 0.0
        %v527 = vmax.f32 %v492, 0.0
        %v528 = vmax.f32 %v496, 0.0
        %v529 = vmax.f32 %v498, 0.0
        %v530 = vmax.f32 %v500, 0.0
        %v531 = vmax.f32 %v502, 0.0
        %v532 = vmax.f32 %v506, 0.0
        %v533 = vmax.f32 %v508, 0.0
        %v534 = vmax.f32 %v510, 0.0
        %v535 = vmax.f32 %v512, 0.0
        %v536 = vmax.f32 %v516, 0.0
        %v537 = vmax.f32 %v518, 0.0
        %v538 = vmax.f32 %v520, 0.0
        %v539 = vmax.f32 %v522, 0.0
        %540 = vxpose.xlu0.b32.start [1/16] %v524, 128
        %541 = vxpose.xlu0.b32.cont [2/16] %v526, 128
        %542 = vxpose.xlu0.b32.cont [3/16] %v528, 128
        %543 = vxpose.xlu0.b32.cont [4/16] %v530, 128
        %544 = vxpose.xlu0.b32.cont [5/16] %v532, 128
        %545 = vxpose.xlu0.b32.cont [6/16] %v534, 128
        %546 = vxpose.xlu0.b32.cont [7/16] %v536, 128
        %547 = vxpose.xlu0.b32.cont [8/16] %v538, 128
        %548 = vxpose.xlu0.b32.cont [9/16] 0.0, 128
        %549 = vxpose.xlu0.b32.cont [10/16] 0.0, 128
        %550 = vxpose.xlu0.b32.cont [11/16] 0.0, 128
        %551 = vxpose.xlu0.b32.cont [12/16] 0.0, 128
        %552 = vxpose.xlu0.b32.cont [13/16] 0.0, 128
        %553 = vxpose.xlu0.b32.cont [14/16] 0.0, 128
        %554 = vxpose.xlu0.b32.cont [15/16] 0.0, 128
        %555 = vxpose.xlu0.b32.end [16/16] 0.0, 128
        %v556 = vpop.trf.xlu0
        %v557 = vpop.trf.xlu0
        %v558 = vpop.trf.xlu0
        %v559 = vpop.trf.xlu0
        %v560 = vpop.trf.xlu0
        %v561 = vpop.trf.xlu0
        %v562 = vpop.trf.xlu0
        %v563 = vpop.trf.xlu0
        %v564 = vpop.trf.xlu0
        %v565 = vpop.trf.xlu0
        %v566 = vpop.trf.xlu0
        %v567 = vpop.trf.xlu0
        %v568 = vpop.trf.xlu0
        %v569 = vpop.trf.xlu0
        %v570 = vpop.trf.xlu0
        %v571 = vpop.trf.xlu0
        %572 = vxpose.xlu0.b32.start [1/16] %v525, 128
        %573 = vxpose.xlu0.b32.cont [2/16] %v527, 128
        %574 = vxpose.xlu0.b32.cont [3/16] %v529, 128
        %575 = vxpose.xlu0.b32.cont [4/16] %v531, 128
        %576 = vxpose.xlu0.b32.cont [5/16] %v533, 128
        %577 = vxpose.xlu0.b32.cont [6/16] %v535, 128
        %578 = vxpose.xlu0.b32.cont [7/16] %v537, 128
        %579 = vxpose.xlu0.b32.cont [8/16] %v539, 128
        %580 = vxpose.xlu0.b32.cont [9/16] 0.0, 128
        %581 = vxpose.xlu0.b32.cont [10/16] 0.0, 128
        %582 = vxpose.xlu0.b32.cont [11/16] 0.0, 128
        %583 = vxpose.xlu0.b32.cont [12/16] 0.0, 128
        %584 = vxpose.xlu0.b32.cont [13/16] 0.0, 128
        %585 = vxpose.xlu0.b32.cont [14/16] 0.0, 128
        %586 = vxpose.xlu0.b32.cont [15/16] 0.0, 128
        %587 = vxpose.xlu0.b32.end [16/16] 0.0, 128
        %v588 = vpop.trf.xlu0
        %v589 = vpop.trf.xlu0
        %v590 = vpop.trf.xlu0
        %v591 = vpop.trf.xlu0
        %v592 = vpop.trf.xlu0
        %v593 = vpop.trf.xlu0
        %v594 = vpop.trf.xlu0
        %v595 = vpop.trf.xlu0
        %v596 = vpop.trf.xlu0
        %v597 = vpop.trf.xlu0
        %v598 = vpop.trf.xlu0
        %v599 = vpop.trf.xlu0
        %v600 = vpop.trf.xlu0
        %v601 = vpop.trf.xlu0
        %v602 = vpop.trf.xlu0
        %v603 = vpop.trf.xlu0
        %v604 = vpack.c.bf16 %v557, %v556
        %v605 = vpack.c.bf16 %v559, %v558
        %v606 = vpack.c.bf16 %v561, %v560
        %v607 = vpack.c.bf16 %v563, %v562
        %v608 = vpack.c.bf16 %v565, %v564
        %v609 = vpack.c.bf16 %v567, %v566
        %v610 = vpack.c.bf16 %v569, %v568
        %v611 = vpack.c.bf16 %v571, %v570
        %v612 = vpack.c.bf16 %v589, %v588
        %v613 = vpack.c.bf16 %v591, %v590
        %v614 = vpack.c.bf16 %v593, %v592
        %v615 = vpack.c.bf16 %v595, %v594
        %v616 = vpack.c.bf16 %v597, %v596
        %v617 = vpack.c.bf16 %v599, %v598
        %v618 = vpack.c.bf16 %v601, %v600
        %v619 = vpack.c.bf16 %v603, %v602
        %v620 = vld [vmem:[%s3] sm:$0xf]
        %v621 = vld [vmem:[%s3 + $0x4] sm:$0xf]
        %v622 = vld [vmem:[%s3 + $0x8] sm:$0xf]
        %v623 = vld [vmem:[%s3 + $0xc] sm:$0xf]
        %v624 = vld [vmem:[%s3 + $0x10] sm:$0xf]
        %v625 = vld [vmem:[%s3 + $0x14] sm:$0xf]
        %v626 = vld [vmem:[%s3 + $0x18] sm:$0xf]
        %v627 = vld [vmem:[%s3 + $0x1c] sm:$0xf]
        %v628 = vld [vmem:[%s4] sm:$0x1]
        %v630 = vlaneseq
        %v631 = vshrl.u32 %v630, 7
        %v632 = vsub.s32 0, %v631
        %v633 = vrot.slane %v628, %v632
        %v643 = vunpack.c.l.b16 %v620
        %v644 = vunpack.c.l.b16 %v621
        %v645 = vunpack.c.l.b16 %v622
        %v646 = vunpack.c.l.b16 %v623
        %v647 = vunpack.c.l.b16 %v624
        %v648 = vunpack.c.l.b16 %v625
        %v649 = vunpack.c.l.b16 %v626
        %v650 = vunpack.c.l.b16 %v627
        %v651 = vpack.c.b16 %v644, %v643
        %v652 = vpack.c.b16 %v646, %v645
        %v653 = vpack.c.b16 %v648, %v647
        %v654 = vpack.c.b16 %v650, %v649
        %vm659 = vcmask 523264
        %v661 = vsel %vm659, %v604, 0
        %v664 = vsel %vm659, %v605, 0
        %v667 = vsel %vm659, %v606, 0
        %v670 = vsel %vm659, %v607, 0
        %v673 = vsel %vm659, %v608, 0
        %v676 = vsel %vm659, %v609, 0
        %v679 = vsel %vm659, %v610, 0
        %v682 = vsel %vm659, %v611, 0
        %v685 = vsel %vm659, %v612, 0
        %v688 = vsel %vm659, %v613, 0
        %v691 = vsel %vm659, %v614, 0
        %v694 = vsel %vm659, %v615, 0
        %v697 = vsel %vm659, %v616, 0
        %v700 = vsel %vm659, %v617, 0
        %v703 = vsel %vm659, %v618, 0
        %v706 = vsel %vm659, %v619, 0
        %708 = vmatprep.subr.bf16.mxu0 0
        %709 = vmatpush1.bf16.msra.mxu0 0
        %710 = vmatprep.subr.bf16.mxu0 0
        %711 = vmatpush1.bf16.msra.mxu0 0
        %712 = vmatprep.subr.bf16.mxu0 0
        %713 = vmatpush1.bf16.msra.mxu0 0
        %714 = vmatprep.subr.bf16.mxu0 0
        %715 = vmatpush1.bf16.msra.mxu0 0
        %716 = vmatprep.subr.bf16.mxu0 0
        %717 = vmatpush1.bf16.msra.mxu0 %v654
        %718 = vmatprep.subr.bf16.mxu0 0
        %719 = vmatpush1.bf16.msra.mxu0 %v653
        %720 = vmatprep.subr.bf16.mxu0 0
        %721 = vmatpush1.bf16.msra.mxu0 %v652
        %722 = vmatprep.subr.bf16.mxu0 0
        %723 = vmatpush1.bf16.msra.mxu0 %v651
        %724 = vmatprep.subr.bf16.mxu0 0
        %725 = vmatpush2.bf16.msra.mxu0 0
        %726 = vmatprep.subr.bf16.mxu0 0
        %727 = vmatpush2.bf16.msra.mxu0 0
        %728 = vmatprep.subr.bf16.mxu0 0
        %729 = vmatpush2.bf16.msra.mxu0 0
        %730 = vmatprep.subr.bf16.mxu0 0
        %731 = vmatpush2.bf16.msra.mxu0 0
        %732 = vmatprep.subr.bf16.mxu0 0
        %733 = vmatpush2.bf16.msra.mxu0 0
        %734 = vmatprep.subr.bf16.mxu0 0
        %735 = vmatpush2.bf16.msra.mxu0 0
        %736 = vmatprep.subr.bf16.mxu0 0
        %737 = vmatpush2.bf16.msra.mxu0 0
        %738 = vmatprep.subr.bf16.mxu0 0
        %739 = vmatpush2.bf16.msra.mxu0 0
        %740 = vmatprep.mubr.bf16.mxu0 0
        %741 = vmatmul.mubr.bf16.gmra.mxu0 %v661
        %v742 = vpop.f32.mrf.mxu0
        %v743 = vadd.f32 %v633, %v742
        %v744 = vpop.f32.mrf.mxu0
        %v745 = vpop.f32.mrf.mxu0
        %v746 = vadd.f32 %v633, %v745
        %v747 = vpop.f32.mrf.mxu0
        %748 = vmatprep.mubr.bf16.mxu0 0
        %749 = vmatmul.mubr.bf16.gmra.mxu0 %v664
        %v750 = vpop.f32.mrf.mxu0
        %v751 = vadd.f32 %v633, %v750
        %v752 = vpop.f32.mrf.mxu0
        %v753 = vpop.f32.mrf.mxu0
        %v754 = vadd.f32 %v633, %v753
        %v755 = vpop.f32.mrf.mxu0
        %756 = vmatprep.mubr.bf16.mxu0 0
        %757 = vmatmul.mubr.bf16.gmra.mxu0 %v667
        %v758 = vpop.f32.mrf.mxu0
        %v759 = vadd.f32 %v633, %v758
        %v760 = vpop.f32.mrf.mxu0
        %v761 = vpop.f32.mrf.mxu0
        %v762 = vadd.f32 %v633, %v761
        %v763 = vpop.f32.mrf.mxu0
        %764 = vmatprep.mubr.bf16.mxu0 0
        %765 = vmatmul.mubr.bf16.gmra.mxu0 %v670
        %v766 = vpop.f32.mrf.mxu0
        %v767 = vadd.f32 %v633, %v766
        %v768 = vpop.f32.mrf.mxu0
        %v769 = vpop.f32.mrf.mxu0
        %v770 = vadd.f32 %v633, %v769
        %v771 = vpop.f32.mrf.mxu0
        %772 = vmatprep.mubr.bf16.mxu0 0
        %773 = vmatmul.mubr.bf16.gmra.mxu0 %v673
        %v774 = vpop.f32.mrf.mxu0
        %v775 = vadd.f32 %v633, %v774
        %v776 = vpop.f32.mrf.mxu0
        %v777 = vpop.f32.mrf.mxu0
        %v778 = vadd.f32 %v633, %v777
        %v779 = vpop.f32.mrf.mxu0
        %780 = vmatprep.mubr.bf16.mxu0 0
        %781 = vmatmul.mubr.bf16.gmra.mxu0 %v676
        %v782 = vpop.f32.mrf.mxu0
        %v783 = vadd.f32 %v633, %v782
        %v784 = vpop.f32.mrf.mxu0
        %v785 = vpop.f32.mrf.mxu0
        %v786 = vadd.f32 %v633, %v785
        %v787 = vpop.f32.mrf.mxu0
        %788 = vmatprep.mubr.bf16.mxu0 0
        %789 = vmatmul.mubr.bf16.gmra.mxu0 %v679
        %v790 = vpop.f32.mrf.mxu0
        %v791 = vadd.f32 %v633, %v790
        %v792 = vpop.f32.mrf.mxu0
        %v793 = vpop.f32.mrf.mxu0
        %v794 = vadd.f32 %v633, %v793
        %v795 = vpop.f32.mrf.mxu0
        %796 = vmatprep.mubr.bf16.mxu0 0
        %797 = vmatmul.mubr.bf16.gmra.mxu0 %v682
        %v798 = vpop.f32.mrf.mxu0
        %v799 = vadd.f32 %v633, %v798
        %v800 = vpop.f32.mrf.mxu0
        %v801 = vpop.f32.mrf.mxu0
        %v802 = vadd.f32 %v633, %v801
        %v803 = vpop.f32.mrf.mxu0
        %804 = vmatprep.mubr.bf16.mxu0 0
        %805 = vmatmul.mubr.bf16.gmra.mxu0 %v685
        %v806 = vpop.f32.mrf.mxu0
        %v807 = vadd.f32 %v633, %v806
        %v808 = vpop.f32.mrf.mxu0
        %v809 = vpop.f32.mrf.mxu0
        %v810 = vadd.f32 %v633, %v809
        %v811 = vpop.f32.mrf.mxu0
        %812 = vmatprep.mubr.bf16.mxu0 0
        %813 = vmatmul.mubr.bf16.gmra.mxu0 %v688
        %v814 = vpop.f32.mrf.mxu0
        %v815 = vadd.f32 %v633, %v814
        %v816 = vpop.f32.mrf.mxu0
        %v817 = vpop.f32.mrf.mxu0
        %v818 = vadd.f32 %v633, %v817
        %v819 = vpop.f32.mrf.mxu0
        %820 = vmatprep.mubr.bf16.mxu0 0
        %821 = vmatmul.mubr.bf16.gmra.mxu0 %v691
        %v822 = vpop.f32.mrf.mxu0
        %v823 = vadd.f32 %v633, %v822
        %v824 = vpop.f32.mrf.mxu0
        %v825 = vpop.f32.mrf.mxu0
        %v826 = vadd.f32 %v633, %v825
        %v827 = vpop.f32.mrf.mxu0
        %828 = vmatprep.mubr.bf16.mxu0 0
        %829 = vmatmul.mubr.bf16.gmra.mxu0 %v694
        %v830 = vpop.f32.mrf.mxu0
        %v831 = vadd.f32 %v633, %v830
        %v832 = vpop.f32.mrf.mxu0
        %v833 = vpop.f32.mrf.mxu0
        %v834 = vadd.f32 %v633, %v833
        %v835 = vpop.f32.mrf.mxu0
        %836 = vmatprep.mubr.bf16.mxu0 0
        %837 = vmatmul.mubr.bf16.gmra.mxu0 %v697
        %v838 = vpop.f32.mrf.mxu0
        %v839 = vadd.f32 %v633, %v838
        %v840 = vpop.f32.mrf.mxu0
        %v841 = vpop.f32.mrf.mxu0
        %v842 = vadd.f32 %v633, %v841
        %v843 = vpop.f32.mrf.mxu0
        %844 = vmatprep.mubr.bf16.mxu0 0
        %845 = vmatmul.mubr.bf16.gmra.mxu0 %v700
        %v846 = vpop.f32.mrf.mxu0
        %v847 = vadd.f32 %v633, %v846
        %v848 = vpop.f32.mrf.mxu0
        %v849 = vpop.f32.mrf.mxu0
        %v850 = vadd.f32 %v633, %v849
        %v851 = vpop.f32.mrf.mxu0
        %852 = vmatprep.mubr.bf16.mxu0 0
        %853 = vmatmul.mubr.bf16.gmra.mxu0 %v703
        %v854 = vpop.f32.mrf.mxu0
        %v855 = vadd.f32 %v633, %v854
        %v856 = vpop.f32.mrf.mxu0
        %v857 = vpop.f32.mrf.mxu0
        %v858 = vadd.f32 %v633, %v857
        %v859 = vpop.f32.mrf.mxu0
        %860 = vmatprep.mubr.bf16.mxu0 0
        %861 = vmatmul.mubr.bf16.gmra.mxu0 %v706
        %v862 = vpop.f32.mrf.mxu0
        %v863 = vadd.f32 %v633, %v862
        %v864 = vpop.f32.mrf.mxu0
        %v865 = vpop.f32.mrf.mxu0
        %v866 = vadd.f32 %v633, %v865
        %v867 = vpop.f32.mrf.mxu0
        %868 = vdwg.mxu0
        %v869 = vmax.f32 %v743, 0.0
        %v870 = vmax.f32 %v746, 0.0
        %v871 = vmax.f32 %v751, 0.0
        %v872 = vmax.f32 %v754, 0.0
        %v873 = vmax.f32 %v759, 0.0
        %v874 = vmax.f32 %v762, 0.0
        %v875 = vmax.f32 %v767, 0.0
        %v876 = vmax.f32 %v770, 0.0
        %v877 = vmax.f32 %v775, 0.0
        %v878 = vmax.f32 %v778, 0.0
        %v879 = vmax.f32 %v783, 0.0
        %v880 = vmax.f32 %v786, 0.0
        %v881 = vmax.f32 %v791, 0.0
        %v882 = vmax.f32 %v794, 0.0
        %v883 = vmax.f32 %v799, 0.0
        %v884 = vmax.f32 %v802, 0.0
        %v885 = vmax.f32 %v807, 0.0
        %v886 = vmax.f32 %v810, 0.0
        %v887 = vmax.f32 %v815, 0.0
        %v888 = vmax.f32 %v818, 0.0
        %v889 = vmax.f32 %v823, 0.0
        %v890 = vmax.f32 %v826, 0.0
        %v891 = vmax.f32 %v831, 0.0
        %v892 = vmax.f32 %v834, 0.0
        %v893 = vmax.f32 %v839, 0.0
        %v894 = vmax.f32 %v842, 0.0
        %v895 = vmax.f32 %v847, 0.0
        %v896 = vmax.f32 %v850, 0.0
        %v897 = vmax.f32 %v855, 0.0
        %v898 = vmax.f32 %v858, 0.0
        %v899 = vmax.f32 %v863, 0.0
        %v900 = vmax.f32 %v866, 0.0
        %v901 = vpack.c.bf16 %v870, %v869
        %v902 = vpack.c.bf16 %v872, %v871
        %v903 = vpack.c.bf16 %v874, %v873
        %v904 = vpack.c.bf16 %v876, %v875
        %v905 = vpack.c.bf16 %v878, %v877
        %v906 = vpack.c.bf16 %v880, %v879
        %v907 = vpack.c.bf16 %v882, %v881
        %v908 = vpack.c.bf16 %v884, %v883
        %v909 = vpack.c.bf16 %v886, %v885
        %v910 = vpack.c.bf16 %v888, %v887
        %v911 = vpack.c.bf16 %v890, %v889
        %v912 = vpack.c.bf16 %v892, %v891
        %v913 = vpack.c.bf16 %v894, %v893
        %v914 = vpack.c.bf16 %v896, %v895
        %v915 = vpack.c.bf16 %v898, %v897
        %v916 = vpack.c.bf16 %v900, %v899
        %v917 = vld [vmem:[%s5] sm:$0xff]
        %v918 = vld [vmem:[%s5 + $0x8] sm:$0xff]
        %v919 = vld [vmem:[%s5 + $0x10] sm:$0xff]
        %v920 = vld [vmem:[%s5 + $0x18] sm:$0xff]
        %v921 = vld [vmem:[%s5 + $0x20] sm:$0xff]
        %v922 = vld [vmem:[%s5 + $0x28] sm:$0xff]
        %v923 = vld [vmem:[%s5 + $0x30] sm:$0xff]
        %v924 = vld [vmem:[%s5 + $0x38] sm:$0xff]
        %v925 = vld [vmem:[%s5 + $0x40] sm:$0xff]
        %v926 = vld [vmem:[%s5 + $0x48] sm:$0xff]
        %v927 = vld [vmem:[%s5 + $0x50] sm:$0xff]
        %v928 = vld [vmem:[%s5 + $0x58] sm:$0xff]
        %v929 = vld [vmem:[%s5 + $0x60] sm:$0xff]
        %v930 = vld [vmem:[%s5 + $0x68] sm:$0xff]
        %v931 = vld [vmem:[%s5 + $0x70] sm:$0xff]
        %v932 = vld [vmem:[%s5 + $0x78] sm:$0xff]
        %v949 = vunpack.c.l.b16 %v917
        %v950 = vunpack.c.h.b16 %v917
        %v951 = vunpack.c.l.b16 %v918
        %v952 = vunpack.c.h.b16 %v918
        %v953 = vunpack.c.l.b16 %v919
        %v954 = vunpack.c.h.b16 %v919
        %v955 = vunpack.c.l.b16 %v920
        %v956 = vunpack.c.h.b16 %v920
        %v957 = vunpack.c.l.b16 %v921
        %v958 = vunpack.c.h.b16 %v921
        %v959 = vunpack.c.l.b16 %v922
        %v960 = vunpack.c.h.b16 %v922
        %v961 = vunpack.c.l.b16 %v923
        %v962 = vunpack.c.h.b16 %v923
        %v963 = vunpack.c.l.b16 %v924
        %v964 = vunpack.c.h.b16 %v924
        %v965 = vunpack.c.l.b16 %v925
        %v966 = vunpack.c.h.b16 %v925
        %v967 = vunpack.c.l.b16 %v926
        %v968 = vunpack.c.h.b16 %v926
        %v969 = vunpack.c.l.b16 %v927
        %v970 = vunpack.c.h.b16 %v927
        %v971 = vunpack.c.l.b16 %v928
        %v972 = vunpack.c.h.b16 %v928
        %v973 = vunpack.c.l.b16 %v929
        %v974 = vunpack.c.h.b16 %v929
        %v975 = vunpack.c.l.b16 %v930
        %v976 = vunpack.c.h.b16 %v930
        %v977 = vunpack.c.l.b16 %v931
        %v978 = vunpack.c.h.b16 %v931
        %v979 = vunpack.c.l.b16 %v932
        %v980 = vunpack.c.h.b16 %v932
        %v981 = vpack.c.b16 %v951, %v949
        %v982 = vpack.c.b16 %v952, %v950
        %v983 = vpack.c.b16 %v955, %v953
        %v984 = vpack.c.b16 %v956, %v954
        %v985 = vpack.c.b16 %v959, %v957
        %v986 = vpack.c.b16 %v960, %v958
        %v987 = vpack.c.b16 %v963, %v961
        %v988 = vpack.c.b16 %v964, %v962
        %v989 = vpack.c.b16 %v967, %v965
        %v990 = vpack.c.b16 %v968, %v966
        %v991 = vpack.c.b16 %v971, %v969
        %v992 = vpack.c.b16 %v972, %v970
        %v993 = vpack.c.b16 %v975, %v973
        %v994 = vpack.c.b16 %v976, %v974
        %v995 = vpack.c.b16 %v979, %v977
        %v996 = vpack.c.b16 %v980, %v978
        %1013 = vmatprep.subr.bf16.mxu0 %v996
        %1014 = vmatpush1.bf16.msra.mxu0 %v995
        %1015 = vmatprep.subr.bf16.mxu0 %v994
        %1016 = vmatpush1.bf16.msra.mxu0 %v993
        %1017 = vmatprep.subr.bf16.mxu0 %v992
        %1018 = vmatpush1.bf16.msra.mxu0 %v991
        %1019 = vmatprep.subr.bf16.mxu0 %v990
        %1020 = vmatpush1.bf16.msra.mxu0 %v989
        %1021 = vmatprep.subr.bf16.mxu0 %v988
        %1022 = vmatpush1.bf16.msra.mxu0 %v987
        %1023 = vmatprep.subr.bf16.mxu0 %v986
        %1024 = vmatpush1.bf16.msra.mxu0 %v985
        %1025 = vmatprep.subr.bf16.mxu0 %v984
        %1026 = vmatpush1.bf16.msra.mxu0 %v983
        %1027 = vmatprep.subr.bf16.mxu0 %v982
        %1028 = vmatpush1.bf16.msra.mxu0 %v981
        %1029 = vmatprep.subr.bf16.mxu0 0
        %1030 = vmatpush2.bf16.msra.mxu0 0
        %1031 = vmatprep.subr.bf16.mxu0 0
        %1032 = vmatpush2.bf16.msra.mxu0 0
        %1033 = vmatprep.subr.bf16.mxu0 0
        %1034 = vmatpush2.bf16.msra.mxu0 0
        %1035 = vmatprep.subr.bf16.mxu0 0
        %1036 = vmatpush2.bf16.msra.mxu0 0
        %1037 = vmatprep.subr.bf16.mxu0 0
        %1038 = vmatpush2.bf16.msra.mxu0 0
        %1039 = vmatprep.subr.bf16.mxu0 0
        %1040 = vmatpush2.bf16.msra.mxu0 0
        %1041 = vmatprep.subr.bf16.mxu0 0
        %1042 = vmatpush2.bf16.msra.mxu0 0
        %1043 = vmatprep.subr.bf16.mxu0 0
        %1044 = vmatpush2.bf16.msra.mxu0 0
        %1045 = vmatprep.mubr.bf16.mxu0 0
        %1046 = vmatmul.mubr.bf16.gmra.mxu0 %v901
        %v1047 = vpop.f32.mrf.mxu0
        %v1048 = vadd.f32 0.0, %v1047
        %v1049 = vpop.f32.mrf.mxu0
        %v1050 = vadd.f32 0.0, %v1049
        %v1051 = vpop.f32.mrf.mxu0
        %v1052 = vadd.f32 0.0, %v1051
        %v1053 = vpop.f32.mrf.mxu0
        %v1054 = vadd.f32 0.0, %v1053
        %1055 = vmatprep.mubr.bf16.mxu0 0
        %1056 = vmatmul.mubr.bf16.gmra.mxu0 %v902
        %v1057 = vpop.f32.mrf.mxu0
        %v1058 = vadd.f32 0.0, %v1057
        %v1059 = vpop.f32.mrf.mxu0
        %v1060 = vadd.f32 0.0, %v1059
        %v1061 = vpop.f32.mrf.mxu0
        %v1062 = vadd.f32 0.0, %v1061
        %v1063 = vpop.f32.mrf.mxu0
        %v1064 = vadd.f32 0.0, %v1063
        %1065 = vmatprep.mubr.bf16.mxu0 0
        %1066 = vmatmul.mubr.bf16.gmra.mxu0 %v903
        %v1067 = vpop.f32.mrf.mxu0
        %v1068 = vadd.f32 0.0, %v1067
        %v1069 = vpop.f32.mrf.mxu0
        %v1070 = vadd.f32 0.0, %v1069
        %v1071 = vpop.f32.mrf.mxu0
        %v1072 = vadd.f32 0.0, %v1071
        %v1073 = vpop.f32.mrf.mxu0
        %v1074 = vadd.f32 0.0, %v1073
        %1075 = vmatprep.mubr.bf16.mxu0 0
        %1076 = vmatmul.mubr.bf16.gmra.mxu0 %v904
        %v1077 = vpop.f32.mrf.mxu0
        %v1078 = vadd.f32 0.0, %v1077
        %v1079 = vpop.f32.mrf.mxu0
        %v1080 = vadd.f32 0.0, %v1079
        %v1081 = vpop.f32.mrf.mxu0
        %v1082 = vadd.f32 0.0, %v1081
        %v1083 = vpop.f32.mrf.mxu0
        %v1084 = vadd.f32 0.0, %v1083
        %1085 = vmatprep.mubr.bf16.mxu0 0
        %1086 = vmatmul.mubr.bf16.gmra.mxu0 %v905
        %v1087 = vpop.f32.mrf.mxu0
        %v1088 = vadd.f32 0.0, %v1087
        %v1089 = vpop.f32.mrf.mxu0
        %v1090 = vadd.f32 0.0, %v1089
        %v1091 = vpop.f32.mrf.mxu0
        %v1092 = vadd.f32 0.0, %v1091
        %v1093 = vpop.f32.mrf.mxu0
        %v1094 = vadd.f32 0.0, %v1093
        %1095 = vmatprep.mubr.bf16.mxu0 0
        %1096 = vmatmul.mubr.bf16.gmra.mxu0 %v906
        %v1097 = vpop.f32.mrf.mxu0
        %v1098 = vadd.f32 0.0, %v1097
        %v1099 = vpop.f32.mrf.mxu0
        %v1100 = vadd.f32 0.0, %v1099
        %v1101 = vpop.f32.mrf.mxu0
        %v1102 = vadd.f32 0.0, %v1101
        %v1103 = vpop.f32.mrf.mxu0
        %v1104 = vadd.f32 0.0, %v1103
        %1105 = vmatprep.mubr.bf16.mxu0 0
        %1106 = vmatmul.mubr.bf16.gmra.mxu0 %v907
        %v1107 = vpop.f32.mrf.mxu0
        %v1108 = vadd.f32 0.0, %v1107
        %v1109 = vpop.f32.mrf.mxu0
        %v1110 = vadd.f32 0.0, %v1109
        %v1111 = vpop.f32.mrf.mxu0
        %v1112 = vadd.f32 0.0, %v1111
        %v1113 = vpop.f32.mrf.mxu0
        %v1114 = vadd.f32 0.0, %v1113
        %1115 = vmatprep.mubr.bf16.mxu0 0
        %1116 = vmatmul.mubr.bf16.gmra.mxu0 %v908
        %v1117 = vpop.f32.mrf.mxu0
        %v1118 = vadd.f32 0.0, %v1117
        %v1119 = vpop.f32.mrf.mxu0
        %v1120 = vadd.f32 0.0, %v1119
        %v1121 = vpop.f32.mrf.mxu0
        %v1122 = vadd.f32 0.0, %v1121
        %v1123 = vpop.f32.mrf.mxu0
        %v1124 = vadd.f32 0.0, %v1123
        %1125 = vmatprep.mubr.bf16.mxu0 0
        %1126 = vmatmul.mubr.bf16.gmra.mxu0 %v909
        %v1127 = vpop.f32.mrf.mxu0
        %v1128 = vadd.f32 0.0, %v1127
        %v1129 = vpop.f32.mrf.mxu0
        %v1130 = vadd.f32 0.0, %v1129
        %v1131 = vpop.f32.mrf.mxu0
        %v1132 = vadd.f32 0.0, %v1131
        %v1133 = vpop.f32.mrf.mxu0
        %v1134 = vadd.f32 0.0, %v1133
        %1135 = vmatprep.mubr.bf16.mxu0 0
        %1136 = vmatmul.mubr.bf16.gmra.mxu0 %v910
        %v1137 = vpop.f32.mrf.mxu0
        %v1138 = vadd.f32 0.0, %v1137
        %v1139 = vpop.f32.mrf.mxu0
        %v1140 = vadd.f32 0.0, %v1139
        %v1141 = vpop.f32.mrf.mxu0
        %v1142 = vadd.f32 0.0, %v1141
        %v1143 = vpop.f32.mrf.mxu0
        %v1144 = vadd.f32 0.0, %v1143
        %1145 = vmatprep.mubr.bf16.mxu0 0
        %1146 = vmatmul.mubr.bf16.gmra.mxu0 %v911
        %v1147 = vpop.f32.mrf.mxu0
        %v1148 = vadd.f32 0.0, %v1147
        %v1149 = vpop.f32.mrf.mxu0
        %v1150 = vadd.f32 0.0, %v1149
        %v1151 = vpop.f32.mrf.mxu0
        %v1152 = vadd.f32 0.0, %v1151
        %v1153 = vpop.f32.mrf.mxu0
        %v1154 = vadd.f32 0.0, %v1153
        %1155 = vmatprep.mubr.bf16.mxu0 0
        %1156 = vmatmul.mubr.bf16.gmra.mxu0 %v912
        %v1157 = vpop.f32.mrf.mxu0
        %v1158 = vadd.f32 0.0, %v1157
        %v1159 = vpop.f32.mrf.mxu0
        %v1160 = vadd.f32 0.0, %v1159
        %v1161 = vpop.f32.mrf.mxu0
        %v1162 = vadd.f32 0.0, %v1161
        %v1163 = vpop.f32.mrf.mxu0
        %v1164 = vadd.f32 0.0, %v1163
        %1165 = vmatprep.mubr.bf16.mxu0 0
        %1166 = vmatmul.mubr.bf16.gmra.mxu0 %v913
        %v1167 = vpop.f32.mrf.mxu0
        %v1168 = vadd.f32 0.0, %v1167
        %v1169 = vpop.f32.mrf.mxu0
        %v1170 = vadd.f32 0.0, %v1169
        %v1171 = vpop.f32.mrf.mxu0
        %v1172 = vadd.f32 0.0, %v1171
        %v1173 = vpop.f32.mrf.mxu0
        %v1174 = vadd.f32 0.0, %v1173
        %1175 = vmatprep.mubr.bf16.mxu0 0
        %1176 = vmatmul.mubr.bf16.gmra.mxu0 %v914
        %v1177 = vpop.f32.mrf.mxu0
        %v1178 = vadd.f32 0.0, %v1177
        %v1179 = vpop.f32.mrf.mxu0
        %v1180 = vadd.f32 0.0, %v1179
        %v1181 = vpop.f32.mrf.mxu0
        %v1182 = vadd.f32 0.0, %v1181
        %v1183 = vpop.f32.mrf.mxu0
        %v1184 = vadd.f32 0.0, %v1183
        %1185 = vmatprep.mubr.bf16.mxu0 0
        %1186 = vmatmul.mubr.bf16.gmra.mxu0 %v915
        %v1187 = vpop.f32.mrf.mxu0
        %v1188 = vadd.f32 0.0, %v1187
        %v1189 = vpop.f32.mrf.mxu0
        %v1190 = vadd.f32 0.0, %v1189
        %v1191 = vpop.f32.mrf.mxu0
        %v1192 = vadd.f32 0.0, %v1191
        %v1193 = vpop.f32.mrf.mxu0
        %v1194 = vadd.f32 0.0, %v1193
        %1195 = vmatprep.mubr.bf16.mxu0 0
        %1196 = vmatmul.mubr.bf16.gmra.mxu0 %v916
        %v1197 = vpop.f32.mrf.mxu0
        %v1198 = vadd.f32 0.0, %v1197
        %v1199 = vpop.f32.mrf.mxu0
        %v1200 = vadd.f32 0.0, %v1199
        %v1201 = vpop.f32.mrf.mxu0
        %v1202 = vadd.f32 0.0, %v1201
        %v1203 = vpop.f32.mrf.mxu0
        %v1204 = vadd.f32 0.0, %v1203
        %1205 = vdwg.mxu0
        %v1206 = vmax.f32 %v1048, %v1058
        %v1207 = vmax.f32 %v1052, %v1062
        %v1208 = vmax.f32 %v1206, %v1068
        %v1209 = vmax.f32 %v1207, %v1072
        %v1210 = vmax.f32 %v1208, %v1078
        %v1211 = vmax.f32 %v1209, %v1082
        %v1212 = vmax.f32 %v1210, %v1088
        %v1213 = vmax.f32 %v1211, %v1092
        %v1214 = vmax.f32 %v1212, %v1098
        %v1215 = vmax.f32 %v1213, %v1102
        %v1216 = vmax.f32 %v1214, %v1108
        %v1217 = vmax.f32 %v1215, %v1112
        %v1218 = vmax.f32 %v1216, %v1118
        %v1219 = vmax.f32 %v1217, %v1122
        %v1220 = vmax.f32 %v1218, %v1128
        %v1221 = vmax.f32 %v1219, %v1132
        %v1222 = vmax.f32 %v1220, %v1138
        %v1223 = vmax.f32 %v1221, %v1142
        %v1224 = vmax.f32 %v1222, %v1148
        %v1225 = vmax.f32 %v1223, %v1152
        %v1226 = vmax.f32 %v1224, %v1158
        %v1227 = vmax.f32 %v1225, %v1162
        %v1228 = vmax.f32 %v1226, %v1168
        %v1229 = vmax.f32 %v1227, %v1172
        %v1230 = vmax.f32 %v1228, %v1178
        %v1231 = vmax.f32 %v1229, %v1182
        %v1232 = vmax.f32 %v1230, %v1188
        %v1233 = vmax.f32 %v1231, %v1192
        %v1234 = vmax.f32 %v1232, %v1198
        %v1235 = vmax.f32 %v1233, %v1202
        %v1236 = vmax.f32 %v1234, %v1235
        %v1237 = vrot.slane %v1236, 4
        %v1238 = vmax.f32 %v1236, %v1237
        %v1239 = vrot.slane %v1238, 2
        %v1240 = vmax.f32 %v1238, %v1239
        %v1241 = vrot.slane %v1240, 1
        %v1242 = vmax.f32 %v1240, %v1241
        %v1243 = vmax.f32 %v1050, %v1060
        %v1244 = vmax.f32 %v1054, %v1064
        %v1245 = vmax.f32 %v1243, %v1070
        %v1246 = vmax.f32 %v1244, %v1074
        %v1247 = vmax.f32 %v1245, %v1080
        %v1248 = vmax.f32 %v1246, %v1084
        %v1249 = vmax.f32 %v1247, %v1090
        %v1250 = vmax.f32 %v1248, %v1094
        %v1251 = vmax.f32 %v1249, %v1100
        %v1252 = vmax.f32 %v1250, %v1104
        %v1253 = vmax.f32 %v1251, %v1110
        %v1254 = vmax.f32 %v1252, %v1114
        %v1255 = vmax.f32 %v1253, %v1120
        %v1256 = vmax.f32 %v1254, %v1124
        %v1257 = vmax.f32 %v1255, %v1130
        %v1258 = vmax.f32 %v1256, %v1134
        %v1259 = vmax.f32 %v1257, %v1140
        %v1260 = vmax.f32 %v1258, %v1144
        %v1261 = vmax.f32 %v1259, %v1150
        %v1262 = vmax.f32 %v1260, %v1154
        %v1263 = vmax.f32 %v1261, %v1160
        %v1264 = vmax.f32 %v1262, %v1164
        %v1265 = vmax.f32 %v1263, %v1170
        %v1266 = vmax.f32 %v1264, %v1174
        %v1267 = vmax.f32 %v1265, %v1180
        %v1268 = vmax.f32 %v1266, %v1184
        %v1269 = vmax.f32 %v1267, %v1190
        %v1270 = vmax.f32 %v1268, %v1194
        %v1271 = vmax.f32 %v1269, %v1200
        %v1272 = vmax.f32 %v1270, %v1204
        %v1273 = vmax.f32 %v1271, %v1272
        %v1274 = vrot.slane %v1273, 4
        %v1275 = vmax.f32 %v1273, %v1274
        %v1276 = vrot.slane %v1275, 2
        %v1277 = vmax.f32 %v1275, %v1276
        %v1278 = vrot.slane %v1277, 1
        %v1279 = vmax.f32 %v1277, %v1278
        %v1280 = vld [vmem:[#allocation2 + $0x10] sm:$0xff]
        %v1281 = vld [vmem:[#allocation2 + $0x18] sm:$0xff]
        %v1282 = vpack.c.bf16 %v1280, %v1280
        %v1283 = vpack.c.bf16 %v1281, %v1281
        %v1285 = vsel %vm444, %v1282, 0
        %v1288 = vsel %vm444, %v1283, 0
        %1290 = vmatprep.subr.bf16.mxu0 0
        %1291 = vmatpush1.bf16.msra.mxu0 0
        %1292 = vmatprep.subr.bf16.mxu0 0
        %1293 = vmatpush1.bf16.msra.mxu0 0
        %1294 = vmatprep.subr.bf16.mxu0 0
        %1295 = vmatpush1.bf16.msra.mxu0 0
        %1296 = vmatprep.subr.bf16.mxu0 0
        %1297 = vmatpush1.bf16.msra.mxu0 0
        %1298 = vmatprep.subr.bf16.mxu0 0
        %1299 = vmatpush1.bf16.msra.mxu0 0
        %1300 = vmatprep.subr.bf16.mxu0 0
        %1301 = vmatpush1.bf16.msra.mxu0 0
        %1302 = vmatprep.subr.bf16.mxu0 0
        %1303 = vmatpush1.bf16.msra.mxu0 0
        %1304 = vmatprep.subr.bf16.mxu0 %v1288
        %1305 = vmatpush1.bf16.msra.mxu0 %v1285
        %1306 = vmatprep.subr.bf16.mxu0 0
        %1307 = vmatpush2.bf16.msra.mxu0 0
        %1308 = vmatprep.subr.bf16.mxu0 0
        %1309 = vmatpush2.bf16.msra.mxu0 0
        %1310 = vmatprep.subr.bf16.mxu0 0
        %1311 = vmatpush2.bf16.msra.mxu0 0
        %1312 = vmatprep.subr.bf16.mxu0 0
        %1313 = vmatpush2.bf16.msra.mxu0 0
        %1314 = vmatprep.subr.bf16.mxu0 0
        %1315 = vmatpush2.bf16.msra.mxu0 0
        %1316 = vmatprep.subr.bf16.mxu0 0
        %1317 = vmatpush2.bf16.msra.mxu0 0
        %1318 = vmatprep.subr.bf16.mxu0 0
        %1319 = vmatpush2.bf16.msra.mxu0 0
        %1320 = vmatprep.subr.bf16.mxu0 0
        %1321 = vmatpush2.bf16.msra.mxu0 0
        %1322 = vmatprep.mubr.bf16.mxu0 0
        %1323 = vmatmul.mubr.bf16.gmra.mxu0 %v433
        %v1324 = vpop.f32.mrf.mxu0
        %v1325 = vadd.f32 %v374, %v1324
        %v1326 = vpop.f32.mrf.mxu0
        %v1327 = vadd.f32 %v374, %v1326
        %v1328 = vpop.f32.mrf.mxu0
        %v1329 = vadd.f32 %v379, %v1328
        %v1330 = vpop.f32.mrf.mxu0
        %v1331 = vadd.f32 %v379, %v1330
        %1332 = vmatprep.mubr.bf16.mxu0 0
        %1333 = vmatmul.mubr.bf16.gmra.mxu0 %v436
        %v1334 = vpop.f32.mrf.mxu0
        %v1335 = vadd.f32 %v384, %v1334
        %v1336 = vpop.f32.mrf.mxu0
        %v1337 = vadd.f32 %v384, %v1336
        %v1338 = vpop.f32.mrf.mxu0
        %v1339 = vadd.f32 %v389, %v1338
        %v1340 = vpop.f32.mrf.mxu0
        %v1341 = vadd.f32 %v389, %v1340
        %1342 = vmatprep.mubr.bf16.mxu0 0
        %1343 = vmatmul.mubr.bf16.gmra.mxu0 %v439
        %v1344 = vpop.f32.mrf.mxu0
        %v1345 = vadd.f32 %v394, %v1344
        %v1346 = vpop.f32.mrf.mxu0
        %v1347 = vadd.f32 %v394, %v1346
        %v1348 = vpop.f32.mrf.mxu0
        %v1349 = vadd.f32 %v399, %v1348
        %v1350 = vpop.f32.mrf.mxu0
        %v1351 = vadd.f32 %v399, %v1350
        %1352 = vmatprep.mubr.bf16.mxu0 0
        %1353 = vmatmul.mubr.bf16.gmra.mxu0 %v442
        %v1354 = vpop.f32.mrf.mxu0
        %v1355 = vadd.f32 %v404, %v1354
        %v1356 = vpop.f32.mrf.mxu0
        %v1357 = vadd.f32 %v404, %v1356
        %v1358 = vpop.f32.mrf.mxu0
        %v1359 = vadd.f32 %v409, %v1358
        %v1360 = vpop.f32.mrf.mxu0
        %v1361 = vadd.f32 %v409, %v1360
        %1362 = vdwg.mxu0
        %v1363 = vmax.f32 %v1325, 0.0
        %v1364 = vmax.f32 %v1327, 0.0
        %v1365 = vmax.f32 %v1329, 0.0
        %v1366 = vmax.f32 %v1331, 0.0
        %v1367 = vmax.f32 %v1335, 0.0
        %v1368 = vmax.f32 %v1337, 0.0
        %v1369 = vmax.f32 %v1339, 0.0
        %v1370 = vmax.f32 %v1341, 0.0
        %v1371 = vmax.f32 %v1345, 0.0
        %v1372 = vmax.f32 %v1347, 0.0
        %v1373 = vmax.f32 %v1349, 0.0
        %v1374 = vmax.f32 %v1351, 0.0
        %v1375 = vmax.f32 %v1355, 0.0
        %v1376 = vmax.f32 %v1357, 0.0
        %v1377 = vmax.f32 %v1359, 0.0
        %v1378 = vmax.f32 %v1361, 0.0
        %1379 = vxpose.xlu0.b32.start [1/16] %v1363, 128
        %1380 = vxpose.xlu0.b32.cont [2/16] %v1365, 128
        %1381 = vxpose.xlu0.b32.cont [3/16] %v1367, 128
        %1382 = vxpose.xlu0.b32.cont [4/16] %v1369, 128
        %1383 = vxpose.xlu0.b32.cont [5/16] %v1371, 128
        %1384 = vxpose.xlu0.b32.cont [6/16] %v1373, 128
        %1385 = vxpose.xlu0.b32.cont [7/16] %v1375, 128
        %1386 = vxpose.xlu0.b32.cont [8/16] %v1377, 128
        %1387 = vxpose.xlu0.b32.cont [9/16] 0.0, 128
        %1388 = vxpose.xlu0.b32.cont [10/16] 0.0, 128
        %1389 = vxpose.xlu0.b32.cont [11/16] 0.0, 128
        %1390 = vxpose.xlu0.b32.cont [12/16] 0.0, 128
        %1391 = vxpose.xlu0.b32.cont [13/16] 0.0, 128
        %1392 = vxpose.xlu0.b32.cont [14/16] 0.0, 128
        %1393 = vxpose.xlu0.b32.cont [15/16] 0.0, 128
        %1394 = vxpose.xlu0.b32.end [16/16] 0.0, 128
        %v1395 = vpop.trf.xlu0
        %v1396 = vpop.trf.xlu0
        %v1397 = vpop.trf.xlu0
        %v1398 = vpop.trf.xlu0
        %v1399 = vpop.trf.xlu0
        %v1400 = vpop.trf.xlu0
        %v1401 = vpop.trf.xlu0
        %v1402 = vpop.trf.xlu0
        %v1403 = vpop.trf.xlu0
        %v1404 = vpop.trf.xlu0
        %v1405 = vpop.trf.xlu0
        %v1406 = vpop.trf.xlu0
        %v1407 = vpop.trf.xlu0
        %v1408 = vpop.trf.xlu0
        %v1409 = vpop.trf.xlu0
        %v1410 = vpop.trf.xlu0
        %1411 = vxpose.xlu0.b32.start [1/16] %v1364, 128
        %1412 = vxpose.xlu0.b32.cont [2/16] %v1366, 128
        %1413 = vxpose.xlu0.b32.cont [3/16] %v1368, 128
        %1414 = vxpose.xlu0.b32.cont [4/16] %v1370, 128
        %1415 = vxpose.xlu0.b32.cont [5/16] %v1372, 128
        %1416 = vxpose.xlu0.b32.cont [6/16] %v1374, 128
        %1417 = vxpose.xlu0.b32.cont [7/16] %v1376, 128
        %1418 = vxpose.xlu0.b32.cont [8/16] %v1378, 128
        %1419 = vxpose.xlu0.b32.cont [9/16] 0.0, 128
        %1420 = vxpose.xlu0.b32.cont [10/16] 0.0, 128
        %1421 = vxpose.xlu0.b32.cont [11/16] 0.0, 128
        %1422 = vxpose.xlu0.b32.cont [12/16] 0.0, 128
        %1423 = vxpose.xlu0.b32.cont [13/16] 0.0, 128
        %1424 = vxpose.xlu0.b32.cont [14/16] 0.0, 128
        %1425 = vxpose.xlu0.b32.cont [15/16] 0.0, 128
        %1426 = vxpose.xlu0.b32.end [16/16] 0.0, 128
        %v1427 = vpop.trf.xlu0
        %v1428 = vpop.trf.xlu0
        %v1429 = vpop.trf.xlu0
        %v1430 = vpop.trf.xlu0
        %v1431 = vpop.trf.xlu0
        %v1432 = vpop.trf.xlu0
        %v1433 = vpop.trf.xlu0
        %v1434 = vpop.trf.xlu0
        %v1435 = vpop.trf.xlu0
        %v1436 = vpop.trf.xlu0
        %v1437 = vpop.trf.xlu0
        %v1438 = vpop.trf.xlu0
        %v1439 = vpop.trf.xlu0
        %v1440 = vpop.trf.xlu0
        %v1441 = vpop.trf.xlu0
        %v1442 = vpop.trf.xlu0
        %v1443 = vpack.c.bf16 %v1396, %v1395
        %v1444 = vpack.c.bf16 %v1398, %v1397
        %v1445 = vpack.c.bf16 %v1400, %v1399
        %v1446 = vpack.c.bf16 %v1402, %v1401
        %v1447 = vpack.c.bf16 %v1404, %v1403
        %v1448 = vpack.c.bf16 %v1406, %v1405
        %v1449 = vpack.c.bf16 %v1408, %v1407
        %v1450 = vpack.c.bf16 %v1410, %v1409
        %v1451 = vpack.c.bf16 %v1428, %v1427
        %v1452 = vpack.c.bf16 %v1430, %v1429
        %v1453 = vpack.c.bf16 %v1432, %v1431
        %v1454 = vpack.c.bf16 %v1434, %v1433
        %v1455 = vpack.c.bf16 %v1436, %v1435
        %v1456 = vpack.c.bf16 %v1438, %v1437
        %v1457 = vpack.c.bf16 %v1440, %v1439
        %v1458 = vpack.c.bf16 %v1442, %v1441
        %v1460 = vsel %vm659, %v1443, 0
        %v1463 = vsel %vm659, %v1444, 0
        %v1466 = vsel %vm659, %v1445, 0
        %v1469 = vsel %vm659, %v1446, 0
        %v1472 = vsel %vm659, %v1447, 0
        %v1475 = vsel %vm659, %v1448, 0
        %v1478 = vsel %vm659, %v1449, 0
        %v1481 = vsel %vm659, %v1450, 0
        %v1484 = vsel %vm659, %v1451, 0
        %v1487 = vsel %vm659, %v1452, 0
        %v1490 = vsel %vm659, %v1453, 0
        %v1493 = vsel %vm659, %v1454, 0
        %v1496 = vsel %vm659, %v1455, 0
        %v1499 = vsel %vm659, %v1456, 0
        %v1502 = vsel %vm659, %v1457, 0
        %v1505 = vsel %vm659, %v1458, 0
        %1507 = vmatprep.subr.bf16.mxu0 0
        %1508 = vmatpush1.bf16.msra.mxu0 0
        %1509 = vmatprep.subr.bf16.mxu0 0
        %1510 = vmatpush1.bf16.msra.mxu0 0
        %1511 = vmatprep.subr.bf16.mxu0 0
        %1512 = vmatpush1.bf16.msra.mxu0 0
        %1513 = vmatprep.subr.bf16.mxu0 0
        %1514 = vmatpush1.bf16.msra.mxu0 0
        %1515 = vmatprep.subr.bf16.mxu0 0
        %1516 = vmatpush1.bf16.msra.mxu0 %v654
        %1517 = vmatprep.subr.bf16.mxu0 0
        %1518 = vmatpush1.bf16.msra.mxu0 %v653
        %1519 = vmatprep.subr.bf16.mxu0 0
        %1520 = vmatpush1.bf16.msra.mxu0 %v652
        %1521 = vmatprep.subr.bf16.mxu0 0
        %1522 = vmatpush1.bf16.msra.mxu0 %v651
        %1523 = vmatprep.subr.bf16.mxu0 0
        %1524 = vmatpush2.bf16.msra.mxu0 0
        %1525 = vmatprep.subr.bf16.mxu0 0
        %1526 = vmatpush2.bf16.msra.mxu0 0
        %1527 = vmatprep.subr.bf16.mxu0 0
        %1528 = vmatpush2.bf16.msra.mxu0 0
        %1529 = vmatprep.subr.bf16.mxu0 0
        %1530 = vmatpush2.bf16.msra.mxu0 0
        %1531 = vmatprep.subr.bf16.mxu0 0
        %1532 = vmatpush2.bf16.msra.mxu0 0
        %1533 = vmatprep.subr.bf16.mxu0 0
        %1534 = vmatpush2.bf16.msra.mxu0 0
        %1535 = vmatprep.subr.bf16.mxu0 0
        %1536 = vmatpush2.bf16.msra.mxu0 0
        %1537 = vmatprep.subr.bf16.mxu0 0
        %1538 = vmatpush2.bf16.msra.mxu0 0
        %1539 = vmatprep.mubr.bf16.mxu0 0
        %1540 = vmatmul.mubr.bf16.gmra.mxu0 %v1460
        %v1541 = vpop.f32.mrf.mxu0
        %v1542 = vadd.f32 %v633, %v1541
        %v1543 = vpop.f32.mrf.mxu0
        %v1544 = vpop.f32.mrf.mxu0
        %v1545 = vadd.f32 %v633, %v1544
        %v1546 = vpop.f32.mrf.mxu0
        %1547 = vmatprep.mubr.bf16.mxu0 0
        %1548 = vmatmul.mubr.bf16.gmra.mxu0 %v1463
        %v1549 = vpop.f32.mrf.mxu0
        %v1550 = vadd.f32 %v633, %v1549
        %v1551 = vpop.f32.mrf.mxu0
        %v1552 = vpop.f32.mrf.mxu0
        %v1553 = vadd.f32 %v633, %v1552
        %v1554 = vpop.f32.mrf.mxu0
        %1555 = vmatprep.mubr.bf16.mxu0 0
        %1556 = vmatmul.mubr.bf16.gmra.mxu0 %v1466
        %v1557 = vpop.f32.mrf.mxu0
        %v1558 = vadd.f32 %v633, %v1557
        %v1559 = vpop.f32.mrf.mxu0
        %v1560 = vpop.f32.mrf.mxu0
        %v1561 = vadd.f32 %v633, %v1560
        %v1562 = vpop.f32.mrf.mxu0
        %1563 = vmatprep.mubr.bf16.mxu0 0
        %1564 = vmatmul.mubr.bf16.gmra.mxu0 %v1469
        %v1565 = vpop.f32.mrf.mxu0
        %v1566 = vadd.f32 %v633, %v1565
        %v1567 = vpop.f32.mrf.mxu0
        %v1568 = vpop.f32.mrf.mxu0
        %v1569 = vadd.f32 %v633, %v1568
        %v1570 = vpop.f32.mrf.mxu0
        %1571 = vmatprep.mubr.bf16.mxu0 0
        %1572 = vmatmul.mubr.bf16.gmra.mxu0 %v1472
        %v1573 = vpop.f32.mrf.mxu0
        %v1574 = vadd.f32 %v633, %v1573
        %v1575 = vpop.f32.mrf.mxu0
        %v1576 = vpop.f32.mrf.mxu0
        %v1577 = vadd.f32 %v633, %v1576
        %v1578 = vpop.f32.mrf.mxu0
        %1579 = vmatprep.mubr.bf16.mxu0 0
        %1580 = vmatmul.mubr.bf16.gmra.mxu0 %v1475
        %v1581 = vpop.f32.mrf.mxu0
        %v1582 = vadd.f32 %v633, %v1581
        %v1583 = vpop.f32.mrf.mxu0
        %v1584 = vpop.f32.mrf.mxu0
        %v1585 = vadd.f32 %v633, %v1584
        %v1586 = vpop.f32.mrf.mxu0
        %1587 = vmatprep.mubr.bf16.mxu0 0
        %1588 = vmatmul.mubr.bf16.gmra.mxu0 %v1478
        %v1589 = vpop.f32.mrf.mxu0
        %v1590 = vadd.f32 %v633, %v1589
        %v1591 = vpop.f32.mrf.mxu0
        %v1592 = vpop.f32.mrf.mxu0
        %v1593 = vadd.f32 %v633, %v1592
        %v1594 = vpop.f32.mrf.mxu0
        %1595 = vmatprep.mubr.bf16.mxu0 0
        %1596 = vmatmul.mubr.bf16.gmra.mxu0 %v1481
        %v1597 = vpop.f32.mrf.mxu0
        %v1598 = vadd.f32 %v633, %v1597
        %v1599 = vpop.f32.mrf.mxu0
        %v1600 = vpop.f32.mrf.mxu0
        %v1601 = vadd.f32 %v633, %v1600
        %v1602 = vpop.f32.mrf.mxu0
        %1603 = vmatprep.mubr.bf16.mxu0 0
        %1604 = vmatmul.mubr.bf16.gmra.mxu0 %v1484
        %v1605 = vpop.f32.mrf.mxu0
        %v1606 = vadd.f32 %v633, %v1605
        %v1607 = vpop.f32.mrf.mxu0
        %v1608 = vpop.f32.mrf.mxu0
        %v1609 = vadd.f32 %v633, %v1608
        %v1610 = vpop.f32.mrf.mxu0
        %1611 = vmatprep.mubr.bf16.mxu0 0
        %1612 = vmatmul.mubr.bf16.gmra.mxu0 %v1487
        %v1613 = vpop.f32.mrf.mxu0
        %v1614 = vadd.f32 %v633, %v1613
        %v1615 = vpop.f32.mrf.mxu0
        %v1616 = vpop.f32.mrf.mxu0
        %v1617 = vadd.f32 %v633, %v1616
        %v1618 = vpop.f32.mrf.mxu0
        %1619 = vmatprep.mubr.bf16.mxu0 0
        %1620 = vmatmul.mubr.bf16.gmra.mxu0 %v1490
        %v1621 = vpop.f32.mrf.mxu0
        %v1622 = vadd.f32 %v633, %v1621
        %v1623 = vpop.f32.mrf.mxu0
        %v1624 = vpop.f32.mrf.mxu0
        %v1625 = vadd.f32 %v633, %v1624
        %v1626 = vpop.f32.mrf.mxu0
        %1627 = vmatprep.mubr.bf16.mxu0 0
        %1628 = vmatmul.mubr.bf16.gmra.mxu0 %v1493
        %v1629 = vpop.f32.mrf.mxu0
        %v1630 = vadd.f32 %v633, %v1629
        %v1631 = vpop.f32.mrf.mxu0
        %v1632 = vpop.f32.mrf.mxu0
        %v1633 = vadd.f32 %v633, %v1632
        %v1634 = vpop.f32.mrf.mxu0
        %1635 = vmatprep.mubr.bf16.mxu0 0
        %1636 = vmatmul.mubr.bf16.gmra.mxu0 %v1496
        %v1637 = vpop.f32.mrf.mxu0
        %v1638 = vadd.f32 %v633, %v1637
        %v1639 = vpop.f32.mrf.mxu0
        %v1640 = vpop.f32.mrf.mxu0
        %v1641 = vadd.f32 %v633, %v1640
        %v1642 = vpop.f32.mrf.mxu0
        %1643 = vmatprep.mubr.bf16.mxu0 0
        %1644 = vmatmul.mubr.bf16.gmra.mxu0 %v1499
        %v1645 = vpop.f32.mrf.mxu0
        %v1646 = vadd.f32 %v633, %v1645
        %v1647 = vpop.f32.mrf.mxu0
        %v1648 = vpop.f32.mrf.mxu0
        %v1649 = vadd.f32 %v633, %v1648
        %v1650 = vpop.f32.mrf.mxu0
        %1651 = vmatprep.mubr.bf16.mxu0 0
        %1652 = vmatmul.mubr.bf16.gmra.mxu0 %v1502
        %v1653 = vpop.f32.mrf.mxu0
        %v1654 = vadd.f32 %v633, %v1653
        %v1655 = vpop.f32.mrf.mxu0
        %v1656 = vpop.f32.mrf.mxu0
        %v1657 = vadd.f32 %v633, %v1656
        %v1658 = vpop.f32.mrf.mxu0
        %1659 = vmatprep.mubr.bf16.mxu0 0
        %1660 = vmatmul.mubr.bf16.gmra.mxu0 %v1505
        %v1661 = vpop.f32.mrf.mxu0
        %v1662 = vadd.f32 %v633, %v1661
        %v1663 = vpop.f32.mrf.mxu0
        %v1664 = vpop.f32.mrf.mxu0
        %v1665 = vadd.f32 %v633, %v1664
        %v1666 = vpop.f32.mrf.mxu0
        %1667 = vdwg.mxu0
        %v1668 = vmax.f32 %v1542, 0.0
        %v1669 = vmax.f32 %v1545, 0.0
        %v1670 = vmax.f32 %v1550, 0.0
        %v1671 = vmax.f32 %v1553, 0.0
        %v1672 = vmax.f32 %v1558, 0.0
        %v1673 = vmax.f32 %v1561, 0.0
        %v1674 = vmax.f32 %v1566, 0.0
        %v1675 = vmax.f32 %v1569, 0.0
        %v1676 = vmax.f32 %v1574, 0.0
        %v1677 = vmax.f32 %v1577, 0.0
        %v1678 = vmax.f32 %v1582, 0.0
        %v1679 = vmax.f32 %v1585, 0.0
        %v1680 = vmax.f32 %v1590, 0.0
        %v1681 = vmax.f32 %v1593, 0.0
        %v1682 = vmax.f32 %v1598, 0.0
        %v1683 = vmax.f32 %v1601, 0.0
        %v1684 = vmax.f32 %v1606, 0.0
        %v1685 = vmax.f32 %v1609, 0.0
        %v1686 = vmax.f32 %v1614, 0.0
        %v1687 = vmax.f32 %v1617, 0.0
        %v1688 = vmax.f32 %v1622, 0.0
        %v1689 = vmax.f32 %v1625, 0.0
        %v1690 = vmax.f32 %v1630, 0.0
        %v1691 = vmax.f32 %v1633, 0.0
        %v1692 = vmax.f32 %v1638, 0.0
        %v1693 = vmax.f32 %v1641, 0.0
        %v1694 = vmax.f32 %v1646, 0.0
        %v1695 = vmax.f32 %v1649, 0.0
        %v1696 = vmax.f32 %v1654, 0.0
        %v1697 = vmax.f32 %v1657, 0.0
        %v1698 = vmax.f32 %v1662, 0.0
        %v1699 = vmax.f32 %v1665, 0.0
        %v1700 = vpack.c.bf16 %v1669, %v1668
        %v1701 = vpack.c.bf16 %v1671, %v1670
        %v1702 = vpack.c.bf16 %v1673, %v1672
        %v1703 = vpack.c.bf16 %v1675, %v1674
        %v1704 = vpack.c.bf16 %v1677, %v1676
        %v1705 = vpack.c.bf16 %v1679, %v1678
        %v1706 = vpack.c.bf16 %v1681, %v1680
        %v1707 = vpack.c.bf16 %v1683, %v1682
        %v1708 = vpack.c.bf16 %v1685, %v1684
        %v1709 = vpack.c.bf16 %v1687, %v1686
        %v1710 = vpack.c.bf16 %v1689, %v1688
        %v1711 = vpack.c.bf16 %v1691, %v1690
        %v1712 = vpack.c.bf16 %v1693, %v1692
        %v1713 = vpack.c.bf16 %v1695, %v1694
        %v1714 = vpack.c.bf16 %v1697, %v1696
        %v1715 = vpack.c.bf16 %v1699, %v1698
        %1716 = vmatprep.subr.bf16.mxu0 %v996
        %1717 = vmatpush1.bf16.msra.mxu0 %v995
        %1718 = vmatprep.subr.bf16.mxu0 %v994
        %1719 = vmatpush1.bf16.msra.mxu0 %v993
        %1720 = vmatprep.subr.bf16.mxu0 %v992
        %1721 = vmatpush1.bf16.msra.mxu0 %v991
        %1722 = vmatprep.subr.bf16.mxu0 %v990
        %1723 = vmatpush1.bf16.msra.mxu0 %v989
        %1724 = vmatprep.subr.bf16.mxu0 %v988
        %1725 = vmatpush1.bf16.msra.mxu0 %v987
        %1726 = vmatprep.subr.bf16.mxu0 %v986
        %1727 = vmatpush1.bf16.msra.mxu0 %v985
        %1728 = vmatprep.subr.bf16.mxu0 %v984
        %1729 = vmatpush1.bf16.msra.mxu0 %v983
        %1730 = vmatprep.subr.bf16.mxu0 %v982
        %1731 = vmatpush1.bf16.msra.mxu0 %v981
        %1732 = vmatprep.subr.bf16.mxu0 0
        %1733 = vmatpush2.bf16.msra.mxu0 0
        %1734 = vmatprep.subr.bf16.mxu0 0
        %1735 = vmatpush2.bf16.msra.mxu0 0
        %1736 = vmatprep.subr.bf16.mxu0 0
        %1737 = vmatpush2.bf16.msra.mxu0 0
        %1738 = vmatprep.subr.bf16.mxu0 0
        %1739 = vmatpush2.bf16.msra.mxu0 0
        %1740 = vmatprep.subr.bf16.mxu0 0
        %1741 = vmatpush2.bf16.msra.mxu0 0
        %1742 = vmatprep.subr.bf16.mxu0 0
        %1743 = vmatpush2.bf16.msra.mxu0 0
        %1744 = vmatprep.subr.bf16.mxu0 0
        %1745 = vmatpush2.bf16.msra.mxu0 0
        %1746 = vmatprep.subr.bf16.mxu0 0
        %1747 = vmatpush2.bf16.msra.mxu0 0
        %1748 = vmatprep.mubr.bf16.mxu0 0
        %1749 = vmatmul.mubr.bf16.gmra.mxu0 %v1700
        %v1750 = vpop.f32.mrf.mxu0
        %v1751 = vadd.f32 0.0, %v1750
        %v1752 = vpop.f32.mrf.mxu0
        %v1753 = vadd.f32 0.0, %v1752
        %v1754 = vpop.f32.mrf.mxu0
        %v1755 = vadd.f32 0.0, %v1754
        %v1756 = vpop.f32.mrf.mxu0
        %v1757 = vadd.f32 0.0, %v1756
        %1758 = vmatprep.mubr.bf16.mxu0 0
        %1759 = vmatmul.mubr.bf16.gmra.mxu0 %v1701
        %v1760 = vpop.f32.mrf.mxu0
        %v1761 = vadd.f32 0.0, %v1760
        %v1762 = vpop.f32.mrf.mxu0
        %v1763 = vadd.f32 0.0, %v1762
        %v1764 = vpop.f32.mrf.mxu0
        %v1765 = vadd.f32 0.0, %v1764
        %v1766 = vpop.f32.mrf.mxu0
        %v1767 = vadd.f32 0.0, %v1766
        %1768 = vmatprep.mubr.bf16.mxu0 0
        %1769 = vmatmul.mubr.bf16.gmra.mxu0 %v1702
        %v1770 = vpop.f32.mrf.mxu0
        %v1771 = vadd.f32 0.0, %v1770
        %v1772 = vpop.f32.mrf.mxu0
        %v1773 = vadd.f32 0.0, %v1772
        %v1774 = vpop.f32.mrf.mxu0
        %v1775 = vadd.f32 0.0, %v1774
        %v1776 = vpop.f32.mrf.mxu0
        %v1777 = vadd.f32 0.0, %v1776
        %1778 = vmatprep.mubr.bf16.mxu0 0
        %1779 = vmatmul.mubr.bf16.gmra.mxu0 %v1703
        %v1780 = vpop.f32.mrf.mxu0
        %v1781 = vadd.f32 0.0, %v1780
        %v1782 = vpop.f32.mrf.mxu0
        %v1783 = vadd.f32 0.0, %v1782
        %v1784 = vpop.f32.mrf.mxu0
        %v1785 = vadd.f32 0.0, %v1784
        %v1786 = vpop.f32.mrf.mxu0
        %v1787 = vadd.f32 0.0, %v1786
        %1788 = vmatprep.mubr.bf16.mxu0 0
        %1789 = vmatmul.mubr.bf16.gmra.mxu0 %v1704
        %v1790 = vpop.f32.mrf.mxu0
        %v1791 = vadd.f32 0.0, %v1790
        %v1792 = vpop.f32.mrf.mxu0
        %v1793 = vadd.f32 0.0, %v1792
        %v1794 = vpop.f32.mrf.mxu0
        %v1795 = vadd.f32 0.0, %v1794
        %v1796 = vpop.f32.mrf.mxu0
        %v1797 = vadd.f32 0.0, %v1796
        %1798 = vmatprep.mubr.bf16.mxu0 0
        %1799 = vmatmul.mubr.bf16.gmra.mxu0 %v1705
        %v1800 = vpop.f32.mrf.mxu0
        %v1801 = vadd.f32 0.0, %v1800
        %v1802 = vpop.f32.mrf.mxu0
        %v1803 = vadd.f32 0.0, %v1802
        %v1804 = vpop.f32.mrf.mxu0
        %v1805 = vadd.f32 0.0, %v1804
        %v1806 = vpop.f32.mrf.mxu0
        %v1807 = vadd.f32 0.0, %v1806
        %1808 = vmatprep.mubr.bf16.mxu0 0
        %1809 = vmatmul.mubr.bf16.gmra.mxu0 %v1706
        %v1810 = vpop.f32.mrf.mxu0
        %v1811 = vadd.f32 0.0, %v1810
        %v1812 = vpop.f32.mrf.mxu0
        %v1813 = vadd.f32 0.0, %v1812
        %v1814 = vpop.f32.mrf.mxu0
        %v1815 = vadd.f32 0.0, %v1814
        %v1816 = vpop.f32.mrf.mxu0
        %v1817 = vadd.f32 0.0, %v1816
        %1818 = vmatprep.mubr.bf16.mxu0 0
        %1819 = vmatmul.mubr.bf16.gmra.mxu0 %v1707
        %v1820 = vpop.f32.mrf.mxu0
        %v1821 = vadd.f32 0.0, %v1820
        %v1822 = vpop.f32.mrf.mxu0
        %v1823 = vadd.f32 0.0, %v1822
        %v1824 = vpop.f32.mrf.mxu0
        %v1825 = vadd.f32 0.0, %v1824
        %v1826 = vpop.f32.mrf.mxu0
        %v1827 = vadd.f32 0.0, %v1826
        %1828 = vmatprep.mubr.bf16.mxu0 0
        %1829 = vmatmul.mubr.bf16.gmra.mxu0 %v1708
        %v1830 = vpop.f32.mrf.mxu0
        %v1831 = vadd.f32 0.0, %v1830
        %v1832 = vpop.f32.mrf.mxu0
        %v1833 = vadd.f32 0.0, %v1832
        %v1834 = vpop.f32.mrf.mxu0
        %v1835 = vadd.f32 0.0, %v1834
        %v1836 = vpop.f32.mrf.mxu0
        %v1837 = vadd.f32 0.0, %v1836
        %1838 = vmatprep.mubr.bf16.mxu0 0
        %1839 = vmatmul.mubr.bf16.gmra.mxu0 %v1709
        %v1840 = vpop.f32.mrf.mxu0
        %v1841 = vadd.f32 0.0, %v1840
        %v1842 = vpop.f32.mrf.mxu0
        %v1843 = vadd.f32 0.0, %v1842
        %v1844 = vpop.f32.mrf.mxu0
        %v1845 = vadd.f32 0.0, %v1844
        %v1846 = vpop.f32.mrf.mxu0
        %v1847 = vadd.f32 0.0, %v1846
        %1848 = vmatprep.mubr.bf16.mxu0 0
        %1849 = vmatmul.mubr.bf16.gmra.mxu0 %v1710
        %v1850 = vpop.f32.mrf.mxu0
        %v1851 = vadd.f32 0.0, %v1850
        %v1852 = vpop.f32.mrf.mxu0
        %v1853 = vadd.f32 0.0, %v1852
        %v1854 = vpop.f32.mrf.mxu0
        %v1855 = vadd.f32 0.0, %v1854
        %v1856 = vpop.f32.mrf.mxu0
        %v1857 = vadd.f32 0.0, %v1856
        %1858 = vmatprep.mubr.bf16.mxu0 0
        %1859 = vmatmul.mubr.bf16.gmra.mxu0 %v1711
        %v1860 = vpop.f32.mrf.mxu0
        %v1861 = vadd.f32 0.0, %v1860
        %v1862 = vpop.f32.mrf.mxu0
        %v1863 = vadd.f32 0.0, %v1862
        %v1864 = vpop.f32.mrf.mxu0
        %v1865 = vadd.f32 0.0, %v1864
        %v1866 = vpop.f32.mrf.mxu0
        %v1867 = vadd.f32 0.0, %v1866
        %1868 = vmatprep.mubr.bf16.mxu0 0
        %1869 = vmatmul.mubr.bf16.gmra.mxu0 %v1712
        %v1870 = vpop.f32.mrf.mxu0
        %v1871 = vadd.f32 0.0, %v1870
        %v1872 = vpop.f32.mrf.mxu0
        %v1873 = vadd.f32 0.0, %v1872
        %v1874 = vpop.f32.mrf.mxu0
        %v1875 = vadd.f32 0.0, %v1874
        %v1876 = vpop.f32.mrf.mxu0
        %v1877 = vadd.f32 0.0, %v1876
        %1878 = vmatprep.mubr.bf16.mxu0 0
        %1879 = vmatmul.mubr.bf16.gmra.mxu0 %v1713
        %v1880 = vpop.f32.mrf.mxu0
        %v1881 = vadd.f32 0.0, %v1880
        %v1882 = vpop.f32.mrf.mxu0
        %v1883 = vadd.f32 0.0, %v1882
        %v1884 = vpop.f32.mrf.mxu0
        %v1885 = vadd.f32 0.0, %v1884
        %v1886 = vpop.f32.mrf.mxu0
        %v1887 = vadd.f32 0.0, %v1886
        %1888 = vmatprep.mubr.bf16.mxu0 0
        %1889 = vmatmul.mubr.bf16.gmra.mxu0 %v1714
        %v1890 = vpop.f32.mrf.mxu0
        %v1891 = vadd.f32 0.0, %v1890
        %v1892 = vpop.f32.mrf.mxu0
        %v1893 = vadd.f32 0.0, %v1892
        %v1894 = vpop.f32.mrf.mxu0
        %v1895 = vadd.f32 0.0, %v1894
        %v1896 = vpop.f32.mrf.mxu0
        %v1897 = vadd.f32 0.0, %v1896
        %1898 = vmatprep.mubr.bf16.mxu0 0
        %1899 = vmatmul.mubr.bf16.gmra.mxu0 %v1715
        %v1900 = vpop.f32.mrf.mxu0
        %v1901 = vadd.f32 0.0, %v1900
        %v1902 = vpop.f32.mrf.mxu0
        %v1903 = vadd.f32 0.0, %v1902
        %v1904 = vpop.f32.mrf.mxu0
        %v1905 = vadd.f32 0.0, %v1904
        %v1906 = vpop.f32.mrf.mxu0
        %v1907 = vadd.f32 0.0, %v1906
        %1908 = vdwg.mxu0
        %v1909 = vmax.f32 %v1751, %v1761
        %v1910 = vmax.f32 %v1755, %v1765
        %v1911 = vmax.f32 %v1909, %v1771
        %v1912 = vmax.f32 %v1910, %v1775
        %v1913 = vmax.f32 %v1911, %v1781
        %v1914 = vmax.f32 %v1912, %v1785
        %v1915 = vmax.f32 %v1913, %v1791
        %v1916 = vmax.f32 %v1914, %v1795
        %v1917 = vmax.f32 %v1915, %v1801
        %v1918 = vmax.f32 %v1916, %v1805
        %v1919 = vmax.f32 %v1917, %v1811
        %v1920 = vmax.f32 %v1918, %v1815
        %v1921 = vmax.f32 %v1919, %v1821
        %v1922 = vmax.f32 %v1920, %v1825
        %v1923 = vmax.f32 %v1921, %v1831
        %v1924 = vmax.f32 %v1922, %v1835
        %v1925 = vmax.f32 %v1923, %v1841
        %v1926 = vmax.f32 %v1924, %v1845
        %v1927 = vmax.f32 %v1925, %v1851
        %v1928 = vmax.f32 %v1926, %v1855
        %v1929 = vmax.f32 %v1927, %v1861
        %v1930 = vmax.f32 %v1928, %v1865
        %v1931 = vmax.f32 %v1929, %v1871
        %v1932 = vmax.f32 %v1930, %v1875
        %v1933 = vmax.f32 %v1931, %v1881
        %v1934 = vmax.f32 %v1932, %v1885
        %v1935 = vmax.f32 %v1933, %v1891
        %v1936 = vmax.f32 %v1934, %v1895
        %v1937 = vmax.f32 %v1935, %v1901
        %v1938 = vmax.f32 %v1936, %v1905
        %v1939 = vmax.f32 %v1937, %v1938
        %v1940 = vrot.slane %v1939, 4
        %v1941 = vmax.f32 %v1939, %v1940
        %v1942 = vrot.slane %v1941, 2
        %v1943 = vmax.f32 %v1941, %v1942
        %v1944 = vrot.slane %v1943, 1
        %v1945 = vmax.f32 %v1943, %v1944
        %v1946 = vmax.f32 %v1753, %v1763
        %v1947 = vmax.f32 %v1757, %v1767
        %v1948 = vmax.f32 %v1946, %v1773
        %v1949 = vmax.f32 %v1947, %v1777
        %v1950 = vmax.f32 %v1948, %v1783
        %v1951 = vmax.f32 %v1949, %v1787
        %v1952 = vmax.f32 %v1950, %v1793
        %v1953 = vmax.f32 %v1951, %v1797
        %v1954 = vmax.f32 %v1952, %v1803
        %v1955 = vmax.f32 %v1953, %v1807
        %v1956 = vmax.f32 %v1954, %v1813
        %v1957 = vmax.f32 %v1955, %v1817
        %v1958 = vmax.f32 %v1956, %v1823
        %v1959 = vmax.f32 %v1957, %v1827
        %v1960 = vmax.f32 %v1958, %v1833
        %v1961 = vmax.f32 %v1959, %v1837
        %v1962 = vmax.f32 %v1960, %v1843
        %v1963 = vmax.f32 %v1961, %v1847
        %v1964 = vmax.f32 %v1962, %v1853
        %v1965 = vmax.f32 %v1963, %v1857
        %v1966 = vmax.f32 %v1964, %v1863
        %v1967 = vmax.f32 %v1965, %v1867
        %v1968 = vmax.f32 %v1966, %v1873
        %v1969 = vmax.f32 %v1967, %v1877
        %v1970 = vmax.f32 %v1968, %v1883
        %v1971 = vmax.f32 %v1969, %v1887
        %v1972 = vmax.f32 %v1970, %v1893
        %v1973 = vmax.f32 %v1971, %v1897
        %v1974 = vmax.f32 %v1972, %v1903
        %v1975 = vmax.f32 %v1973, %v1907
        %v1976 = vmax.f32 %v1974, %v1975
        %v1977 = vrot.slane %v1976, 4
        %v1978 = vmax.f32 %v1976, %v1977
        %v1979 = vrot.slane %v1978, 2
        %v1980 = vmax.f32 %v1978, %v1979
        %v1981 = vrot.slane %v1980, 1
        %v1982 = vmax.f32 %v1980, %v1981
        %v1983 = vmax.f32 %v1242, %v1945
        %v1984 = vmax.f32 %v1279, %v1982
        %v1985 = vld [vmem:[%s6] sm:$0x3]
        %v1987 = vlaneseq
        %v1988 = vshrl.u32 %v1987, 7
        %v1989 = vsub.s32 0, %v1988
        %v1990 = vrot.slane %v1985, %v1989
        %v1991 = vlaneseq
        %v1992 = vshrl.u32 %v1991, 7
        %v1993 = vsub.s32 1, %v1992
        %v1994 = vrot.slane %v1985, %v1993
        %v1997 = vadd.f32 %v1983, %v1990
        %v1998 = vadd.f32 %v1984, %v1994
        %v2001 = vcombine.low %v1997, %v1998
        %v2003 = vunpack.c.l.s4 1966171168
        %v2004 = vunpack.c.0.s8 %v2003
        %v2005 = vlaneseq
        %v2006 = vshrl.u32 %v2005, 7
        %v2007 = vsub.s32 %v2004, %v2006
        %v2008 = vrot.slane %v2001, %v2007
        %v2010 = vunpack.c.l.s4 1966171168
        %v2011 = vunpack.c.0.s8 %v2010
        %v2012 = vlaneseq
        %v2013 = vshrl.u32 %v2012, 7
        %v2014 = vsub.s32 %v2011, %v2013
        %v2015 = vrot.slane %v2008, %v2014
        %v2017 = vlaneseq
        %vm2018 = vcmp.ge.s32.totalorder %v2017, 0
        %vm2019 = vcmp.lt.s32.totalorder %v2017, 256
        %vm2020 = vmand %vm2018, %vm2019
        %2021 = vst.msk [vmem:[%s333] ss:$2 sm:$0x3] %vm2020, %v2015
        %s2022 = scalar_lea.vmem %s290, 16 [#allocation3]
        %v2023 = vld [vmem:[%s2022] sm:$0x77]
        %v2024 = vld [vmem:[%s2022 + $0x8] sm:$0x77]
        %v2027 = vcombine.high %v2023, %v2023
        %v2028 = vcombine.high %v2024, %v2024
        %2031 = vst [vmem:[#allocation2] sm:$0x7] %v2023
        %2032 = vst [vmem:[#allocation2 + $0x8] sm:$0x7] %v2027
        %2033 = vst [vmem:[#allocation2 + $0x10] sm:$0x7] %v2024
        %2034 = vst [vmem:[#allocation2 + $0x18] sm:$0x7] %v2028
        %v2035 = vld [vmem:[#allocation2] sm:$0xff]
        %v2036 = vld [vmem:[#allocation2 + $0x8] sm:$0xff]
        %v2037 = vpack.c.bf16 %v2035, %v2035
        %v2038 = vpack.c.bf16 %v2036, %v2036
        %v2039 = vld [vmem:[%s1] sm:$0xf]
        %v2040 = vld [vmem:[%s1 + $0x4] sm:$0xf]
        %v2041 = vld [vmem:[%s1 + $0x8] sm:$0xf]
        %v2042 = vld [vmem:[%s1 + $0xc] sm:$0xf]
        %v2043 = vld [vmem:[%s1 + $0x10] sm:$0xf]
        %v2044 = vld [vmem:[%s1 + $0x14] sm:$0xf]
        %v2045 = vld [vmem:[%s1 + $0x18] sm:$0xf]
        %v2046 = vld [vmem:[%s1 + $0x1c] sm:$0xf]
        %v2047 = vld [vmem:[%s2] sm:$0xff]
        %v2048 = vld [vmem:[%s2 + $0x8] sm:$0xff]
        %v2049 = vld [vmem:[%s2 + $0x10] sm:$0xff]
        %v2050 = vld [vmem:[%s2 + $0x18] sm:$0xff]
        %v2051 = vld [vmem:[%s2 + $0x20] sm:$0xff]
        %v2052 = vld [vmem:[%s2 + $0x28] sm:$0xff]
        %v2053 = vld [vmem:[%s2 + $0x30] sm:$0xff]
        %v2054 = vld [vmem:[%s2 + $0x38] sm:$0xff]
        %2056 = vset.pattern.permute.xlu0 0
        %2057 = vperm.xlu0 %2056, %v2047
        %v2058 = vpop.permute.xlu0 %2057
        %2061 = vset.pattern.permute.xlu0 0
        %2062 = vperm.xlu0 %2061, %v2048
        %v2063 = vpop.permute.xlu0 %2062
        %2066 = vset.pattern.permute.xlu0 0
        %2067 = vperm.xlu0 %2066, %v2049
        %v2068 = vpop.permute.xlu0 %2067
        %2071 = vset.pattern.permute.xlu0 0
        %2072 = vperm.xlu0 %2071, %v2050
        %v2073 = vpop.permute.xlu0 %2072
        %2076 = vset.pattern.permute.xlu0 0
        %2077 = vperm.xlu0 %2076, %v2051
        %v2078 = vpop.permute.xlu0 %2077
        %2081 = vset.pattern.permute.xlu0 0
        %2082 = vperm.xlu0 %2081, %v2052
        %v2083 = vpop.permute.xlu0 %2082
        %2086 = vset.pattern.permute.xlu0 0
        %2087 = vperm.xlu0 %2086, %v2053
        %v2088 = vpop.permute.xlu0 %2087
        %2091 = vset.pattern.permute.xlu0 0
        %2092 = vperm.xlu0 %2091, %v2054
        %v2093 = vpop.permute.xlu0 %2092
        %v2103 = vunpack.c.l.b16 %v2039
        %v2104 = vunpack.c.l.b16 %v2040
        %v2105 = vunpack.c.l.b16 %v2041
        %v2106 = vunpack.c.l.b16 %v2042
        %v2107 = vunpack.c.l.b16 %v2043
        %v2108 = vunpack.c.l.b16 %v2044
        %v2109 = vunpack.c.l.b16 %v2045
        %v2110 = vunpack.c.l.b16 %v2046
        %v2111 = vpack.c.b16 %v2104, %v2103
        %v2112 = vpack.c.b16 %v2106, %v2105
        %v2113 = vpack.c.b16 %v2108, %v2107
        %v2114 = vpack.c.b16 %v2110, %v2109
        %v2116 = vsel %vm431, %v2111, 0
        %v2119 = vsel %vm431, %v2112, 0
        %v2122 = vsel %vm431, %v2113, 0
        %v2125 = vsel %vm431, %v2114, 0
        %v2128 = vsel %vm444, %v2037, 0
        %v2131 = vsel %vm444, %v2038, 0
        %2133 = vmatprep.subr.bf16.mxu0 0
        %2134 = vmatpush1.bf16.msra.mxu0 0
        %2135 = vmatprep.subr.bf16.mxu0 0
        %2136 = vmatpush1.bf16.msra.mxu0 0
        %2137 = vmatprep.subr.bf16.mxu0 0
        %2138 = vmatpush1.bf16.msra.mxu0 0
        %2139 = vmatprep.subr.bf16.mxu0 0
        %2140 = vmatpush1.bf16.msra.mxu0 0
        %2141 = vmatprep.subr.bf16.mxu0 0
        %2142 = vmatpush1.bf16.msra.mxu0 0
        %2143 = vmatprep.subr.bf16.mxu0 0
        %2144 = vmatpush1.bf16.msra.mxu0 0
        %2145 = vmatprep.subr.bf16.mxu0 0
        %2146 = vmatpush1.bf16.msra.mxu0 0
        %2147 = vmatprep.subr.bf16.mxu0 %v2131
        %2148 = vmatpush1.bf16.msra.mxu0 %v2128
        %2149 = vmatprep.subr.bf16.mxu0 0
        %2150 = vmatpush2.bf16.msra.mxu0 0
        %2151 = vmatprep.subr.bf16.mxu0 0
        %2152 = vmatpush2.bf16.msra.mxu0 0
        %2153 = vmatprep.subr.bf16.mxu0 0
        %2154 = vmatpush2.bf16.msra.mxu0 0
        %2155 = vmatprep.subr.bf16.mxu0 0
        %2156 = vmatpush2.bf16.msra.mxu0 0
        %2157 = vmatprep.subr.bf16.mxu0 0
        %2158 = vmatpush2.bf16.msra.mxu0 0
        %2159 = vmatprep.subr.bf16.mxu0 0
        %2160 = vmatpush2.bf16.msra.mxu0 0
        %2161 = vmatprep.subr.bf16.mxu0 0
        %2162 = vmatpush2.bf16.msra.mxu0 0
        %2163 = vmatprep.subr.bf16.mxu0 0
        %2164 = vmatpush2.bf16.msra.mxu0 0
        %2165 = vmatprep.mubr.bf16.mxu0 0
        %2166 = vmatmul.mubr.bf16.gmra.mxu0 %v2116
        %v2167 = vpop.f32.mrf.mxu0
        %v2168 = vadd.f32 %v2058, %v2167
        %v2169 = vpop.f32.mrf.mxu0
        %v2170 = vadd.f32 %v2058, %v2169
        %v2171 = vpop.f32.mrf.mxu0
        %v2172 = vadd.f32 %v2063, %v2171
        %v2173 = vpop.f32.mrf.mxu0
        %v2174 = vadd.f32 %v2063, %v2173
        %2175 = vmatprep.mubr.bf16.mxu0 0
        %2176 = vmatmul.mubr.bf16.gmra.mxu0 %v2119
        %v2177 = vpop.f32.mrf.mxu0
        %v2178 = vadd.f32 %v2068, %v2177
        %v2179 = vpop.f32.mrf.mxu0
        %v2180 = vadd.f32 %v2068, %v2179
        %v2181 = vpop.f32.mrf.mxu0
        %v2182 = vadd.f32 %v2073, %v2181
        %v2183 = vpop.f32.mrf.mxu0
        %v2184 = vadd.f32 %v2073, %v2183
        %2185 = vmatprep.mubr.bf16.mxu0 0
        %2186 = vmatmul.mubr.bf16.gmra.mxu0 %v2122
        %v2187 = vpop.f32.mrf.mxu0
        %v2188 = vadd.f32 %v2078, %v2187
        %v2189 = vpop.f32.mrf.mxu0
        %v2190 = vadd.f32 %v2078, %v2189
        %v2191 = vpop.f32.mrf.mxu0
        %v2192 = vadd.f32 %v2083, %v2191
        %v2193 = vpop.f32.mrf.mxu0
        %v2194 = vadd.f32 %v2083, %v2193
        %2195 = vmatprep.mubr.bf16.mxu0 0
        %2196 = vmatmul.mubr.bf16.gmra.mxu0 %v2125
        %v2197 = vpop.f32.mrf.mxu0
        %v2198 = vadd.f32 %v2088, %v2197
        %v2199 = vpop.f32.mrf.mxu0
        %v2200 = vadd.f32 %v2088, %v2199
        %v2201 = vpop.f32.mrf.mxu0
        %v2202 = vadd.f32 %v2093, %v2201
        %v2203 = vpop.f32.mrf.mxu0
        %v2204 = vadd.f32 %v2093, %v2203
        %2205 = vdwg.mxu0
        %v2206 = vmax.f32 %v2168, 0.0
        %v2207 = vmax.f32 %v2170, 0.0
        %v2208 = vmax.f32 %v2172, 0.0
        %v2209 = vmax.f32 %v2174, 0.0
        %v2210 = vmax.f32 %v2178, 0.0
        %v2211 = vmax.f32 %v2180, 0.0
        %v2212 = vmax.f32 %v2182, 0.0
        %v2213 = vmax.f32 %v2184, 0.0
        %v2214 = vmax.f32 %v2188, 0.0
        %v2215 = vmax.f32 %v2190, 0.0
        %v2216 = vmax.f32 %v2192, 0.0
        %v2217 = vmax.f32 %v2194, 0.0
        %v2218 = vmax.f32 %v2198, 0.0
        %v2219 = vmax.f32 %v2200, 0.0
        %v2220 = vmax.f32 %v2202, 0.0
        %v2221 = vmax.f32 %v2204, 0.0
        %2222 = vxpose.xlu0.b32.start [1/16] %v2206, 128
        %2223 = vxpose.xlu0.b32.cont [2/16] %v2208, 128
        %2224 = vxpose.xlu0.b32.cont [3/16] %v2210, 128
        %2225 = vxpose.xlu0.b32.cont [4/16] %v2212, 128
        %2226 = vxpose.xlu0.b32.cont [5/16] %v2214, 128
        %2227 = vxpose.xlu0.b32.cont [6/16] %v2216, 128
        %2228 = vxpose.xlu0.b32.cont [7/16] %v2218, 128
        %2229 = vxpose.xlu0.b32.cont [8/16] %v2220, 128
        %2230 = vxpose.xlu0.b32.cont [9/16] 0.0, 128
        %2231 = vxpose.xlu0.b32.cont [10/16] 0.0, 128
        %2232 = vxpose.xlu0.b32.cont [11/16] 0.0, 128
        %2233 = vxpose.xlu0.b32.cont [12/16] 0.0, 128
        %2234 = vxpose.xlu0.b32.cont [13/16] 0.0, 128
        %2235 = vxpose.xlu0.b32.cont [14/16] 0.0, 128
        %2236 = vxpose.xlu0.b32.cont [15/16] 0.0, 128
        %2237 = vxpose.xlu0.b32.end [16/16] 0.0, 128
        %v2238 = vpop.trf.xlu0
        %v2239 = vpop.trf.xlu0
        %v2240 = vpop.trf.xlu0
        %v2241 = vpop.trf.xlu0
        %v2242 = vpop.trf.xlu0
        %v2243 = vpop.trf.xlu0
        %v2244 = vpop.trf.xlu0
        %v2245 = vpop.trf.xlu0
        %v2246 = vpop.trf.xlu0
        %v2247 = vpop.trf.xlu0
        %v2248 = vpop.trf.xlu0
        %v2249 = vpop.trf.xlu0
        %v2250 = vpop.trf.xlu0
        %v2251 = vpop.trf.xlu0
        %v2252 = vpop.trf.xlu0
        %v2253 = vpop.trf.xlu0
        %2254 = vxpose.xlu0.b32.start [1/16] %v2207, 128
        %2255 = vxpose.xlu0.b32.cont [2/16] %v2209, 128
        %2256 = vxpose.xlu0.b32.cont [3/16] %v2211, 128
        %2257 = vxpose.xlu0.b32.cont [4/16] %v2213, 128
        %2258 = vxpose.xlu0.b32.cont [5/16] %v2215, 128
        %2259 = vxpose.xlu0.b32.cont [6/16] %v2217, 128
        %2260 = vxpose.xlu0.b32.cont [7/16] %v2219, 128
        %2261 = vxpose.xlu0.b32.cont [8/16] %v2221, 128
        %2262 = vxpose.xlu0.b32.cont [9/16] 0.0, 128
        %2263 = vxpose.xlu0.b32.cont [10/16] 0.0, 128
        %2264 = vxpose.xlu0.b32.cont [11/16] 0.0, 128
        %2265 = vxpose.xlu0.b32.cont [12/16] 0.0, 128
        %2266 = vxpose.xlu0.b32.cont [13/16] 0.0, 128
        %2267 = vxpose.xlu0.b32.cont [14/16] 0.0, 128
        %2268 = vxpose.xlu0.b32.cont [15/16] 0.0, 128
        %2269 = vxpose.xlu0.b32.end [16/16] 0.0, 128
        %v2270 = vpop.trf.xlu0
        %v2271 = vpop.trf.xlu0
        %v2272 = vpop.trf.xlu0
        %v2273 = vpop.trf.xlu0
        %v2274 = vpop.trf.xlu0
        %v2275 = vpop.trf.xlu0
        %v2276 = vpop.trf.xlu0
        %v2277 = vpop.trf.xlu0
        %v2278 = vpop.trf.xlu0
        %v2279 = vpop.trf.xlu0
        %v2280 = vpop.trf.xlu0
        %v2281 = vpop.trf.xlu0
        %v2282 = vpop.trf.xlu0
        %v2283 = vpop.trf.xlu0
        %v2284 = vpop.trf.xlu0
        %v2285 = vpop.trf.xlu0
        %v2286 = vpack.c.bf16 %v2239, %v2238
        %v2287 = vpack.c.bf16 %v2241, %v2240
        %v2288 = vpack.c.bf16 %v2243, %v2242
        %v2289 = vpack.c.bf16 %v2245, %v2244
        %v2290 = vpack.c.bf16 %v2247, %v2246
        %v2291 = vpack.c.bf16 %v2249, %v2248
        %v2292 = vpack.c.bf16 %v2251, %v2250
        %v2293 = vpack.c.bf16 %v2253, %v2252
        %v2294 = vpack.c.bf16 %v2271, %v2270
        %v2295 = vpack.c.bf16 %v2273, %v2272
        %v2296 = vpack.c.bf16 %v2275, %v2274
        %v2297 = vpack.c.bf16 %v2277, %v2276
        %v2298 = vpack.c.bf16 %v2279, %v2278
        %v2299 = vpack.c.bf16 %v2281, %v2280
        %v2300 = vpack.c.bf16 %v2283, %v2282
        %v2301 = vpack.c.bf16 %v2285, %v2284
        %v2302 = vld [vmem:[%s3] sm:$0xf]
        %v2303 = vld [vmem:[%s3 + $0x4] sm:$0xf]
        %v2304 = vld [vmem:[%s3 + $0x8] sm:$0xf]
        %v2305 = vld [vmem:[%s3 + $0xc] sm:$0xf]
        %v2306 = vld [vmem:[%s3 + $0x10] sm:$0xf]
        %v2307 = vld [vmem:[%s3 + $0x14] sm:$0xf]
        %v2308 = vld [vmem:[%s3 + $0x18] sm:$0xf]
        %v2309 = vld [vmem:[%s3 + $0x1c] sm:$0xf]
        %v2310 = vld [vmem:[%s4] sm:$0x1]
        %v2312 = vlaneseq
        %v2313 = vshrl.u32 %v2312, 7
        %v2314 = vsub.s32 0, %v2313
        %v2315 = vrot.slane %v2310, %v2314
        %v2325 = vunpack.c.l.b16 %v2302
        %v2326 = vunpack.c.l.b16 %v2303
        %v2327 = vunpack.c.l.b16 %v2304
        %v2328 = vunpack.c.l.b16 %v2305
        %v2329 = vunpack.c.l.b16 %v2306
        %v2330 = vunpack.c.l.b16 %v2307
        %v2331 = vunpack.c.l.b16 %v2308
        %v2332 = vunpack.c.l.b16 %v2309
        %v2333 = vpack.c.b16 %v2326, %v2325
        %v2334 = vpack.c.b16 %v2328, %v2327
        %v2335 = vpack.c.b16 %v2330, %v2329
        %v2336 = vpack.c.b16 %v2332, %v2331
        %v2342 = vsel %vm659, %v2286, 0
        %v2345 = vsel %vm659, %v2287, 0
        %v2348 = vsel %vm659, %v2288, 0
        %v2351 = vsel %vm659, %v2289, 0
        %v2354 = vsel %vm659, %v2290, 0
        %v2357 = vsel %vm659, %v2291, 0
        %v2360 = vsel %vm659, %v2292, 0
        %v2363 = vsel %vm659, %v2293, 0
        %v2366 = vsel %vm659, %v2294, 0
        %v2369 = vsel %vm659, %v2295, 0
        %v2372 = vsel %vm659, %v2296, 0
        %v2375 = vsel %vm659, %v2297, 0
        %v2378 = vsel %vm659, %v2298, 0
        %v2381 = vsel %vm659, %v2299, 0
        %v2384 = vsel %vm659, %v2300, 0
        %v2387 = vsel %vm659, %v2301, 0
        %2389 = vmatprep.subr.bf16.mxu0 0
        %2390 = vmatpush1.bf16.msra.mxu0 0
        %2391 = vmatprep.subr.bf16.mxu0 0
        %2392 = vmatpush1.bf16.msra.mxu0 0
        %2393 = vmatprep.subr.bf16.mxu0 0
        %2394 = vmatpush1.bf16.msra.mxu0 0
        %2395 = vmatprep.subr.bf16.mxu0 0
        %2396 = vmatpush1.bf16.msra.mxu0 0
        %2397 = vmatprep.subr.bf16.mxu0 0
        %2398 = vmatpush1.bf16.msra.mxu0 %v2336
        %2399 = vmatprep.subr.bf16.mxu0 0
        %2400 = vmatpush1.bf16.msra.mxu0 %v2335
        %2401 = vmatprep.subr.bf16.mxu0 0
        %2402 = vmatpush1.bf16.msra.mxu0 %v2334
        %2403 = vmatprep.subr.bf16.mxu0 0
        %2404 = vmatpush1.bf16.msra.mxu0 %v2333
        %2405 = vmatprep.subr.bf16.mxu0 0
        %2406 = vmatpush2.bf16.msra.mxu0 0
        %2407 = vmatprep.subr.bf16.mxu0 0
        %2408 = vmatpush2.bf16.msra.mxu0 0
        %2409 = vmatprep.subr.bf16.mxu0 0
        %2410 = vmatpush2.bf16.msra.mxu0 0
        %2411 = vmatprep.subr.bf16.mxu0 0
        %2412 = vmatpush2.bf16.msra.mxu0 0
        %2413 = vmatprep.subr.bf16.mxu0 0
        %2414 = vmatpush2.bf16.msra.mxu0 0
        %2415 = vmatprep.subr.bf16.mxu0 0
        %2416 = vmatpush2.bf16.msra.mxu0 0
        %2417 = vmatprep.subr.bf16.mxu0 0
        %2418 = vmatpush2.bf16.msra.mxu0 0
        %2419 = vmatprep.subr.bf16.mxu0 0
        %2420 = vmatpush2.bf16.msra.mxu0 0
        %2421 = vmatprep.mubr.bf16.mxu0 0
        %2422 = vmatmul.mubr.bf16.gmra.mxu0 %v2342
        %v2423 = vpop.f32.mrf.mxu0
        %v2424 = vadd.f32 %v2315, %v2423
        %v2425 = vpop.f32.mrf.mxu0
        %v2426 = vpop.f32.mrf.mxu0
        %v2427 = vadd.f32 %v2315, %v2426
        %v2428 = vpop.f32.mrf.mxu0
        %2429 = vmatprep.mubr.bf16.mxu0 0
        %2430 = vmatmul.mubr.bf16.gmra.mxu0 %v2345
        %v2431 = vpop.f32.mrf.mxu0
        %v2432 = vadd.f32 %v2315, %v2431
        %v2433 = vpop.f32.mrf.mxu0
        %v2434 = vpop.f32.mrf.mxu0
        %v2435 = vadd.f32 %v2315, %v2434
        %v2436 = vpop.f32.mrf.mxu0
        %2437 = vmatprep.mubr.bf16.mxu0 0
        %2438 = vmatmul.mubr.bf16.gmra.mxu0 %v2348
        %v2439 = vpop.f32.mrf.mxu0
        %v2440 = vadd.f32 %v2315, %v2439
        %v2441 = vpop.f32.mrf.mxu0
        %v2442 = vpop.f32.mrf.mxu0
        %v2443 = vadd.f32 %v2315, %v2442
        %v2444 = vpop.f32.mrf.mxu0
        %2445 = vmatprep.mubr.bf16.mxu0 0
        %2446 = vmatmul.mubr.bf16.gmra.mxu0 %v2351
        %v2447 = vpop.f32.mrf.mxu0
        %v2448 = vadd.f32 %v2315, %v2447
        %v2449 = vpop.f32.mrf.mxu0
        %v2450 = vpop.f32.mrf.mxu0
        %v2451 = vadd.f32 %v2315, %v2450
        %v2452 = vpop.f32.mrf.mxu0
        %2453 = vmatprep.mubr.bf16.mxu0 0
        %2454 = vmatmul.mubr.bf16.gmra.mxu0 %v2354
        %v2455 = vpop.f32.mrf.mxu0
        %v2456 = vadd.f32 %v2315, %v2455
        %v2457 = vpop.f32.mrf.mxu0
        %v2458 = vpop.f32.mrf.mxu0
        %v2459 = vadd.f32 %v2315, %v2458
        %v2460 = vpop.f32.mrf.mxu0
        %2461 = vmatprep.mubr.bf16.mxu0 0
        %2462 = vmatmul.mubr.bf16.gmra.mxu0 %v2357
        %v2463 = vpop.f32.mrf.mxu0
        %v2464 = vadd.f32 %v2315, %v2463
        %v2465 = vpop.f32.mrf.mxu0
        %v2466 = vpop.f32.mrf.mxu0
        %v2467 = vadd.f32 %v2315, %v2466
        %v2468 = vpop.f32.mrf.mxu0
        %2469 = vmatprep.mubr.bf16.mxu0 0
        %2470 = vmatmul.mubr.bf16.gmra.mxu0 %v2360
        %v2471 = vpop.f32.mrf.mxu0
        %v2472 = vadd.f32 %v2315, %v2471
        %v2473 = vpop.f32.mrf.mxu0
        %v2474 = vpop.f32.mrf.mxu0
        %v2475 = vadd.f32 %v2315, %v2474
        %v2476 = vpop.f32.mrf.mxu0
        %2477 = vmatprep.mubr.bf16.mxu0 0
        %2478 = vmatmul.mubr.bf16.gmra.mxu0 %v2363
        %v2479 = vpop.f32.mrf.mxu0
        %v2480 = vadd.f32 %v2315, %v2479
        %v2481 = vpop.f32.mrf.mxu0
        %v2482 = vpop.f32.mrf.mxu0
        %v2483 = vadd.f32 %v2315, %v2482
        %v2484 = vpop.f32.mrf.mxu0
        %2485 = vmatprep.mubr.bf16.mxu0 0
        %2486 = vmatmul.mubr.bf16.gmra.mxu0 %v2366
        %v2487 = vpop.f32.mrf.mxu0
        %v2488 = vadd.f32 %v2315, %v2487
        %v2489 = vpop.f32.mrf.mxu0
        %v2490 = vpop.f32.mrf.mxu0
        %v2491 = vadd.f32 %v2315, %v2490
        %v2492 = vpop.f32.mrf.mxu0
        %2493 = vmatprep.mubr.bf16.mxu0 0
        %2494 = vmatmul.mubr.bf16.gmra.mxu0 %v2369
        %v2495 = vpop.f32.mrf.mxu0
        %v2496 = vadd.f32 %v2315, %v2495
        %v2497 = vpop.f32.mrf.mxu0
        %v2498 = vpop.f32.mrf.mxu0
        %v2499 = vadd.f32 %v2315, %v2498
        %v2500 = vpop.f32.mrf.mxu0
        %2501 = vmatprep.mubr.bf16.mxu0 0
        %2502 = vmatmul.mubr.bf16.gmra.mxu0 %v2372
        %v2503 = vpop.f32.mrf.mxu0
        %v2504 = vadd.f32 %v2315, %v2503
        %v2505 = vpop.f32.mrf.mxu0
        %v2506 = vpop.f32.mrf.mxu0
        %v2507 = vadd.f32 %v2315, %v2506
        %v2508 = vpop.f32.mrf.mxu0
        %2509 = vmatprep.mubr.bf16.mxu0 0
        %2510 = vmatmul.mubr.bf16.gmra.mxu0 %v2375
        %v2511 = vpop.f32.mrf.mxu0
        %v2512 = vadd.f32 %v2315, %v2511
        %v2513 = vpop.f32.mrf.mxu0
        %v2514 = vpop.f32.mrf.mxu0
        %v2515 = vadd.f32 %v2315, %v2514
        %v2516 = vpop.f32.mrf.mxu0
        %2517 = vmatprep.mubr.bf16.mxu0 0
        %2518 = vmatmul.mubr.bf16.gmra.mxu0 %v2378
        %v2519 = vpop.f32.mrf.mxu0
        %v2520 = vadd.f32 %v2315, %v2519
        %v2521 = vpop.f32.mrf.mxu0
        %v2522 = vpop.f32.mrf.mxu0
        %v2523 = vadd.f32 %v2315, %v2522
        %v2524 = vpop.f32.mrf.mxu0
        %2525 = vmatprep.mubr.bf16.mxu0 0
        %2526 = vmatmul.mubr.bf16.gmra.mxu0 %v2381
        %v2527 = vpop.f32.mrf.mxu0
        %v2528 = vadd.f32 %v2315, %v2527
        %v2529 = vpop.f32.mrf.mxu0
        %v2530 = vpop.f32.mrf.mxu0
        %v2531 = vadd.f32 %v2315, %v2530
        %v2532 = vpop.f32.mrf.mxu0
        %2533 = vmatprep.mubr.bf16.mxu0 0
        %2534 = vmatmul.mubr.bf16.gmra.mxu0 %v2384
        %v2535 = vpop.f32.mrf.mxu0
        %v2536 = vadd.f32 %v2315, %v2535
        %v2537 = vpop.f32.mrf.mxu0
        %v2538 = vpop.f32.mrf.mxu0
        %v2539 = vadd.f32 %v2315, %v2538
        %v2540 = vpop.f32.mrf.mxu0
        %2541 = vmatprep.mubr.bf16.mxu0 0
        %2542 = vmatmul.mubr.bf16.gmra.mxu0 %v2387
        %v2543 = vpop.f32.mrf.mxu0
        %v2544 = vadd.f32 %v2315, %v2543
        %v2545 = vpop.f32.mrf.mxu0
        %v2546 = vpop.f32.mrf.mxu0
        %v2547 = vadd.f32 %v2315, %v2546
        %v2548 = vpop.f32.mrf.mxu0
        %2549 = vdwg.mxu0
        %v2550 = vmax.f32 %v2424, 0.0
        %v2551 = vmax.f32 %v2427, 0.0
        %v2552 = vmax.f32 %v2432, 0.0
        %v2553 = vmax.f32 %v2435, 0.0
        %v2554 = vmax.f32 %v2440, 0.0
        %v2555 = vmax.f32 %v2443, 0.0
        %v2556 = vmax.f32 %v2448, 0.0
        %v2557 = vmax.f32 %v2451, 0.0
        %v2558 = vmax.f32 %v2456, 0.0
        %v2559 = vmax.f32 %v2459, 0.0
        %v2560 = vmax.f32 %v2464, 0.0
        %v2561 = vmax.f32 %v2467, 0.0
        %v2562 = vmax.f32 %v2472, 0.0
        %v2563 = vmax.f32 %v2475, 0.0
        %v2564 = vmax.f32 %v2480, 0.0
        %v2565 = vmax.f32 %v2483, 0.0
        %v2566 = vmax.f32 %v2488, 0.0
        %v2567 = vmax.f32 %v2491, 0.0
        %v2568 = vmax.f32 %v2496, 0.0
        %v2569 = vmax.f32 %v2499, 0.0
        %v2570 = vmax.f32 %v2504, 0.0
        %v2571 = vmax.f32 %v2507, 0.0
        %v2572 = vmax.f32 %v2512, 0.0
        %v2573 = vmax.f32 %v2515, 0.0
        %v2574 = vmax.f32 %v2520, 0.0
        %v2575 = vmax.f32 %v2523, 0.0
        %v2576 = vmax.f32 %v2528, 0.0
        %v2577 = vmax.f32 %v2531, 0.0
        %v2578 = vmax.f32 %v2536, 0.0
        %v2579 = vmax.f32 %v2539, 0.0
        %v2580 = vmax.f32 %v2544, 0.0
        %v2581 = vmax.f32 %v2547, 0.0
        %v2582 = vpack.c.bf16 %v2551, %v2550
        %v2583 = vpack.c.bf16 %v2553, %v2552
        %v2584 = vpack.c.bf16 %v2555, %v2554
        %v2585 = vpack.c.bf16 %v2557, %v2556
        %v2586 = vpack.c.bf16 %v2559, %v2558
        %v2587 = vpack.c.bf16 %v2561, %v2560
        %v2588 = vpack.c.bf16 %v2563, %v2562
        %v2589 = vpack.c.bf16 %v2565, %v2564
        %v2590 = vpack.c.bf16 %v2567, %v2566
        %v2591 = vpack.c.bf16 %v2569, %v2568
        %v2592 = vpack.c.bf16 %v2571, %v2570
        %v2593 = vpack.c.bf16 %v2573, %v2572
        %v2594 = vpack.c.bf16 %v2575, %v2574
        %v2595 = vpack.c.bf16 %v2577, %v2576
        %v2596 = vpack.c.bf16 %v2579, %v2578
        %v2597 = vpack.c.bf16 %v2581, %v2580
        %v2598 = vld [vmem:[%s5] sm:$0xff]
        %v2599 = vld [vmem:[%s5 + $0x8] sm:$0xff]
        %v2600 = vld [vmem:[%s5 + $0x10] sm:$0xff]
        %v2601 = vld [vmem:[%s5 + $0x18] sm:$0xff]
        %v2602 = vld [vmem:[%s5 + $0x20] sm:$0xff]
        %v2603 = vld [vmem:[%s5 + $0x28] sm:$0xff]
        %v2604 = vld [vmem:[%s5 + $0x30] sm:$0xff]
        %v2605 = vld [vmem:[%s5 + $0x38] sm:$0xff]
        %v2606 = vld [vmem:[%s5 + $0x40] sm:$0xff]
        %v2607 = vld [vmem:[%s5 + $0x48] sm:$0xff]
        %v2608 = vld [vmem:[%s5 + $0x50] sm:$0xff]
        %v2609 = vld [vmem:[%s5 + $0x58] sm:$0xff]
        %v2610 = vld [vmem:[%s5 + $0x60] sm:$0xff]
        %v2611 = vld [vmem:[%s5 + $0x68] sm:$0xff]
        %v2612 = vld [vmem:[%s5 + $0x70] sm:$0xff]
        %v2613 = vld [vmem:[%s5 + $0x78] sm:$0xff]
        %v2630 = vunpack.c.l.b16 %v2598
        %v2631 = vunpack.c.h.b16 %v2598
        %v2632 = vunpack.c.l.b16 %v2599
        %v2633 = vunpack.c.h.b16 %v2599
        %v2634 = vunpack.c.l.b16 %v2600
        %v2635 = vunpack.c.h.b16 %v2600
        %v2636 = vunpack.c.l.b16 %v2601
        %v2637 = vunpack.c.h.b16 %v2601
        %v2638 = vunpack.c.l.b16 %v2602
        %v2639 = vunpack.c.h.b16 %v2602
        %v2640 = vunpack.c.l.b16 %v2603
        %v2641 = vunpack.c.h.b16 %v2603
        %v2642 = vunpack.c.l.b16 %v2604
        %v2643 = vunpack.c.h.b16 %v2604
        %v2644 = vunpack.c.l.b16 %v2605
        %v2645 = vunpack.c.h.b16 %v2605
        %v2646 = vunpack.c.l.b16 %v2606
        %v2647 = vunpack.c.h.b16 %v2606
        %v2648 = vunpack.c.l.b16 %v2607
        %v2649 = vunpack.c.h.b16 %v2607
        %v2650 = vunpack.c.l.b16 %v2608
        %v2651 = vunpack.c.h.b16 %v2608
        %v2652 = vunpack.c.l.b16 %v2609
        %v2653 = vunpack.c.h.b16 %v2609
        %v2654 = vunpack.c.l.b16 %v2610
        %v2655 = vunpack.c.h.b16 %v2610
        %v2656 = vunpack.c.l.b16 %v2611
        %v2657 = vunpack.c.h.b16 %v2611
        %v2658 = vunpack.c.l.b16 %v2612
        %v2659 = vunpack.c.h.b16 %v2612
        %v2660 = vunpack.c.l.b16 %v2613
        %v2661 = vunpack.c.h.b16 %v2613
        %v2662 = vpack.c.b16 %v2632, %v2630
        %v2663 = vpack.c.b16 %v2633, %v2631
        %v2664 = vpack.c.b16 %v2636, %v2634
        %v2665 = vpack.c.b16 %v2637, %v2635
        %v2666 = vpack.c.b16 %v2640, %v2638
        %v2667 = vpack.c.b16 %v2641, %v2639
        %v2668 = vpack.c.b16 %v2644, %v2642
        %v2669 = vpack.c.b16 %v2645, %v2643
        %v2670 = vpack.c.b16 %v2648, %v2646
        %v2671 = vpack.c.b16 %v2649, %v2647
        %v2672 = vpack.c.b16 %v2652, %v2650
        %v2673 = vpack.c.b16 %v2653, %v2651
        %v2674 = vpack.c.b16 %v2656, %v2654
        %v2675 = vpack.c.b16 %v2657, %v2655
        %v2676 = vpack.c.b16 %v2660, %v2658
        %v2677 = vpack.c.b16 %v2661, %v2659
        %2694 = vmatprep.subr.bf16.mxu0 %v2677
        %2695 = vmatpush1.bf16.msra.mxu0 %v2676
        %2696 = vmatprep.subr.bf16.mxu0 %v2675
        %2697 = vmatpush1.bf16.msra.mxu0 %v2674
        %2698 = vmatprep.subr.bf16.mxu0 %v2673
        %2699 = vmatpush1.bf16.msra.mxu0 %v2672
        %2700 = vmatprep.subr.bf16.mxu0 %v2671
        %2701 = vmatpush1.bf16.msra.mxu0 %v2670
        %2702 = vmatprep.subr.bf16.mxu0 %v2669
        %2703 = vmatpush1.bf16.msra.mxu0 %v2668
        %2704 = vmatprep.subr.bf16.mxu0 %v2667
        %2705 = vmatpush1.bf16.msra.mxu0 %v2666
        %2706 = vmatprep.subr.bf16.mxu0 %v2665
        %2707 = vmatpush1.bf16.msra.mxu0 %v2664
        %2708 = vmatprep.subr.bf16.mxu0 %v2663
        %2709 = vmatpush1.bf16.msra.mxu0 %v2662
        %2710 = vmatprep.subr.bf16.mxu0 0
        %2711 = vmatpush2.bf16.msra.mxu0 0
        %2712 = vmatprep.subr.bf16.mxu0 0
        %2713 = vmatpush2.bf16.msra.mxu0 0
        %2714 = vmatprep.subr.bf16.mxu0 0
        %2715 = vmatpush2.bf16.msra.mxu0 0
        %2716 = vmatprep.subr.bf16.mxu0 0
        %2717 = vmatpush2.bf16.msra.mxu0 0
        %2718 = vmatprep.subr.bf16.mxu0 0
        %2719 = vmatpush2.bf16.msra.mxu0 0
        %2720 = vmatprep.subr.bf16.mxu0 0
        %2721 = vmatpush2.bf16.msra.mxu0 0
        %2722 = vmatprep.subr.bf16.mxu0 0
        %2723 = vmatpush2.bf16.msra.mxu0 0
        %2724 = vmatprep.subr.bf16.mxu0 0
        %2725 = vmatpush2.bf16.msra.mxu0 0
        %2726 = vmatprep.mubr.bf16.mxu0 0
        %2727 = vmatmul.mubr.bf16.gmra.mxu0 %v2582
        %v2728 = vpop.f32.mrf.mxu0
        %v2729 = vadd.f32 0.0, %v2728
        %v2730 = vpop.f32.mrf.mxu0
        %v2731 = vadd.f32 0.0, %v2730
        %v2732 = vpop.f32.mrf.mxu0
        %v2733 = vadd.f32 0.0, %v2732
        %v2734 = vpop.f32.mrf.mxu0
        %v2735 = vadd.f32 0.0, %v2734
        %2736 = vmatprep.mubr.bf16.mxu0 0
        %2737 = vmatmul.mubr.bf16.gmra.mxu0 %v2583
        %v2738 = vpop.f32.mrf.mxu0
        %v2739 = vadd.f32 0.0, %v2738
        %v2740 = vpop.f32.mrf.mxu0
        %v2741 = vadd.f32 0.0, %v2740
        %v2742 = vpop.f32.mrf.mxu0
        %v2743 = vadd.f32 0.0, %v2742
        %v2744 = vpop.f32.mrf.mxu0
        %v2745 = vadd.f32 0.0, %v2744
        %2746 = vmatprep.mubr.bf16.mxu0 0
        %2747 = vmatmul.mubr.bf16.gmra.mxu0 %v2584
        %v2748 = vpop.f32.mrf.mxu0
        %v2749 = vadd.f32 0.0, %v2748
        %v2750 = vpop.f32.mrf.mxu0
        %v2751 = vadd.f32 0.0, %v2750
        %v2752 = vpop.f32.mrf.mxu0
        %v2753 = vadd.f32 0.0, %v2752
        %v2754 = vpop.f32.mrf.mxu0
        %v2755 = vadd.f32 0.0, %v2754
        %2756 = vmatprep.mubr.bf16.mxu0 0
        %2757 = vmatmul.mubr.bf16.gmra.mxu0 %v2585
        %v2758 = vpop.f32.mrf.mxu0
        %v2759 = vadd.f32 0.0, %v2758
        %v2760 = vpop.f32.mrf.mxu0
        %v2761 = vadd.f32 0.0, %v2760
        %v2762 = vpop.f32.mrf.mxu0
        %v2763 = vadd.f32 0.0, %v2762
        %v2764 = vpop.f32.mrf.mxu0
        %v2765 = vadd.f32 0.0, %v2764
        %2766 = vmatprep.mubr.bf16.mxu0 0
        %2767 = vmatmul.mubr.bf16.gmra.mxu0 %v2586
        %v2768 = vpop.f32.mrf.mxu0
        %v2769 = vadd.f32 0.0, %v2768
        %v2770 = vpop.f32.mrf.mxu0
        %v2771 = vadd.f32 0.0, %v2770
        %v2772 = vpop.f32.mrf.mxu0
        %v2773 = vadd.f32 0.0, %v2772
        %v2774 = vpop.f32.mrf.mxu0
        %v2775 = vadd.f32 0.0, %v2774
        %2776 = vmatprep.mubr.bf16.mxu0 0
        %2777 = vmatmul.mubr.bf16.gmra.mxu0 %v2587
        %v2778 = vpop.f32.mrf.mxu0
        %v2779 = vadd.f32 0.0, %v2778
        %v2780 = vpop.f32.mrf.mxu0
        %v2781 = vadd.f32 0.0, %v2780
        %v2782 = vpop.f32.mrf.mxu0
        %v2783 = vadd.f32 0.0, %v2782
        %v2784 = vpop.f32.mrf.mxu0
        %v2785 = vadd.f32 0.0, %v2784
        %2786 = vmatprep.mubr.bf16.mxu0 0
        %2787 = vmatmul.mubr.bf16.gmra.mxu0 %v2588
        %v2788 = vpop.f32.mrf.mxu0
        %v2789 = vadd.f32 0.0, %v2788
        %v2790 = vpop.f32.mrf.mxu0
        %v2791 = vadd.f32 0.0, %v2790
        %v2792 = vpop.f32.mrf.mxu0
        %v2793 = vadd.f32 0.0, %v2792
        %v2794 = vpop.f32.mrf.mxu0
        %v2795 = vadd.f32 0.0, %v2794
        %2796 = vmatprep.mubr.bf16.mxu0 0
        %2797 = vmatmul.mubr.bf16.gmra.mxu0 %v2589
        %v2798 = vpop.f32.mrf.mxu0
        %v2799 = vadd.f32 0.0, %v2798
        %v2800 = vpop.f32.mrf.mxu0
        %v2801 = vadd.f32 0.0, %v2800
        %v2802 = vpop.f32.mrf.mxu0
        %v2803 = vadd.f32 0.0, %v2802
        %v2804 = vpop.f32.mrf.mxu0
        %v2805 = vadd.f32 0.0, %v2804
        %2806 = vmatprep.mubr.bf16.mxu0 0
        %2807 = vmatmul.mubr.bf16.gmra.mxu0 %v2590
        %v2808 = vpop.f32.mrf.mxu0
        %v2809 = vadd.f32 0.0, %v2808
        %v2810 = vpop.f32.mrf.mxu0
        %v2811 = vadd.f32 0.0, %v2810
        %v2812 = vpop.f32.mrf.mxu0
        %v2813 = vadd.f32 0.0, %v2812
        %v2814 = vpop.f32.mrf.mxu0
        %v2815 = vadd.f32 0.0, %v2814
        %2816 = vmatprep.mubr.bf16.mxu0 0
        %2817 = vmatmul.mubr.bf16.gmra.mxu0 %v2591
        %v2818 = vpop.f32.mrf.mxu0
        %v2819 = vadd.f32 0.0, %v2818
        %v2820 = vpop.f32.mrf.mxu0
        %v2821 = vadd.f32 0.0, %v2820
        %v2822 = vpop.f32.mrf.mxu0
        %v2823 = vadd.f32 0.0, %v2822
        %v2824 = vpop.f32.mrf.mxu0
        %v2825 = vadd.f32 0.0, %v2824
        %2826 = vmatprep.mubr.bf16.mxu0 0
        %2827 = vmatmul.mubr.bf16.gmra.mxu0 %v2592
        %v2828 = vpop.f32.mrf.mxu0
        %v2829 = vadd.f32 0.0, %v2828
        %v2830 = vpop.f32.mrf.mxu0
        %v2831 = vadd.f32 0.0, %v2830
        %v2832 = vpop.f32.mrf.mxu0
        %v2833 = vadd.f32 0.0, %v2832
        %v2834 = vpop.f32.mrf.mxu0
        %v2835 = vadd.f32 0.0, %v2834
        %2836 = vmatprep.mubr.bf16.mxu0 0
        %2837 = vmatmul.mubr.bf16.gmra.mxu0 %v2593
        %v2838 = vpop.f32.mrf.mxu0
        %v2839 = vadd.f32 0.0, %v2838
        %v2840 = vpop.f32.mrf.mxu0
        %v2841 = vadd.f32 0.0, %v2840
        %v2842 = vpop.f32.mrf.mxu0
        %v2843 = vadd.f32 0.0, %v2842
        %v2844 = vpop.f32.mrf.mxu0
        %v2845 = vadd.f32 0.0, %v2844
        %2846 = vmatprep.mubr.bf16.mxu0 0
        %2847 = vmatmul.mubr.bf16.gmra.mxu0 %v2594
        %v2848 = vpop.f32.mrf.mxu0
        %v2849 = vadd.f32 0.0, %v2848
        %v2850 = vpop.f32.mrf.mxu0
        %v2851 = vadd.f32 0.0, %v2850
        %v2852 = vpop.f32.mrf.mxu0
        %v2853 = vadd.f32 0.0, %v2852
        %v2854 = vpop.f32.mrf.mxu0
        %v2855 = vadd.f32 0.0, %v2854
        %2856 = vmatprep.mubr.bf16.mxu0 0
        %2857 = vmatmul.mubr.bf16.gmra.mxu0 %v2595
        %v2858 = vpop.f32.mrf.mxu0
        %v2859 = vadd.f32 0.0, %v2858
        %v2860 = vpop.f32.mrf.mxu0
        %v2861 = vadd.f32 0.0, %v2860
        %v2862 = vpop.f32.mrf.mxu0
        %v2863 = vadd.f32 0.0, %v2862
        %v2864 = vpop.f32.mrf.mxu0
        %v2865 = vadd.f32 0.0, %v2864
        %2866 = vmatprep.mubr.bf16.mxu0 0
        %2867 = vmatmul.mubr.bf16.gmra.mxu0 %v2596
        %v2868 = vpop.f32.mrf.mxu0
        %v2869 = vadd.f32 0.0, %v2868
        %v2870 = vpop.f32.mrf.mxu0
        %v2871 = vadd.f32 0.0, %v2870
        %v2872 = vpop.f32.mrf.mxu0
        %v2873 = vadd.f32 0.0, %v2872
        %v2874 = vpop.f32.mrf.mxu0
        %v2875 = vadd.f32 0.0, %v2874
        %2876 = vmatprep.mubr.bf16.mxu0 0
        %2877 = vmatmul.mubr.bf16.gmra.mxu0 %v2597
        %v2878 = vpop.f32.mrf.mxu0
        %v2879 = vadd.f32 0.0, %v2878
        %v2880 = vpop.f32.mrf.mxu0
        %v2881 = vadd.f32 0.0, %v2880
        %v2882 = vpop.f32.mrf.mxu0
        %v2883 = vadd.f32 0.0, %v2882
        %v2884 = vpop.f32.mrf.mxu0
        %v2885 = vadd.f32 0.0, %v2884
        %2886 = vdwg.mxu0
        %v2887 = vmax.f32 %v2729, %v2739
        %v2888 = vmax.f32 %v2733, %v2743
        %v2889 = vmax.f32 %v2887, %v2749
        %v2890 = vmax.f32 %v2888, %v2753
        %v2891 = vmax.f32 %v2889, %v2759
        %v2892 = vmax.f32 %v2890, %v2763
        %v2893 = vmax.f32 %v2891, %v2769
        %v2894 = vmax.f32 %v2892, %v2773
        %v2895 = vmax.f32 %v2893, %v2779
        %v2896 = vmax.f32 %v2894, %v2783
        %v2897 = vmax.f32 %v2895, %v2789
        %v2898 = vmax.f32 %v2896, %v2793
        %v2899 = vmax.f32 %v2897, %v2799
        %v2900 = vmax.f32 %v2898, %v2803
        %v2901 = vmax.f32 %v2899, %v2809
        %v2902 = vmax.f32 %v2900, %v2813
        %v2903 = vmax.f32 %v2901, %v2819
        %v2904 = vmax.f32 %v2902, %v2823
        %v2905 = vmax.f32 %v2903, %v2829
        %v2906 = vmax.f32 %v2904, %v2833
        %v2907 = vmax.f32 %v2905, %v2839
        %v2908 = vmax.f32 %v2906, %v2843
        %v2909 = vmax.f32 %v2907, %v2849
        %v2910 = vmax.f32 %v2908, %v2853
        %v2911 = vmax.f32 %v2909, %v2859
        %v2912 = vmax.f32 %v2910, %v2863
        %v2913 = vmax.f32 %v2911, %v2869
        %v2914 = vmax.f32 %v2912, %v2873
        %v2915 = vmax.f32 %v2913, %v2879
        %v2916 = vmax.f32 %v2914, %v2883
        %v2917 = vmax.f32 %v2915, %v2916
        %v2918 = vrot.slane %v2917, 4
        %v2919 = vmax.f32 %v2917, %v2918
        %v2920 = vrot.slane %v2919, 2
        %v2921 = vmax.f32 %v2919, %v2920
        %v2922 = vrot.slane %v2921, 1
        %v2923 = vmax.f32 %v2921, %v2922
        %v2924 = vmax.f32 %v2731, %v2741
        %v2925 = vmax.f32 %v2735, %v2745
        %v2926 = vmax.f32 %v2924, %v2751
        %v2927 = vmax.f32 %v2925, %v2755
        %v2928 = vmax.f32 %v2926, %v2761
        %v2929 = vmax.f32 %v2927, %v2765
        %v2930 = vmax.f32 %v2928, %v2771
        %v2931 = vmax.f32 %v2929, %v2775
        %v2932 = vmax.f32 %v2930, %v2781
        %v2933 = vmax.f32 %v2931, %v2785
        %v2934 = vmax.f32 %v2932, %v2791
        %v2935 = vmax.f32 %v2933, %v2795
        %v2936 = vmax.f32 %v2934, %v2801
        %v2937 = vmax.f32 %v2935, %v2805
        %v2938 = vmax.f32 %v2936, %v2811
        %v2939 = vmax.f32 %v2937, %v2815
        %v2940 = vmax.f32 %v2938, %v2821
        %v2941 = vmax.f32 %v2939, %v2825
        %v2942 = vmax.f32 %v2940, %v2831
        %v2943 = vmax.f32 %v2941, %v2835
        %v2944 = vmax.f32 %v2942, %v2841
        %v2945 = vmax.f32 %v2943, %v2845
        %v2946 = vmax.f32 %v2944, %v2851
        %v2947 = vmax.f32 %v2945, %v2855
        %v2948 = vmax.f32 %v2946, %v2861
        %v2949 = vmax.f32 %v2947, %v2865
        %v2950 = vmax.f32 %v2948, %v2871
        %v2951 = vmax.f32 %v2949, %v2875
        %v2952 = vmax.f32 %v2950, %v2881
        %v2953 = vmax.f32 %v2951, %v2885
        %v2954 = vmax.f32 %v2952, %v2953
        %v2955 = vrot.slane %v2954, 4
        %v2956 = vmax.f32 %v2954, %v2955
        %v2957 = vrot.slane %v2956, 2
        %v2958 = vmax.f32 %v2956, %v2957
        %v2959 = vrot.slane %v2958, 1
        %v2960 = vmax.f32 %v2958, %v2959
        %v2961 = vld [vmem:[#allocation2 + $0x10] sm:$0xff]
        %v2962 = vld [vmem:[#allocation2 + $0x18] sm:$0xff]
        %v2963 = vpack.c.bf16 %v2961, %v2961
        %v2964 = vpack.c.bf16 %v2962, %v2962
        %v2966 = vsel %vm444, %v2963, 0
        %v2969 = vsel %vm444, %v2964, 0
        %2971 = vmatprep.subr.bf16.mxu0 0
        %2972 = vmatpush1.bf16.msra.mxu0 0
        %2973 = vmatprep.subr.bf16.mxu0 0
        %2974 = vmatpush1.bf16.msra.mxu0 0
        %2975 = vmatprep.subr.bf16.mxu0 0
        %2976 = vmatpush1.bf16.msra.mxu0 0
        %2977 = vmatprep.subr.bf16.mxu0 0
        %2978 = vmatpush1.bf16.msra.mxu0 0
        %2979 = vmatprep.subr.bf16.mxu0 0
        %2980 = vmatpush1.bf16.msra.mxu0 0
        %2981 = vmatprep.subr.bf16.mxu0 0
        %2982 = vmatpush1.bf16.msra.mxu0 0
        %2983 = vmatprep.subr.bf16.mxu0 0
        %2984 = vmatpush1.bf16.msra.mxu0 0
        %2985 = vmatprep.subr.bf16.mxu0 %v2969
        %2986 = vmatpush1.bf16.msra.mxu0 %v2966
        %2987 = vmatprep.subr.bf16.mxu0 0
        %2988 = vmatpush2.bf16.msra.mxu0 0
        %2989 = vmatprep.subr.bf16.mxu0 0
        %2990 = vmatpush2.bf16.msra.mxu0 0
        %2991 = vmatprep.subr.bf16.mxu0 0
        %2992 = vmatpush2.bf16.msra.mxu0 0
        %2993 = vmatprep.subr.bf16.mxu0 0
        %2994 = vmatpush2.bf16.msra.mxu0 0
        %2995 = vmatprep.subr.bf16.mxu0 0
        %2996 = vmatpush2.bf16.msra.mxu0 0
        %2997 = vmatprep.subr.bf16.mxu0 0
        %2998 = vmatpush2.bf16.msra.mxu0 0
        %2999 = vmatprep.subr.bf16.mxu0 0
        %3000 = vmatpush2.bf16.msra.mxu0 0
        %3001 = vmatprep.subr.bf16.mxu0 0
        %3002 = vmatpush2.bf16.msra.mxu0 0
        %3003 = vmatprep.mubr.bf16.mxu0 0
        %3004 = vmatmul.mubr.bf16.gmra.mxu0 %v2116
        %v3005 = vpop.f32.mrf.mxu0
        %v3006 = vadd.f32 %v2058, %v3005
        %v3007 = vpop.f32.mrf.mxu0
        %v3008 = vadd.f32 %v2058, %v3007
        %v3009 = vpop.f32.mrf.mxu0
        %v3010 = vadd.f32 %v2063, %v3009
        %v3011 = vpop.f32.mrf.mxu0
        %v3012 = vadd.f32 %v2063, %v3011
        %3013 = vmatprep.mubr.bf16.mxu0 0
        %3014 = vmatmul.mubr.bf16.gmra.mxu0 %v2119
        %v3015 = vpop.f32.mrf.mxu0
        %v3016 = vadd.f32 %v2068, %v3015
        %v3017 = vpop.f32.mrf.mxu0
        %v3018 = vadd.f32 %v2068, %v3017
        %v3019 = vpop.f32.mrf.mxu0
        %v3020 = vadd.f32 %v2073, %v3019
        %v3021 = vpop.f32.mrf.mxu0
        %v3022 = vadd.f32 %v2073, %v3021
        %3023 = vmatprep.mubr.bf16.mxu0 0
        %3024 = vmatmul.mubr.bf16.gmra.mxu0 %v2122
        %v3025 = vpop.f32.mrf.mxu0
        %v3026 = vadd.f32 %v2078, %v3025
        %v3027 = vpop.f32.mrf.mxu0
        %v3028 = vadd.f32 %v2078, %v3027
        %v3029 = vpop.f32.mrf.mxu0
        %v3030 = vadd.f32 %v2083, %v3029
        %v3031 = vpop.f32.mrf.mxu0
        %v3032 = vadd.f32 %v2083, %v3031
        %3033 = vmatprep.mubr.bf16.mxu0 0
        %3034 = vmatmul.mubr.bf16.gmra.mxu0 %v2125
        %v3035 = vpop.f32.mrf.mxu0
        %v3036 = vadd.f32 %v2088, %v3035
        %v3037 = vpop.f32.mrf.mxu0
        %v3038 = vadd.f32 %v2088, %v3037
        %v3039 = vpop.f32.mrf.mxu0
        %v3040 = vadd.f32 %v2093, %v3039
        %v3041 = vpop.f32.mrf.mxu0
        %v3042 = vadd.f32 %v2093, %v3041
        %3043 = vdwg.mxu0
        %v3044 = vmax.f32 %v3006, 0.0
        %v3045 = vmax.f32 %v3008, 0.0
        %v3046 = vmax.f32 %v3010, 0.0
        %v3047 = vmax.f32 %v3012, 0.0
        %v3048 = vmax.f32 %v3016, 0.0
        %v3049 = vmax.f32 %v3018, 0.0
        %v3050 = vmax.f32 %v3020, 0.0
        %v3051 = vmax.f32 %v3022, 0.0
        %v3052 = vmax.f32 %v3026, 0.0
        %v3053 = vmax.f32 %v3028, 0.0
        %v3054 = vmax.f32 %v3030, 0.0
        %v3055 = vmax.f32 %v3032, 0.0
        %v3056 = vmax.f32 %v3036, 0.0
        %v3057 = vmax.f32 %v3038, 0.0
        %v3058 = vmax.f32 %v3040, 0.0
        %v3059 = vmax.f32 %v3042, 0.0
        %3060 = vxpose.xlu0.b32.start [1/16] %v3044, 128
        %3061 = vxpose.xlu0.b32.cont [2/16] %v3046, 128
        %3062 = vxpose.xlu0.b32.cont [3/16] %v3048, 128
        %3063 = vxpose.xlu0.b32.cont [4/16] %v3050, 128
        %3064 = vxpose.xlu0.b32.cont [5/16] %v3052, 128
        %3065 = vxpose.xlu0.b32.cont [6/16] %v3054, 128
        %3066 = vxpose.xlu0.b32.cont [7/16] %v3056, 128
        %3067 = vxpose.xlu0.b32.cont [8/16] %v3058, 128
        %3068 = vxpose.xlu0.b32.cont [9/16] 0.0, 128
        %3069 = vxpose.xlu0.b32.cont [10/16] 0.0, 128
        %3070 = vxpose.xlu0.b32.cont [11/16] 0.0, 128
        %3071 = vxpose.xlu0.b32.cont [12/16] 0.0, 128
        %3072 = vxpose.xlu0.b32.cont [13/16] 0.0, 128
        %3073 = vxpose.xlu0.b32.cont [14/16] 0.0, 128
        %3074 = vxpose.xlu0.b32.cont [15/16] 0.0, 128
        %3075 = vxpose.xlu0.b32.end [16/16] 0.0, 128
        %v3076 = vpop.trf.xlu0
        %v3077 = vpop.trf.xlu0
        %v3078 = vpop.trf.xlu0
        %v3079 = vpop.trf.xlu0
        %v3080 = vpop.trf.xlu0
        %v3081 = vpop.trf.xlu0
        %v3082 = vpop.trf.xlu0
        %v3083 = vpop.trf.xlu0
        %v3084 = vpop.trf.xlu0
        %v3085 = vpop.trf.xlu0
        %v3086 = vpop.trf.xlu0
        %v3087 = vpop.trf.xlu0
        %v3088 = vpop.trf.xlu0
        %v3089 = vpop.trf.xlu0
        %v3090 = vpop.trf.xlu0
        %v3091 = vpop.trf.xlu0
        %3092 = vxpose.xlu0.b32.start [1/16] %v3045, 128
        %3093 = vxpose.xlu0.b32.cont [2/16] %v3047, 128
        %3094 = vxpose.xlu0.b32.cont [3/16] %v3049, 128
        %3095 = vxpose.xlu0.b32.cont [4/16] %v3051, 128
        %3096 = vxpose.xlu0.b32.cont [5/16] %v3053, 128
        %3097 = vxpose.xlu0.b32.cont [6/16] %v3055, 128
        %3098 = vxpose.xlu0.b32.cont [7/16] %v3057, 128
        %3099 = vxpose.xlu0.b32.cont [8/16] %v3059, 128
        %3100 = vxpose.xlu0.b32.cont [9/16] 0.0, 128
        %3101 = vxpose.xlu0.b32.cont [10/16] 0.0, 128
        %3102 = vxpose.xlu0.b32.cont [11/16] 0.0, 128
        %3103 = vxpose.xlu0.b32.cont [12/16] 0.0, 128
        %3104 = vxpose.xlu0.b32.cont [13/16] 0.0, 128
        %3105 = vxpose.xlu0.b32.cont [14/16] 0.0, 128
        %3106 = vxpose.xlu0.b32.cont [15/16] 0.0, 128
        %3107 = vxpose.xlu0.b32.end [16/16] 0.0, 128
        %v3108 = vpop.trf.xlu0
        %v3109 = vpop.trf.xlu0
        %v3110 = vpop.trf.xlu0
        %v3111 = vpop.trf.xlu0
        %v3112 = vpop.trf.xlu0
        %v3113 = vpop.trf.xlu0
        %v3114 = vpop.trf.xlu0
        %v3115 = vpop.trf.xlu0
        %v3116 = vpop.trf.xlu0
        %v3117 = vpop.trf.xlu0
        %v3118 = vpop.trf.xlu0
        %v3119 = vpop.trf.xlu0
        %v3120 = vpop.trf.xlu0
        %v3121 = vpop.trf.xlu0
        %v3122 = vpop.trf.xlu0
        %v3123 = vpop.trf.xlu0
        %v3124 = vpack.c.bf16 %v3077, %v3076
        %v3125 = vpack.c.bf16 %v3079, %v3078
        %v3126 = vpack.c.bf16 %v3081, %v3080
        %v3127 = vpack.c.bf16 %v3083, %v3082
        %v3128 = vpack.c.bf16 %v3085, %v3084
        %v3129 = vpack.c.bf16 %v3087, %v3086
        %v3130 = vpack.c.bf16 %v3089, %v3088
        %v3131 = vpack.c.bf16 %v3091, %v3090
        %v3132 = vpack.c.bf16 %v3109, %v3108
        %v3133 = vpack.c.bf16 %v3111, %v3110
        %v3134 = vpack.c.bf16 %v3113, %v3112
        %v3135 = vpack.c.bf16 %v3115, %v3114
        %v3136 = vpack.c.bf16 %v3117, %v3116
        %v3137 = vpack.c.bf16 %v3119, %v3118
        %v3138 = vpack.c.bf16 %v3121, %v3120
        %v3139 = vpack.c.bf16 %v3123, %v3122
        %v3141 = vsel %vm659, %v3124, 0
        %v3144 = vsel %vm659, %v3125, 0
        %v3147 = vsel %vm659, %v3126, 0
        %v3150 = vsel %vm659, %v3127, 0
        %v3153 = vsel %vm659, %v3128, 0
        %v3156 = vsel %vm659, %v3129, 0
        %v3159 = vsel %vm659, %v3130, 0
        %v3162 = vsel %vm659, %v3131, 0
        %v3165 = vsel %vm659, %v3132, 0
        %v3168 = vsel %vm659, %v3133, 0
        %v3171 = vsel %vm659, %v3134, 0
        %v3174 = vsel %vm659, %v3135, 0
        %v3177 = vsel %vm659, %v3136, 0
        %v3180 = vsel %vm659, %v3137, 0
        %v3183 = vsel %vm659, %v3138, 0
        %v3186 = vsel %vm659, %v3139, 0
        %3188 = vmatprep.subr.bf16.mxu0 0
        %3189 = vmatpush1.bf16.msra.mxu0 0
        %3190 = vmatprep.subr.bf16.mxu0 0
        %3191 = vmatpush1.bf16.msra.mxu0 0
        %3192 = vmatprep.subr.bf16.mxu0 0
        %3193 = vmatpush1.bf16.msra.mxu0 0
        %3194 = vmatprep.subr.bf16.mxu0 0
        %3195 = vmatpush1.bf16.msra.mxu0 0
        %3196 = vmatprep.subr.bf16.mxu0 0
        %3197 = vmatpush1.bf16.msra.mxu0 %v2336
        %3198 = vmatprep.subr.bf16.mxu0 0
        %3199 = vmatpush1.bf16.msra.mxu0 %v2335
        %3200 = vmatprep.subr.bf16.mxu0 0
        %3201 = vmatpush1.bf16.msra.mxu0 %v2334
        %3202 = vmatprep.subr.bf16.mxu0 0
        %3203 = vmatpush1.bf16.msra.mxu0 %v2333
        %3204 = vmatprep.subr.bf16.mxu0 0
        %3205 = vmatpush2.bf16.msra.mxu0 0
        %3206 = vmatprep.subr.bf16.mxu0 0
        %3207 = vmatpush2.bf16.msra.mxu0 0
        %3208 = vmatprep.subr.bf16.mxu0 0
        %3209 = vmatpush2.bf16.msra.mxu0 0
        %3210 = vmatprep.subr.bf16.mxu0 0
        %3211 = vmatpush2.bf16.msra.mxu0 0
        %3212 = vmatprep.subr.bf16.mxu0 0
        %3213 = vmatpush2.bf16.msra.mxu0 0
        %3214 = vmatprep.subr.bf16.mxu0 0
        %3215 = vmatpush2.bf16.msra.mxu0 0
        %3216 = vmatprep.subr.bf16.mxu0 0
        %3217 = vmatpush2.bf16.msra.mxu0 0
        %3218 = vmatprep.subr.bf16.mxu0 0
        %3219 = vmatpush2.bf16.msra.mxu0 0
        %3220 = vmatprep.mubr.bf16.mxu0 0
        %3221 = vmatmul.mubr.bf16.gmra.mxu0 %v3141
        %v3222 = vpop.f32.mrf.mxu0
        %v3223 = vadd.f32 %v2315, %v3222
        %v3224 = vpop.f32.mrf.mxu0
        %v3225 = vpop.f32.mrf.mxu0
        %v3226 = vadd.f32 %v2315, %v3225
        %v3227 = vpop.f32.mrf.mxu0
        %3228 = vmatprep.mubr.bf16.mxu0 0
        %3229 = vmatmul.mubr.bf16.gmra.mxu0 %v3144
        %v3230 = vpop.f32.mrf.mxu0
        %v3231 = vadd.f32 %v2315, %v3230
        %v3232 = vpop.f32.mrf.mxu0
        %v3233 = vpop.f32.mrf.mxu0
        %v3234 = vadd.f32 %v2315, %v3233
        %v3235 = vpop.f32.mrf.mxu0
        %3236 = vmatprep.mubr.bf16.mxu0 0
        %3237 = vmatmul.mubr.bf16.gmra.mxu0 %v3147
        %v3238 = vpop.f32.mrf.mxu0
        %v3239 = vadd.f32 %v2315, %v3238
        %v3240 = vpop.f32.mrf.mxu0
        %v3241 = vpop.f32.mrf.mxu0
        %v3242 = vadd.f32 %v2315, %v3241
        %v3243 = vpop.f32.mrf.mxu0
        %3244 = vmatprep.mubr.bf16.mxu0 0
        %3245 = vmatmul.mubr.bf16.gmra.mxu0 %v3150
        %v3246 = vpop.f32.mrf.mxu0
        %v3247 = vadd.f32 %v2315, %v3246
        %v3248 = vpop.f32.mrf.mxu0
        %v3249 = vpop.f32.mrf.mxu0
        %v3250 = vadd.f32 %v2315, %v3249
        %v3251 = vpop.f32.mrf.mxu0
        %3252 = vmatprep.mubr.bf16.mxu0 0
        %3253 = vmatmul.mubr.bf16.gmra.mxu0 %v3153
        %v3254 = vpop.f32.mrf.mxu0
        %v3255 = vadd.f32 %v2315, %v3254
        %v3256 = vpop.f32.mrf.mxu0
        %v3257 = vpop.f32.mrf.mxu0
        %v3258 = vadd.f32 %v2315, %v3257
        %v3259 = vpop.f32.mrf.mxu0
        %3260 = vmatprep.mubr.bf16.mxu0 0
        %3261 = vmatmul.mubr.bf16.gmra.mxu0 %v3156
        %v3262 = vpop.f32.mrf.mxu0
        %v3263 = vadd.f32 %v2315, %v3262
        %v3264 = vpop.f32.mrf.mxu0
        %v3265 = vpop.f32.mrf.mxu0
        %v3266 = vadd.f32 %v2315, %v3265
        %v3267 = vpop.f32.mrf.mxu0
        %3268 = vmatprep.mubr.bf16.mxu0 0
        %3269 = vmatmul.mubr.bf16.gmra.mxu0 %v3159
        %v3270 = vpop.f32.mrf.mxu0
        %v3271 = vadd.f32 %v2315, %v3270
        %v3272 = vpop.f32.mrf.mxu0
        %v3273 = vpop.f32.mrf.mxu0
        %v3274 = vadd.f32 %v2315, %v3273
        %v3275 = vpop.f32.mrf.mxu0
        %3276 = vmatprep.mubr.bf16.mxu0 0
        %3277 = vmatmul.mubr.bf16.gmra.mxu0 %v3162
        %v3278 = vpop.f32.mrf.mxu0
        %v3279 = vadd.f32 %v2315, %v3278
        %v3280 = vpop.f32.mrf.mxu0
        %v3281 = vpop.f32.mrf.mxu0
        %v3282 = vadd.f32 %v2315, %v3281
        %v3283 = vpop.f32.mrf.mxu0
        %3284 = vmatprep.mubr.bf16.mxu0 0
        %3285 = vmatmul.mubr.bf16.gmra.mxu0 %v3165
        %v3286 = vpop.f32.mrf.mxu0
        %v3287 = vadd.f32 %v2315, %v3286
        %v3288 = vpop.f32.mrf.mxu0
        %v3289 = vpop.f32.mrf.mxu0
        %v3290 = vadd.f32 %v2315, %v3289
        %v3291 = vpop.f32.mrf.mxu0
        %3292 = vmatprep.mubr.bf16.mxu0 0
        %3293 = vmatmul.mubr.bf16.gmra.mxu0 %v3168
        %v3294 = vpop.f32.mrf.mxu0
        %v3295 = vadd.f32 %v2315, %v3294
        %v3296 = vpop.f32.mrf.mxu0
        %v3297 = vpop.f32.mrf.mxu0
        %v3298 = vadd.f32 %v2315, %v3297
        %v3299 = vpop.f32.mrf.mxu0
        %3300 = vmatprep.mubr.bf16.mxu0 0
        %3301 = vmatmul.mubr.bf16.gmra.mxu0 %v3171
        %v3302 = vpop.f32.mrf.mxu0
        %v3303 = vadd.f32 %v2315, %v3302
        %v3304 = vpop.f32.mrf.mxu0
        %v3305 = vpop.f32.mrf.mxu0
        %v3306 = vadd.f32 %v2315, %v3305
        %v3307 = vpop.f32.mrf.mxu0
        %3308 = vmatprep.mubr.bf16.mxu0 0
        %3309 = vmatmul.mubr.bf16.gmra.mxu0 %v3174
        %v3310 = vpop.f32.mrf.mxu0
        %v3311 = vadd.f32 %v2315, %v3310
        %v3312 = vpop.f32.mrf.mxu0
        %v3313 = vpop.f32.mrf.mxu0
        %v3314 = vadd.f32 %v2315, %v3313
        %v3315 = vpop.f32.mrf.mxu0
        %3316 = vmatprep.mubr.bf16.mxu0 0
        %3317 = vmatmul.mubr.bf16.gmra.mxu0 %v3177
        %v3318 = vpop.f32.mrf.mxu0
        %v3319 = vadd.f32 %v2315, %v3318
        %v3320 = vpop.f32.mrf.mxu0
        %v3321 = vpop.f32.mrf.mxu0
        %v3322 = vadd.f32 %v2315, %v3321
        %v3323 = vpop.f32.mrf.mxu0
        %3324 = vmatprep.mubr.bf16.mxu0 0
        %3325 = vmatmul.mubr.bf16.gmra.mxu0 %v3180
        %v3326 = vpop.f32.mrf.mxu0
        %v3327 = vadd.f32 %v2315, %v3326
        %v3328 = vpop.f32.mrf.mxu0
        %v3329 = vpop.f32.mrf.mxu0
        %v3330 = vadd.f32 %v2315, %v3329
        %v3331 = vpop.f32.mrf.mxu0
        %3332 = vmatprep.mubr.bf16.mxu0 0
        %3333 = vmatmul.mubr.bf16.gmra.mxu0 %v3183
        %v3334 = vpop.f32.mrf.mxu0
        %v3335 = vadd.f32 %v2315, %v3334
        %v3336 = vpop.f32.mrf.mxu0
        %v3337 = vpop.f32.mrf.mxu0
        %v3338 = vadd.f32 %v2315, %v3337
        %v3339 = vpop.f32.mrf.mxu0
        %3340 = vmatprep.mubr.bf16.mxu0 0
        %3341 = vmatmul.mubr.bf16.gmra.mxu0 %v3186
        %v3342 = vpop.f32.mrf.mxu0
        %v3343 = vadd.f32 %v2315, %v3342
        %v3344 = vpop.f32.mrf.mxu0
        %v3345 = vpop.f32.mrf.mxu0
        %v3346 = vadd.f32 %v2315, %v3345
        %v3347 = vpop.f32.mrf.mxu0
        %3348 = vdwg.mxu0
        %v3349 = vmax.f32 %v3223, 0.0
        %v3350 = vmax.f32 %v3226, 0.0
        %v3351 = vmax.f32 %v3231, 0.0
        %v3352 = vmax.f32 %v3234, 0.0
        %v3353 = vmax.f32 %v3239, 0.0
        %v3354 = vmax.f32 %v3242, 0.0
        %v3355 = vmax.f32 %v3247, 0.0
        %v3356 = vmax.f32 %v3250, 0.0
        %v3357 = vmax.f32 %v3255, 0.0
        %v3358 = vmax.f32 %v3258, 0.0
        %v3359 = vmax.f32 %v3263, 0.0
        %v3360 = vmax.f32 %v3266, 0.0
        %v3361 = vmax.f32 %v3271, 0.0
        %v3362 = vmax.f32 %v3274, 0.0
        %v3363 = vmax.f32 %v3279, 0.0
        %v3364 = vmax.f32 %v3282, 0.0
        %v3365 = vmax.f32 %v3287, 0.0
        %v3366 = vmax.f32 %v3290, 0.0
        %v3367 = vmax.f32 %v3295, 0.0
        %v3368 = vmax.f32 %v3298, 0.0
        %v3369 = vmax.f32 %v3303, 0.0
        %v3370 = vmax.f32 %v3306, 0.0
        %v3371 = vmax.f32 %v3311, 0.0
        %v3372 = vmax.f32 %v3314, 0.0
        %v3373 = vmax.f32 %v3319, 0.0
        %v3374 = vmax.f32 %v3322, 0.0
        %v3375 = vmax.f32 %v3327, 0.0
        %v3376 = vmax.f32 %v3330, 0.0
        %v3377 = vmax.f32 %v3335, 0.0
        %v3378 = vmax.f32 %v3338, 0.0
        %v3379 = vmax.f32 %v3343, 0.0
        %v3380 = vmax.f32 %v3346, 0.0
        %v3381 = vpack.c.bf16 %v3350, %v3349
        %v3382 = vpack.c.bf16 %v3352, %v3351
        %v3383 = vpack.c.bf16 %v3354, %v3353
        %v3384 = vpack.c.bf16 %v3356, %v3355
        %v3385 = vpack.c.bf16 %v3358, %v3357
        %v3386 = vpack.c.bf16 %v3360, %v3359
        %v3387 = vpack.c.bf16 %v3362, %v3361
        %v3388 = vpack.c.bf16 %v3364, %v3363
        %v3389 = vpack.c.bf16 %v3366, %v3365
        %v3390 = vpack.c.bf16 %v3368, %v3367
        %v3391 = vpack.c.bf16 %v3370, %v3369
        %v3392 = vpack.c.bf16 %v3372, %v3371
        %v3393 = vpack.c.bf16 %v3374, %v3373
        %v3394 = vpack.c.bf16 %v3376, %v3375
        %v3395 = vpack.c.bf16 %v3378, %v3377
        %v3396 = vpack.c.bf16 %v3380, %v3379
        %3397 = vmatprep.subr.bf16.mxu0 %v2677
        %3398 = vmatpush1.bf16.msra.mxu0 %v2676
        %3399 = vmatprep.subr.bf16.mxu0 %v2675
        %3400 = vmatpush1.bf16.msra.mxu0 %v2674
        %3401 = vmatprep.subr.bf16.mxu0 %v2673
        %3402 = vmatpush1.bf16.msra.mxu0 %v2672
        %3403 = vmatprep.subr.bf16.mxu0 %v2671
        %3404 = vmatpush1.bf16.msra.mxu0 %v2670
        %3405 = vmatprep.subr.bf16.mxu0 %v2669
        %3406 = vmatpush1.bf16.msra.mxu0 %v2668
        %3407 = vmatprep.subr.bf16.mxu0 %v2667
        %3408 = vmatpush1.bf16.msra.mxu0 %v2666
        %3409 = vmatprep.subr.bf16.mxu0 %v2665
        %3410 = vmatpush1.bf16.msra.mxu0 %v2664
        %3411 = vmatprep.subr.bf16.mxu0 %v2663
        %3412 = vmatpush1.bf16.msra.mxu0 %v2662
        %3413 = vmatprep.subr.bf16.mxu0 0
        %3414 = vmatpush2.bf16.msra.mxu0 0
        %3415 = vmatprep.subr.bf16.mxu0 0
        %3416 = vmatpush2.bf16.msra.mxu0 0
        %3417 = vmatprep.subr.bf16.mxu0 0
        %3418 = vmatpush2.bf16.msra.mxu0 0
        %3419 = vmatprep.subr.bf16.mxu0 0
        %3420 = vmatpush2.bf16.msra.mxu0 0
        %3421 = vmatprep.subr.bf16.mxu0 0
        %3422 = vmatpush2.bf16.msra.mxu0 0
        %3423 = vmatprep.subr.bf16.mxu0 0
        %3424 = vmatpush2.bf16.msra.mxu0 0
        %3425 = vmatprep.subr.bf16.mxu0 0
        %3426 = vmatpush2.bf16.msra.mxu0 0
        %3427 = vmatprep.subr.bf16.mxu0 0
        %3428 = vmatpush2.bf16.msra.mxu0 0
        %3429 = vmatprep.mubr.bf16.mxu0 0
        %3430 = vmatmul.mubr.bf16.gmra.mxu0 %v3381
        %v3431 = vpop.f32.mrf.mxu0
        %v3432 = vadd.f32 0.0, %v3431
        %v3433 = vpop.f32.mrf.mxu0
        %v3434 = vadd.f32 0.0, %v3433
        %v3435 = vpop.f32.mrf.mxu0
        %v3436 = vadd.f32 0.0, %v3435
        %v3437 = vpop.f32.mrf.mxu0
        %v3438 = vadd.f32 0.0, %v3437
        %3439 = vmatprep.mubr.bf16.mxu0 0
        %3440 = vmatmul.mubr.bf16.gmra.mxu0 %v3382
        %v3441 = vpop.f32.mrf.mxu0
        %v3442 = vadd.f32 0.0, %v3441
        %v3443 = vpop.f32.mrf.mxu0
        %v3444 = vadd.f32 0.0, %v3443
        %v3445 = vpop.f32.mrf.mxu0
        %v3446 = vadd.f32 0.0, %v3445
        %v3447 = vpop.f32.mrf.mxu0
        %v3448 = vadd.f32 0.0, %v3447
        %3449 = vmatprep.mubr.bf16.mxu0 0
        %3450 = vmatmul.mubr.bf16.gmra.mxu0 %v3383
        %v3451 = vpop.f32.mrf.mxu0
        %v3452 = vadd.f32 0.0, %v3451
        %v3453 = vpop.f32.mrf.mxu0
        %v3454 = vadd.f32 0.0, %v3453
        %v3455 = vpop.f32.mrf.mxu0
        %v3456 = vadd.f32 0.0, %v3455
        %v3457 = vpop.f32.mrf.mxu0
        %v3458 = vadd.f32 0.0, %v3457
        %3459 = vmatprep.mubr.bf16.mxu0 0
        %3460 = vmatmul.mubr.bf16.gmra.mxu0 %v3384
        %v3461 = vpop.f32.mrf.mxu0
        %v3462 = vadd.f32 0.0, %v3461
        %v3463 = vpop.f32.mrf.mxu0
        %v3464 = vadd.f32 0.0, %v3463
        %v3465 = vpop.f32.mrf.mxu0
        %v3466 = vadd.f32 0.0, %v3465
        %v3467 = vpop.f32.mrf.mxu0
        %v3468 = vadd.f32 0.0, %v3467
        %3469 = vmatprep.mubr.bf16.mxu0 0
        %3470 = vmatmul.mubr.bf16.gmra.mxu0 %v3385
        %v3471 = vpop.f32.mrf.mxu0
        %v3472 = vadd.f32 0.0, %v3471
        %v3473 = vpop.f32.mrf.mxu0
        %v3474 = vadd.f32 0.0, %v3473
        %v3475 = vpop.f32.mrf.mxu0
        %v3476 = vadd.f32 0.0, %v3475
        %v3477 = vpop.f32.mrf.mxu0
        %v3478 = vadd.f32 0.0, %v3477
        %3479 = vmatprep.mubr.bf16.mxu0 0
        %3480 = vmatmul.mubr.bf16.gmra.mxu0 %v3386
        %v3481 = vpop.f32.mrf.mxu0
        %v3482 = vadd.f32 0.0, %v3481
        %v3483 = vpop.f32.mrf.mxu0
        %v3484 = vadd.f32 0.0, %v3483
        %v3485 = vpop.f32.mrf.mxu0
        %v3486 = vadd.f32 0.0, %v3485
        %v3487 = vpop.f32.mrf.mxu0
        %v3488 = vadd.f32 0.0, %v3487
        %3489 = vmatprep.mubr.bf16.mxu0 0
        %3490 = vmatmul.mubr.bf16.gmra.mxu0 %v3387
        %v3491 = vpop.f32.mrf.mxu0
        %v3492 = vadd.f32 0.0, %v3491
        %v3493 = vpop.f32.mrf.mxu0
        %v3494 = vadd.f32 0.0, %v3493
        %v3495 = vpop.f32.mrf.mxu0
        %v3496 = vadd.f32 0.0, %v3495
        %v3497 = vpop.f32.mrf.mxu0
        %v3498 = vadd.f32 0.0, %v3497
        %3499 = vmatprep.mubr.bf16.mxu0 0
        %3500 = vmatmul.mubr.bf16.gmra.mxu0 %v3388
        %v3501 = vpop.f32.mrf.mxu0
        %v3502 = vadd.f32 0.0, %v3501
        %v3503 = vpop.f32.mrf.mxu0
        %v3504 = vadd.f32 0.0, %v3503
        %v3505 = vpop.f32.mrf.mxu0
        %v3506 = vadd.f32 0.0, %v3505
        %v3507 = vpop.f32.mrf.mxu0
        %v3508 = vadd.f32 0.0, %v3507
        %3509 = vmatprep.mubr.bf16.mxu0 0
        %3510 = vmatmul.mubr.bf16.gmra.mxu0 %v3389
        %v3511 = vpop.f32.mrf.mxu0
        %v3512 = vadd.f32 0.0, %v3511
        %v3513 = vpop.f32.mrf.mxu0
        %v3514 = vadd.f32 0.0, %v3513
        %v3515 = vpop.f32.mrf.mxu0
        %v3516 = vadd.f32 0.0, %v3515
        %v3517 = vpop.f32.mrf.mxu0
        %v3518 = vadd.f32 0.0, %v3517
        %3519 = vmatprep.mubr.bf16.mxu0 0
        %3520 = vmatmul.mubr.bf16.gmra.mxu0 %v3390
        %v3521 = vpop.f32.mrf.mxu0
        %v3522 = vadd.f32 0.0, %v3521
        %v3523 = vpop.f32.mrf.mxu0
        %v3524 = vadd.f32 0.0, %v3523
        %v3525 = vpop.f32.mrf.mxu0
        %v3526 = vadd.f32 0.0, %v3525
        %v3527 = vpop.f32.mrf.mxu0
        %v3528 = vadd.f32 0.0, %v3527
        %3529 = vmatprep.mubr.bf16.mxu0 0
        %3530 = vmatmul.mubr.bf16.gmra.mxu0 %v3391
        %v3531 = vpop.f32.mrf.mxu0
        %v3532 = vadd.f32 0.0, %v3531
        %v3533 = vpop.f32.mrf.mxu0
        %v3534 = vadd.f32 0.0, %v3533
        %v3535 = vpop.f32.mrf.mxu0
        %v3536 = vadd.f32 0.0, %v3535
        %v3537 = vpop.f32.mrf.mxu0
        %v3538 = vadd.f32 0.0, %v3537
        %3539 = vmatprep.mubr.bf16.mxu0 0
        %3540 = vmatmul.mubr.bf16.gmra.mxu0 %v3392
        %v3541 = vpop.f32.mrf.mxu0
        %v3542 = vadd.f32 0.0, %v3541
        %v3543 = vpop.f32.mrf.mxu0
        %v3544 = vadd.f32 0.0, %v3543
        %v3545 = vpop.f32.mrf.mxu0
        %v3546 = vadd.f32 0.0, %v3545
        %v3547 = vpop.f32.mrf.mxu0
        %v3548 = vadd.f32 0.0, %v3547
        %3549 = vmatprep.mubr.bf16.mxu0 0
        %3550 = vmatmul.mubr.bf16.gmra.mxu0 %v3393
        %v3551 = vpop.f32.mrf.mxu0
        %v3552 = vadd.f32 0.0, %v3551
        %v3553 = vpop.f32.mrf.mxu0
        %v3554 = vadd.f32 0.0, %v3553
        %v3555 = vpop.f32.mrf.mxu0
        %v3556 = vadd.f32 0.0, %v3555
        %v3557 = vpop.f32.mrf.mxu0
        %v3558 = vadd.f32 0.0, %v3557
        %3559 = vmatprep.mubr.bf16.mxu0 0
        %3560 = vmatmul.mubr.bf16.gmra.mxu0 %v3394
        %v3561 = vpop.f32.mrf.mxu0
        %v3562 = vadd.f32 0.0, %v3561
        %v3563 = vpop.f32.mrf.mxu0
        %v3564 = vadd.f32 0.0, %v3563
        %v3565 = vpop.f32.mrf.mxu0
        %v3566 = vadd.f32 0.0, %v3565
        %v3567 = vpop.f32.mrf.mxu0
        %v3568 = vadd.f32 0.0, %v3567
        %3569 = vmatprep.mubr.bf16.mxu0 0
        %3570 = vmatmul.mubr.bf16.gmra.mxu0 %v3395
        %v3571 = vpop.f32.mrf.mxu0
        %v3572 = vadd.f32 0.0, %v3571
        %v3573 = vpop.f32.mrf.mxu0
        %v3574 = vadd.f32 0.0, %v3573
        %v3575 = vpop.f32.mrf.mxu0
        %v3576 = vadd.f32 0.0, %v3575
        %v3577 = vpop.f32.mrf.mxu0
        %v3578 = vadd.f32 0.0, %v3577
        %3579 = vmatprep.mubr.bf16.mxu0 0
        %3580 = vmatmul.mubr.bf16.gmra.mxu0 %v3396
        %v3581 = vpop.f32.mrf.mxu0
        %v3582 = vadd.f32 0.0, %v3581
        %v3583 = vpop.f32.mrf.mxu0
        %v3584 = vadd.f32 0.0, %v3583
        %v3585 = vpop.f32.mrf.mxu0
        %v3586 = vadd.f32 0.0, %v3585
        %v3587 = vpop.f32.mrf.mxu0
        %v3588 = vadd.f32 0.0, %v3587
        %3589 = vdwg.mxu0
        %v3590 = vmax.f32 %v3432, %v3442
        %v3591 = vmax.f32 %v3436, %v3446
        %v3592 = vmax.f32 %v3590, %v3452
        %v3593 = vmax.f32 %v3591, %v3456
        %v3594 = vmax.f32 %v3592, %v3462
        %v3595 = vmax.f32 %v3593, %v3466
        %v3596 = vmax.f32 %v3594, %v3472
        %v3597 = vmax.f32 %v3595, %v3476
        %v3598 = vmax.f32 %v3596, %v3482
        %v3599 = vmax.f32 %v3597, %v3486
        %v3600 = vmax.f32 %v3598, %v3492
        %v3601 = vmax.f32 %v3599, %v3496
        %v3602 = vmax.f32 %v3600, %v3502
        %v3603 = vmax.f32 %v3601, %v3506
        %v3604 = vmax.f32 %v3602, %v3512
        %v3605 = vmax.f32 %v3603, %v3516
        %v3606 = vmax.f32 %v3604, %v3522
        %v3607 = vmax.f32 %v3605, %v3526
        %v3608 = vmax.f32 %v3606, %v3532
        %v3609 = vmax.f32 %v3607, %v3536
        %v3610 = vmax.f32 %v3608, %v3542
        %v3611 = vmax.f32 %v3609, %v3546
        %v3612 = vmax.f32 %v3610, %v3552
        %v3613 = vmax.f32 %v3611, %v3556
        %v3614 = vmax.f32 %v3612, %v3562
        %v3615 = vmax.f32 %v3613, %v3566
        %v3616 = vmax.f32 %v3614, %v3572
        %v3617 = vmax.f32 %v3615, %v3576
        %v3618 = vmax.f32 %v3616, %v3582
        %v3619 = vmax.f32 %v3617, %v3586
        %v3620 = vmax.f32 %v3618, %v3619
        %v3621 = vrot.slane %v3620, 4
        %v3622 = vmax.f32 %v3620, %v3621
        %v3623 = vrot.slane %v3622, 2
        %v3624 = vmax.f32 %v3622, %v3623
        %v3625 = vrot.slane %v3624, 1
        %v3626 = vmax.f32 %v3624, %v3625
        %v3627 = vmax.f32 %v3434, %v3444
        %v3628 = vmax.f32 %v3438, %v3448
        %v3629 = vmax.f32 %v3627, %v3454
        %v3630 = vmax.f32 %v3628, %v3458
        %v3631 = vmax.f32 %v3629, %v3464
        %v3632 = vmax.f32 %v3630, %v3468
        %v3633 = vmax.f32 %v3631, %v3474
        %v3634 = vmax.f32 %v3632, %v3478
        %v3635 = vmax.f32 %v3633, %v3484
        %v3636 = vmax.f32 %v3634, %v3488
        %v3637 = vmax.f32 %v3635, %v3494
        %v3638 = vmax.f32 %v3636, %v3498
        %v3639 = vmax.f32 %v3637, %v3504
        %v3640 = vmax.f32 %v3638, %v3508
        %v3641 = vmax.f32 %v3639, %v3514
        %v3642 = vmax.f32 %v3640, %v3518
        %v3643 = vmax.f32 %v3641, %v3524
        %v3644 = vmax.f32 %v3642, %v3528
        %v3645 = vmax.f32 %v3643, %v3534
        %v3646 = vmax.f32 %v3644, %v3538
        %v3647 = vmax.f32 %v3645, %v3544
        %v3648 = vmax.f32 %v3646, %v3548
        %v3649 = vmax.f32 %v3647, %v3554
        %v3650 = vmax.f32 %v3648, %v3558
        %v3651 = vmax.f32 %v3649, %v3564
        %v3652 = vmax.f32 %v3650, %v3568
        %v3653 = vmax.f32 %v3651, %v3574
        %v3654 = vmax.f32 %v3652, %v3578
        %v3655 = vmax.f32 %v3653, %v3584
        %v3656 = vmax.f32 %v3654, %v3588
        %v3657 = vmax.f32 %v3655, %v3656
        %v3658 = vrot.slane %v3657, 4
        %v3659 = vmax.f32 %v3657, %v3658
        %v3660 = vrot.slane %v3659, 2
        %v3661 = vmax.f32 %v3659, %v3660
        %v3662 = vrot.slane %v3661, 1
        %v3663 = vmax.f32 %v3661, %v3662
        %v3664 = vmax.f32 %v2923, %v3626
        %v3665 = vmax.f32 %v2960, %v3663
        %v3666 = vld [vmem:[%s6] sm:$0x3]
        %v3668 = vlaneseq
        %v3669 = vshrl.u32 %v3668, 7
        %v3670 = vsub.s32 0, %v3669
        %v3671 = vrot.slane %v3666, %v3670
        %v3672 = vlaneseq
        %v3673 = vshrl.u32 %v3672, 7
        %v3674 = vsub.s32 1, %v3673
        %v3675 = vrot.slane %v3666, %v3674
        %v3678 = vadd.f32 %v3664, %v3671
        %v3679 = vadd.f32 %v3665, %v3675
        %v3682 = vcombine.low %v3678, %v3679
        %v3684 = vunpack.c.l.s4 1966171168
        %v3685 = vunpack.c.0.s8 %v3684
        %v3686 = vlaneseq
        %v3687 = vshrl.u32 %v3686, 7
        %v3688 = vsub.s32 %v3685, %v3687
        %v3689 = vrot.slane %v3682, %v3688
        %v3691 = vunpack.c.l.s4 1966171168
        %v3692 = vunpack.c.0.s8 %v3691
        %v3693 = vlaneseq
        %v3694 = vshrl.u32 %v3693, 7
        %v3695 = vsub.s32 %v3692, %v3694
        %v3696 = vrot.slane %v3689, %v3695
        %s3698 = scalar_lea.vmem %s333, 1
        %3699 = vst.msk [vmem:[%s3698] ss:$2 sm:$0x3] %vm2020, %v3696
        %p3700 = scmp.lt.s32.totalorder %s23, 1
        %s3701 = scalar_select %p3700, %s23, 1
        %p3702 = scmp.lt.s32.totalorder %s22, 0
        %s3703 = scalar_select %p3702, %s22, 0
        %s3704 = smul.addr %s3703, 2
        %s3705 = smul.addr %s3701, 2
        %s3706 = sadd.s32 %s3704, %s3705
        %s3707 = smul.addr %s3706, 2
        %s3708 = scalar_lea.vmem %s7, %s3707
        // Predicated region
        $region72: #{pointcloud_encoder_forward.1} parent=66 // pred_check
          %p3709 = pneg %p204
        $region73: #{pointcloud_encoder_forward.1} parent=66 // pred_check_branch
          %3711 = sbr.rel (%p3709) target = $region75
        $region74: #{pointcloud_encoder_forward.1} parent=66 // pred_region
          _
        $region75: #{pointcloud_encoder_forward.1} parent=66 // pred_fallthru
          _
      $region67: #{pointcloud_encoder_forward.1} parent=5 // pred_fallthru
        _
      %p3712 = scmp.le.s32.totalorder 2, %s13
      // Predicated region
      $region76: #{pointcloud_encoder_forward.1} parent=5 // pred_check
        %p3713 = pneg %p3712
      $region77: #{pointcloud_encoder_forward.1} parent=5 // pred_check_branch
        %3715 = sbr.rel (%p3713) target = $region79
      $region78: #{pointcloud_encoder_forward.1} parent=5 // pred_region
        %s3716 = ssub.s32 %s13, 2
        // Predicated region
        $region80: #{pointcloud_encoder_forward.1} parent=78 // pred_check
          %p3717 = pneg %p210
        $region81: #{pointcloud_encoder_forward.1} parent=78 // pred_check_branch
          %3719 = sbr.rel (%p3717) target = $region83
        $region82: #{pointcloud_encoder_forward.1} parent=78 // pred_region
          %p3720 = scmp.lt.s32.totalorder %s25, 1
          %s3721 = scalar_select %p3720, %s25, 1
          %p3722 = scmp.lt.s32.totalorder %s24, 0
          %s3723 = scalar_select %p3722, %s24, 0
          %s3724 = smul.addr %s3723, 2
          %s3725 = smul.addr %s3721, 2
          %s3726 = sadd.s32 %s3724, %s3725
          %s3727 = smul.addr %s3726, 2
          %s3728 = scalar_lea.vmem %s7, %s3727
        $region83: #{pointcloud_encoder_forward.1} parent=78 // pred_fallthru
          _
      $region79: #{pointcloud_encoder_forward.1} parent=5 // pred_fallthru
        _
    $region6: #{pointcloud_encoder_forward.1} parent=1 // loop_footer
      %s17 = sadd.s32 1, %s13
    $region7: #{pointcloud_encoder_forward.1} parent=1 // loop_footer_branch
      %12 = sbr.rel target = $region3
    $region8: #{pointcloud_encoder_forward.1} parent=1 // loop_exit
      _

</llo_original>
